<compile_context>
chip_gen: v7x
topology: tpu7x:2x2x1
jax: 0.10.0
libtpu: 0.0.40
codegen_flags: <defaults>
</compile_context>

<pallas_src>
import functools

import jax
import jax.numpy as jnp
from jax.experimental import pallas as pl
from jax.experimental.pallas import tpu as pltpu


def _round_up(x, m):
    return ((x + m - 1) // m) * m


def _sigmoid(x):
    # exp + approx reciprocal both run on the EUP slot (keeps VPU free).
    return pl.reciprocal(1.0 + jnp.exp(-x), approx=True)


def _encoder_kernel(emb_ref, wih_ref, whh_ref, b_ref,
                    hid_ref, cell_ref,
                    xseq_ref, xg_ref,
                    *, n_layers, seq_len, bp, dp):
    """Fused multi-layer LSTM forward; invoked once (grid=(1,)).

    emb_ref : (seq*BP, D)   f32   embedded + padded source sequence
    wih_ref : (L, D, 4D)    bf16  W_ih^T per layer (gate blocks padded H->D)
    whh_ref : (L, D, 4D)    bf16  W_hh^T per layer (gate blocks padded H->D)
    b_ref   : (L, 1, 4D)    f32   b_ih + b_hh per layer (gate blocks padded)
    hid_ref : (L, BP, D)    f32   final hidden state per layer
    cell_ref: (L, BP, D)    f32   final cell state per layer
    xseq_ref: (seq*BP, D)   f32   scratch: inter-layer activation sequence
    xg_ref  : (seq*BP, 4D)  f32   scratch: hoisted input projection
    """
    D = dp
    for layer in range(n_layers):
        # ---- hoisted input projection: one big MXU GEMM over the whole sequence
        src = emb_ref if layer == 0 else xseq_ref
        x_bf = src[...].astype(jnp.bfloat16)                       # (seq*BP, D)
        xg_ref[...] = (jnp.dot(x_bf, wih_ref[layer],
                               preferred_element_type=jnp.float32)
                       + b_ref[layer])                             # (seq*BP, 4D)

        # ---- sequential recurrence (fully unrolled; seq_len is small/static)
        h = jnp.zeros((bp, D), jnp.float32)
        c = jnp.zeros((bp, D), jnp.float32)
        for t in range(seq_len):
            rows = slice(t * bp, (t + 1) * bp)
            gates = xg_ref[rows, :] + jnp.dot(
                h.astype(jnp.bfloat16), whh_ref[layer],
                preferred_element_type=jnp.float32)                # (BP, 4D)
            # PyTorch gate order [i, f, g, o]; D is a multiple of 128 so every
            # slice is a lane-aligned 128-wide block (pure VPU/EUP work).
            i_g = _sigmoid(gates[:, 0 * D:1 * D])
            f_g = _sigmoid(gates[:, 1 * D:2 * D])
            g_g = jnp.tanh(gates[:, 2 * D:3 * D])
            o_g = _sigmoid(gates[:, 3 * D:4 * D])
            c = f_g * c + i_g * g_g
            h = o_g * jnp.tanh(c)
            if layer + 1 < n_layers:
                # Inter-layer dropout is identity in eval mode.
                xseq_ref[rows, :] = h
        # Final states written once per layer (no redundant per-step stores).
        hid_ref[layer] = h
        cell_ref[layer] = c


def _fused_encoder_lstm(emb_p, wih_all, whh_all, b_all, *, seq_len, bp, d):
    n_layers = wih_all.shape[0]
    kernel = functools.partial(_encoder_kernel, n_layers=n_layers,
                               seq_len=seq_len, bp=bp, dp=d)
    out_shape = (
        jax.ShapeDtypeStruct((n_layers, bp, d), jnp.float32),   # hidden
        jax.ShapeDtypeStruct((n_layers, bp, d), jnp.float32),   # cell
    )
    grid_spec = pltpu.PrefetchScalarGridSpec(
        num_scalar_prefetch=0,
        grid=(1,),
        in_specs=[
            pl.BlockSpec((seq_len * bp, d), lambda i: (0, 0)),          # embedded
            pl.BlockSpec((n_layers, d, 4 * d), lambda i: (0, 0, 0)),    # W_ih^T
            pl.BlockSpec((n_layers, d, 4 * d), lambda i: (0, 0, 0)),    # W_hh^T
            pl.BlockSpec((n_layers, 1, 4 * d), lambda i: (0, 0, 0)),    # bias
        ],
        out_specs=[
            pl.BlockSpec((n_layers, bp, d), lambda i: (0, 0, 0)),       # hidden
            pl.BlockSpec((n_layers, bp, d), lambda i: (0, 0, 0)),       # cell
        ],
        scratch_shapes=[
            pltpu.VMEM((seq_len * bp, d), jnp.float32),       # inter-layer seq
            pltpu.VMEM((seq_len * bp, 4 * d), jnp.float32),   # hoisted x @ W_ih
        ],
    )
    return pl.pallas_call(
        kernel,
        out_shape=out_shape,
        grid_spec=grid_spec,
        compiler_params=pltpu.CompilerParams(
            dimension_semantics=("arbitrary",)),
    )(emb_p, wih_all, whh_all, b_all)


# ---------------------------------------------------------------------------
# Parameter construction / packing (PyTorch-equivalent layout + TPU padding)
# ---------------------------------------------------------------------------

def init_encoder_params(key, input_dim, embedding_dim, hidden_dim, n_layers):
    keys = jax.random.split(key, 1 + 4 * n_layers)
    params = {
        # nn.Embedding default init: N(0, 1)
        "embedding": jax.random.normal(keys[0], (input_dim, embedding_dim),
                                       dtype=jnp.float32),
        "layers": [],
    }
    k = 1.0 / (hidden_dim ** 0.5)  # nn.LSTM default init: U(-1/sqrt(H), 1/sqrt(H))
    ki = 1
    for layer in range(n_layers):
        in_dim = embedding_dim if layer == 0 else hidden_dim
        w_ih = jax.random.uniform(keys[ki], (4 * hidden_dim, in_dim),
                                  jnp.float32, -k, k); ki += 1
        w_hh = jax.random.uniform(keys[ki], (4 * hidden_dim, hidden_dim),
                                  jnp.float32, -k, k); ki += 1
        b_ih = jax.random.uniform(keys[ki], (4 * hidden_dim,),
                                  jnp.float32, -k, k); ki += 1
        b_hh = jax.random.uniform(keys[ki], (4 * hidden_dim,),
                                  jnp.float32, -k, k); ki += 1
        params["layers"].append(
            {"w_ih": w_ih, "w_hh": w_hh, "b_ih": b_ih, "b_hh": b_hh})
    return params


def _pad_gate_blocks(w_t, hidden_dim, d):
    """(rows, 4H) -> (rows, 4D): zero-pad each PyTorch gate block [i,f,g,o] H->D."""
    rows = w_t.shape[0]
    w = w_t.reshape(rows, 4, hidden_dim)
    w = jnp.pad(w, ((0, 0), (0, 0), (0, d - hidden_dim)))
    return w.reshape(rows, 4 * d)


def _pack_lstm_params(layers, hidden_dim, d):
    """Pad + stack per-layer weights into uniform (L, D, 4D)/(L, 1, 4D) arrays."""
    wih, whh, bias = [], [], []
    for layer in layers:
        w_ih_t = _pad_gate_blocks(layer["w_ih"].T, hidden_dim, d)   # (in_dim, 4D)
        w_hh_t = _pad_gate_blocks(layer["w_hh"].T, hidden_dim, d)   # (H, 4D)
        b = _pad_gate_blocks((layer["b_ih"] + layer["b_hh"]).reshape(1, -1),
                             hidden_dim, d)                          # (1, 4D)
        # Zero-pad the contraction dim so padded input/hidden columns contribute 0.
        w_ih_t = jnp.pad(w_ih_t, ((0, d - w_ih_t.shape[0]), (0, 0)))
        w_hh_t = jnp.pad(w_hh_t, ((0, d - w_hh_t.shape[0]), (0, 0)))
        wih.append(w_ih_t.astype(jnp.bfloat16))
        whh.append(w_hh_t.astype(jnp.bfloat16))
        bias.append(b)
    return jnp.stack(wih), jnp.stack(whh), jnp.stack(bias)


def encoder_forward(params, source):
    """source: (seq_len, batch) int32 -> (hidden, cell), each (n_layers, batch, H)."""
    seq_len, batch = source.shape
    emb_tbl = params["embedding"]
    emb_dim = emb_tbl.shape[1]
    hidden_dim = params["layers"][0]["w_hh"].shape[1]
    n_layers = len(params["layers"])

    # Embedding lookup (plain-JAX gather glue); dropout is identity in eval mode.
    embedded = jnp.take(emb_tbl, source, axis=0)        # (seq, batch, emb) f32

    bp = _round_up(batch, 8)                            # sublane-aligned batch
    d = _round_up(max(emb_dim, hidden_dim), 128)        # lane-aligned features

    emb_p = jnp.zeros((seq_len, bp, d), jnp.float32)
    emb_p = emb_p.at[:, :batch, :emb_dim].set(embedded)
    emb_p = emb_p.reshape(seq_len * bp, d)              # 2D, lane-dense

    wih_all, whh_all, b_all = _pack_lstm_params(params["layers"], hidden_dim, d)

    hidden_p, cell_p = _fused_encoder_lstm(emb_p, wih_all, whh_all, b_all,
                                           seq_len=seq_len, bp=bp, d=d)
    hidden = hidden_p[:, :batch, :hidden_dim]
    cell = cell_p[:, :batch, :hidden_dim]
    return hidden, cell


if __name__ == "__main__":
    # Small shapes consistent with the module's forward.
    input_dim = 16      # vocab size
    embedding_dim = 32
    hidden_dim = 32
    n_layers = 2
    dropout = 0.1       # unused at inference
    seq_len = 8
    batch = 2

    key = jax.random.PRNGKey(0)
    pkey, skey = jax.random.split(key)
    params = init_encoder_params(pkey, input_dim, embedding_dim,
                                 hidden_dim, n_layers)
    source = jax.random.randint(skey, (seq_len, batch), 0, input_dim,
                                dtype=jnp.int32)

    hidden, cell = encoder_forward(params, source)
    jax.block_until_ready((hidden, cell))

    assert hidden.shape == (n_layers, batch, hidden_dim)
    assert cell.shape == (n_layers, batch, hidden_dim)
    assert bool(jnp.all(jnp.isfinite(hidden))) and bool(jnp.all(jnp.isfinite(cell)))
    print("KERNEL_OK")
</pallas_src>

<mosaic_0001>
module attributes {stable_mosaic.version = 11 : i64} {
  func.func @_encoder_kernel(%arg0: i32, %arg1: memref<64x128xf32, #tpu.memory_space<vmem>>, %arg2: memref<2x128x512xbf16, #tpu.memory_space<vmem>>, %arg3: memref<2x128x512xbf16, #tpu.memory_space<vmem>>, %arg4: memref<2x1x512xf32, #tpu.memory_space<vmem>>, %arg5: memref<2x8x128xf32, #tpu.memory_space<vmem>>, %arg6: memref<2x8x128xf32, #tpu.memory_space<vmem>>, %arg7: memref<64x128xf32, #tpu.memory_space<vmem>>, %arg8: memref<64x512xf32, #tpu.memory_space<vmem>>) attributes {dimension_semantics = [#tpu.dimension_semantics<arbitrary>], iteration_bounds = array<i64: 1>, scalar_prefetch = 0 : i64, scratch_operands = 2 : i64, tpu.core_type = #tpu.core_type<tc>, window_params = [{pipeline_mode = #tpu.pipeline_mode<synchronous>, transform_indices = @transform_0, window_bounds = array<i64: 64, 128>}, {pipeline_mode = #tpu.pipeline_mode<synchronous>, transform_indices = @transform_1, window_bounds = array<i64: 2, 128, 512>}, {pipeline_mode = #tpu.pipeline_mode<synchronous>, transform_indices = @transform_2, window_bounds = array<i64: 2, 128, 512>}, {pipeline_mode = #tpu.pipeline_mode<synchronous>, transform_indices = @transform_3, window_bounds = array<i64: 2, 1, 512>}, {pipeline_mode = #tpu.pipeline_mode<synchronous>, transform_indices = @transform_4, window_bounds = array<i64: 2, 8, 128>}, {pipeline_mode = #tpu.pipeline_mode<synchronous>, transform_indices = @transform_5, window_bounds = array<i64: 2, 8, 128>}]} {
    %c0 = arith.constant 0 : index
    %c0_0 = arith.constant 0 : index
    %0 = vector.load %arg1[%c0, %c0_0] : memref<64x128xf32, #tpu.memory_space<vmem>>, vector<64x128xf32>
    %1 = arith.truncf %0 : vector<64x128xf32> to vector<64x128xbf16>
    %c0_1 = arith.constant 0 : index
    %c0_2 = arith.constant 0 : index
    %c0_3 = arith.constant 0 : index
    %2 = vector.load %arg2[%c0_1, %c0_2, %c0_3] : memref<2x128x512xbf16, #tpu.memory_space<vmem>>, vector<1x128x512xbf16>
    %3 = vector.shape_cast %2 : vector<1x128x512xbf16> to vector<128x512xbf16>
    %cst = arith.constant dense<0.000000e+00> : vector<64x512xf32>
    %4 = tpu.matmul %1, %3, %cst {dimension_numbers = #tpu.dot_dimension_numbers<[1], [0], [0], [1], [0, 0, 1, 1], [], []>} : vector<64x128xbf16>, vector<128x512xbf16>, vector<64x512xf32> -> vector<64x512xf32>
    %c0_4 = arith.constant 0 : index
    %c0_5 = arith.constant 0 : index
    %c0_6 = arith.constant 0 : index
    %5 = vector.load %arg4[%c0_4, %c0_5, %c0_6] : memref<2x1x512xf32, #tpu.memory_space<vmem>>, vector<1x1x512xf32>
    %6 = vector.shape_cast %5 : vector<1x1x512xf32> to vector<1x512xf32>
    %7 = vector.broadcast %6 : vector<1x512xf32> to vector<64x512xf32>
    %8 = arith.addf %4, %7 : vector<64x512xf32>
    %c0_7 = arith.constant 0 : index
    %c0_8 = arith.constant 0 : index
    %9 = vector.load %arg8[%c0_7, %c0_8] : memref<64x512xf32, #tpu.memory_space<vmem>>, vector<64x512xf32>
    tpu.vector_store %arg8[%c0_7, %c0_8], %8 {strides = array<i32>} : memref<64x512xf32, #tpu.memory_space<vmem>>, vector<64x512xf32>,
    %cst_9 = arith.constant 0.000000e+00 : f32
    %10 = vector.broadcast %cst_9 : f32 to vector<8x128xf32>
    %cst_10 = arith.constant 0.000000e+00 : f32
    %11 = vector.broadcast %cst_10 : f32 to vector<8x128xf32>
    %c0_11 = arith.constant 0 : index
    %c0_12 = arith.constant 0 : index
    %12 = vector.load %arg8[%c0_11, %c0_12] : memref<64x512xf32, #tpu.memory_space<vmem>>, vector<8x512xf32>
    %13 = arith.truncf %10 : vector<8x128xf32> to vector<8x128xbf16>
    %c0_13 = arith.constant 0 : index
    %c0_14 = arith.constant 0 : index
    %c0_15 = arith.constant 0 : index
    %14 = vector.load %arg3[%c0_13, %c0_14, %c0_15] : memref<2x128x512xbf16, #tpu.memory_space<vmem>>, vector<1x128x512xbf16>
    %15 = vector.shape_cast %14 : vector<1x128x512xbf16> to vector<128x512xbf16>
    %cst_16 = arith.constant dense<0.000000e+00> : vector<8x512xf32>
    %16 = tpu.matmul %13, %15, %cst_16 {dimension_numbers = #tpu.dot_dimension_numbers<[1], [0], [0], [1], [0, 0, 1, 1], [], []>} : vector<8x128xbf16>, vector<128x512xbf16>, vector<8x512xf32> -> vector<8x512xf32>
    %17 = arith.addf %12, %16 : vector<8x512xf32>
    %18 = vector.extract_strided_slice %17 {offsets = [0, 0], sizes = [8, 128], strides = [1, 1]} : vector<8x512xf32> to vector<8x128xf32>
    %cst_17 = arith.constant 0.000000e+00 : f32
    %19 = vector.broadcast %cst_17 : f32 to vector<8x128xf32>
    %20 = arith.subf %19, %18 : vector<8x128xf32>
    %21 = math.exp %20 : vector<8x128xf32>
    %cst_18 = arith.constant 1.000000e+00 : f32
    %22 = vector.broadcast %cst_18 : f32 to vector<8x128xf32>
    %23 = arith.addf %22, %21 : vector<8x128xf32>
    %24 = tpu.reciprocal %23 {approx = true} : vector<8x128xf32> -> vector<8x128xf32>
    %25 = vector.extract_strided_slice %17 {offsets = [0, 128], sizes = [8, 128], strides = [1, 1]} : vector<8x512xf32> to vector<8x128xf32>
    %cst_19 = arith.constant 0.000000e+00 : f32
    %26 = vector.broadcast %cst_19 : f32 to vector<8x128xf32>
    %27 = arith.subf %26, %25 : vector<8x128xf32>
    %28 = math.exp %27 : vector<8x128xf32>
    %cst_20 = arith.constant 1.000000e+00 : f32
    %29 = vector.broadcast %cst_20 : f32 to vector<8x128xf32>
    %30 = arith.addf %29, %28 : vector<8x128xf32>
    %31 = tpu.reciprocal %30 {approx = true} : vector<8x128xf32> -> vector<8x128xf32>
    %32 = vector.extract_strided_slice %17 {offsets = [0, 256], sizes = [8, 128], strides = [1, 1]} : vector<8x512xf32> to vector<8x128xf32>
    %33 = math.tanh %32 : vector<8x128xf32>
    %34 = vector.extract_strided_slice %17 {offsets = [0, 384], sizes = [8, 128], strides = [1, 1]} : vector<8x512xf32> to vector<8x128xf32>
    %cst_21 = arith.constant 0.000000e+00 : f32
    %35 = vector.broadcast %cst_21 : f32 to vector<8x128xf32>
    %36 = arith.subf %35, %34 : vector<8x128xf32>
    %37 = math.exp %36 : vector<8x128xf32>
    %cst_22 = arith.constant 1.000000e+00 : f32
    %38 = vector.broadcast %cst_22 : f32 to vector<8x128xf32>
    %39 = arith.addf %38, %37 : vector<8x128xf32>
    %40 = tpu.reciprocal %39 {approx = true} : vector<8x128xf32> -> vector<8x128xf32>
    %41 = arith.mulf %31, %11 : vector<8x128xf32>
    %42 = arith.mulf %24, %33 : vector<8x128xf32>
    %43 = arith.addf %41, %42 : vector<8x128xf32>
    %44 = math.tanh %43 : vector<8x128xf32>
    %45 = arith.mulf %40, %44 : vector<8x128xf32>
    %c0_23 = arith.constant 0 : index
    %c0_24 = arith.constant 0 : index
    %46 = vector.load %arg7[%c0_23, %c0_24] : memref<64x128xf32, #tpu.memory_space<vmem>>, vector<8x128xf32>
    tpu.vector_store %arg7[%c0_23, %c0_24], %45 {strides = array<i32>} : memref<64x128xf32, #tpu.memory_space<vmem>>, vector<8x128xf32>,
    %c8 = arith.constant 8 : index
    %c0_25 = arith.constant 0 : index
    %47 = vector.load %arg8[%c8, %c0_25] : memref<64x512xf32, #tpu.memory_space<vmem>>, vector<8x512xf32>
    %48 = arith.truncf %45 : vector<8x128xf32> to vector<8x128xbf16>
    %c0_26 = arith.constant 0 : index
    %c0_27 = arith.constant 0 : index
    %c0_28 = arith.constant 0 : index
    %49 = vector.load %arg3[%c0_26, %c0_27, %c0_28] : memref<2x128x512xbf16, #tpu.memory_space<vmem>>, vector<1x128x512xbf16>
    %50 = vector.shape_cast %49 : vector<1x128x512xbf16> to vector<128x512xbf16>
    %cst_29 = arith.constant dense<0.000000e+00> : vector<8x512xf32>
    %51 = tpu.matmul %48, %50, %cst_29 {dimension_numbers = #tpu.dot_dimension_numbers<[1], [0], [0], [1], [0, 0, 1, 1], [], []>} : vector<8x128xbf16>, vector<128x512xbf16>, vector<8x512xf32> -> vector<8x512xf32>
    %52 = arith.addf %47, %51 : vector<8x512xf32>
    %53 = vector.extract_strided_slice %52 {offsets = [0, 0], sizes = [8, 128], strides = [1, 1]} : vector<8x512xf32> to vector<8x128xf32>
    %cst_30 = arith.constant 0.000000e+00 : f32
    %54 = vector.broadcast %cst_30 : f32 to vector<8x128xf32>
    %55 = arith.subf %54, %53 : vector<8x128xf32>
    %56 = math.exp %55 : vector<8x128xf32>
    %cst_31 = arith.constant 1.000000e+00 : f32
    %57 = vector.broadcast %cst_31 : f32 to vector<8x128xf32>
    %58 = arith.addf %57, %56 : vector<8x128xf32>
    %59 = tpu.reciprocal %58 {approx = true} : vector<8x128xf32> -> vector<8x128xf32>
    %60 = vector.extract_strided_slice %52 {offsets = [0, 128], sizes = [8, 128], strides = [1, 1]} : vector<8x512xf32> to vector<8x128xf32>
    %cst_32 = arith.constant 0.000000e+00 : f32
    %61 = vector.broadcast %cst_32 : f32 to vector<8x128xf32>
    %62 = arith.subf %61, %60 : vector<8x128xf32>
    %63 = math.exp %62 : vector<8x128xf32>
    %cst_33 = arith.constant 1.000000e+00 : f32
    %64 = vector.broadcast %cst_33 : f32 to vector<8x128xf32>
    %65 = arith.addf %64, %63 : vector<8x128xf32>
    %66 = tpu.reciprocal %65 {approx = true} : vector<8x128xf32> -> vector<8x128xf32>
    %67 = vector.extract_strided_slice %52 {offsets = [0, 256], sizes = [8, 128], strides = [1, 1]} : vector<8x512xf32> to vector<8x128xf32>
    %68 = math.tanh %67 : vector<8x128xf32>
    %69 = vector.extract_strided_slice %52 {offsets = [0, 384], sizes = [8, 128], strides = [1, 1]} : vector<8x512xf32> to vector<8x128xf32>
    %cst_34 = arith.constant 0.000000e+00 : f32
    %70 = vector.broadcast %cst_34 : f32 to vector<8x128xf32>
    %71 = arith.subf %70, %69 : vector<8x128xf32>
    %72 = math.exp %71 : vector<8x128xf32>
    %cst_35 = arith.constant 1.000000e+00 : f32
    %73 = vector.broadcast %cst_35 : f32 to vector<8x128xf32>
    %74 = arith.addf %73, %72 : vector<8x128xf32>
    %75 = tpu.reciprocal %74 {approx = true} : vector<8x128xf32> -> vector<8x128xf32>
    %76 = arith.mulf %66, %43 : vector<8x128xf32>
    %77 = arith.mulf %59, %68 : vector<8x128xf32>
    %78 = arith.addf %76, %77 : vector<8x128xf32>
    %79 = math.tanh %78 : vector<8x128xf32>
    %80 = arith.mulf %75, %79 : vector<8x128xf32>
    %c8_36 = arith.constant 8 : index
    %c0_37 = arith.constant 0 : index
    %81 = vector.load %arg7[%c8_36, %c0_37] : memref<64x128xf32, #tpu.memory_space<vmem>>, vector<8x128xf32>
    tpu.vector_store %arg7[%c8_36, %c0_37], %80 {strides = array<i32>} : memref<64x128xf32, #tpu.memory_space<vmem>>, vector<8x128xf32>,
    %c16 = arith.constant 16 : index
    %c0_38 = arith.constant 0 : index
    %82 = vector.load %arg8[%c16, %c0_38] : memref<64x512xf32, #tpu.memory_space<vmem>>, vector<8x512xf32>
    %83 = arith.truncf %80 : vector<8x128xf32> to vector<8x128xbf16>
    %c0_39 = arith.constant 0 : index
    %c0_40 = arith.constant 0 : index
    %c0_41 = arith.constant 0 : index
    %84 = vector.load %arg3[%c0_39, %c0_40, %c0_41] : memref<2x128x512xbf16, #tpu.memory_space<vmem>>, vector<1x128x512xbf16>
    %85 = vector.shape_cast %84 : vector<1x128x512xbf16> to vector<128x512xbf16>
    %cst_42 = arith.constant dense<0.000000e+00> : vector<8x512xf32>
    %86 = tpu.matmul %83, %85, %cst_42 {dimension_numbers = #tpu.dot_dimension_numbers<[1], [0], [0], [1], [0, 0, 1, 1], [], []>} : vector<8x128xbf16>, vector<128x512xbf16>, vector<8x512xf32> -> vector<8x512xf32>
    %87 = arith.addf %82, %86 : vector<8x512xf32>
    %88 = vector.extract_strided_slice %87 {offsets = [0, 0], sizes = [8, 128], strides = [1, 1]} : vector<8x512xf32> to vector<8x128xf32>
    %cst_43 = arith.constant 0.000000e+00 : f32
    %89 = vector.broadcast %cst_43 : f32 to vector<8x128xf32>
    %90 = arith.subf %89, %88 : vector<8x128xf32>
    %91 = math.exp %90 : vector<8x128xf32>
    %cst_44 = arith.constant 1.000000e+00 : f32
    %92 = vector.broadcast %cst_44 : f32 to vector<8x128xf32>
    %93 = arith.addf %92, %91 : vector<8x128xf32>
    %94 = tpu.reciprocal %93 {approx = true} : vector<8x128xf32> -> vector<8x128xf32>
    %95 = vector.extract_strided_slice %87 {offsets = [0, 128], sizes = [8, 128], strides = [1, 1]} : vector<8x512xf32> to vector<8x128xf32>
    %cst_45 = arith.constant 0.000000e+00 : f32
    %96 = vector.broadcast %cst_45 : f32 to vector<8x128xf32>
    %97 = arith.subf %96, %95 : vector<8x128xf32>
    %98 = math.exp %97 : vector<8x128xf32>
    %cst_46 = arith.constant 1.000000e+00 : f32
    %99 = vector.broadcast %cst_46 : f32 to vector<8x128xf32>
    %100 = arith.addf %99, %98 : vector<8x128xf32>
    %101 = tpu.reciprocal %100 {approx = true} : vector<8x128xf32> -> vector<8x128xf32>
    %102 = vector.extract_strided_slice %87 {offsets = [0, 256], sizes = [8, 128], strides = [1, 1]} : vector<8x512xf32> to vector<8x128xf32>
    %103 = math.tanh %102 : vector<8x128xf32>
    %104 = vector.extract_strided_slice %87 {offsets = [0, 384], sizes = [8, 128], strides = [1, 1]} : vector<8x512xf32> to vector<8x128xf32>
    %cst_47 = arith.constant 0.000000e+00 : f32
    %105 = vector.broadcast %cst_47 : f32 to vector<8x128xf32>
    %106 = arith.subf %105, %104 : vector<8x128xf32>
    %107 = math.exp %106 : vector<8x128xf32>
    %cst_48 = arith.constant 1.000000e+00 : f32
    %108 = vector.broadcast %cst_48 : f32 to vector<8x128xf32>
    %109 = arith.addf %108, %107 : vector<8x128xf32>
    %110 = tpu.reciprocal %109 {approx = true} : vector<8x128xf32> -> vector<8x128xf32>
    %111 = arith.mulf %101, %78 : vector<8x128xf32>
    %112 = arith.mulf %94, %103 : vector<8x128xf32>
    %113 = arith.addf %111, %112 : vector<8x128xf32>
    %114 = math.tanh %113 : vector<8x128xf32>
    %115 = arith.mulf %110, %114 : vector<8x128xf32>
    %c16_49 = arith.constant 16 : index
    %c0_50 = arith.constant 0 : index
    %116 = vector.load %arg7[%c16_49, %c0_50] : memref<64x128xf32, #tpu.memory_space<vmem>>, vector<8x128xf32>
    tpu.vector_store %arg7[%c16_49, %c0_50], %115 {strides = array<i32>} : memref<64x128xf32, #tpu.memory_space<vmem>>, vector<8x128xf32>,
    %c24 = arith.constant 24 : index
    %c0_51 = arith.constant 0 : index
    %117 = vector.load %arg8[%c24, %c0_51] : memref<64x512xf32, #tpu.memory_space<vmem>>, vector<8x512xf32>
    %118 = arith.truncf %115 : vector<8x128xf32> to vector<8x128xbf16>
    %c0_52 = arith.constant 0 : index
    %c0_53 = arith.constant 0 : index
    %c0_54 = arith.constant 0 : index
    %119 = vector.load %arg3[%c0_52, %c0_53, %c0_54] : memref<2x128x512xbf16, #tpu.memory_space<vmem>>, vector<1x128x512xbf16>
    %120 = vector.shape_cast %119 : vector<1x128x512xbf16> to vector<128x512xbf16>
    %cst_55 = arith.constant dense<0.000000e+00> : vector<8x512xf32>
    %121 = tpu.matmul %118, %120, %cst_55 {dimension_numbers = #tpu.dot_dimension_numbers<[1], [0], [0], [1], [0, 0, 1, 1], [], []>} : vector<8x128xbf16>, vector<128x512xbf16>, vector<8x512xf32> -> vector<8x512xf32>
    %122 = arith.addf %117, %121 : vector<8x512xf32>
    %123 = vector.extract_strided_slice %122 {offsets = [0, 0], sizes = [8, 128], strides = [1, 1]} : vector<8x512xf32> to vector<8x128xf32>
    %cst_56 = arith.constant 0.000000e+00 : f32
    %124 = vector.broadcast %cst_56 : f32 to vector<8x128xf32>
    %125 = arith.subf %124, %123 : vector<8x128xf32>
    %126 = math.exp %125 : vector<8x128xf32>
    %cst_57 = arith.constant 1.000000e+00 : f32
    %127 = vector.broadcast %cst_57 : f32 to vector<8x128xf32>
    %128 = arith.addf %127, %126 : vector<8x128xf32>
    %129 = tpu.reciprocal %128 {approx = true} : vector<8x128xf32> -> vector<8x128xf32>
    %130 = vector.extract_strided_slice %122 {offsets = [0, 128], sizes = [8, 128], strides = [1, 1]} : vector<8x512xf32> to vector<8x128xf32>
    %cst_58 = arith.constant 0.000000e+00 : f32
    %131 = vector.broadcast %cst_58 : f32 to vector<8x128xf32>
    %132 = arith.subf %131, %130 : vector<8x128xf32>
    %133 = math.exp %132 : vector<8x128xf32>
    %cst_59 = arith.constant 1.000000e+00 : f32
    %134 = vector.broadcast %cst_59 : f32 to vector<8x128xf32>
    %135 = arith.addf %134, %133 : vector<8x128xf32>
    %136 = tpu.reciprocal %135 {approx = true} : vector<8x128xf32> -> vector<8x128xf32>
    %137 = vector.extract_strided_slice %122 {offsets = [0, 256], sizes = [8, 128], strides = [1, 1]} : vector<8x512xf32> to vector<8x128xf32>
    %138 = math.tanh %137 : vector<8x128xf32>
    %139 = vector.extract_strided_slice %122 {offsets = [0, 384], sizes = [8, 128], strides = [1, 1]} : vector<8x512xf32> to vector<8x128xf32>
    %cst_60 = arith.constant 0.000000e+00 : f32
    %140 = vector.broadcast %cst_60 : f32 to vector<8x128xf32>
    %141 = arith.subf %140, %139 : vector<8x128xf32>
    %142 = math.exp %141 : vector<8x128xf32>
    %cst_61 = arith.constant 1.000000e+00 : f32
    %143 = vector.broadcast %cst_61 : f32 to vector<8x128xf32>
    %144 = arith.addf %143, %142 : vector<8x128xf32>
    %145 = tpu.reciprocal %144 {approx = true} : vector<8x128xf32> -> vector<8x128xf32>
    %146 = arith.mulf %136, %113 : vector<8x128xf32>
    %147 = arith.mulf %129, %138 : vector<8x128xf32>
    %148 = arith.addf %146, %147 : vector<8x128xf32>
    %149 = math.tanh %148 : vector<8x128xf32>
    %150 = arith.mulf %145, %149 : vector<8x128xf32>
    %c24_62 = arith.constant 24 : index
    %c0_63 = arith.constant 0 : index
    %151 = vector.load %arg7[%c24_62, %c0_63] : memref<64x128xf32, #tpu.memory_space<vmem>>, vector<8x128xf32>
    tpu.vector_store %arg7[%c24_62, %c0_63], %150 {strides = array<i32>} : memref<64x128xf32, #tpu.memory_space<vmem>>, vector<8x128xf32>,
    %c32 = arith.constant 32 : index
    %c0_64 = arith.constant 0 : index
    %152 = vector.load %arg8[%c32, %c0_64] : memref<64x512xf32, #tpu.memory_space<vmem>>, vector<8x512xf32>
    %153 = arith.truncf %150 : vector<8x128xf32> to vector<8x128xbf16>
    %c0_65 = arith.constant 0 : index
    %c0_66 = arith.constant 0 : index
    %c0_67 = arith.constant 0 : index
    %154 = vector.load %arg3[%c0_65, %c0_66, %c0_67] : memref<2x128x512xbf16, #tpu.memory_space<vmem>>, vector<1x128x512xbf16>
    %155 = vector.shape_cast %154 : vector<1x128x512xbf16> to vector<128x512xbf16>
    %cst_68 = arith.constant dense<0.000000e+00> : vector<8x512xf32>
    %156 = tpu.matmul %153, %155, %cst_68 {dimension_numbers = #tpu.dot_dimension_numbers<[1], [0], [0], [1], [0, 0, 1, 1], [], []>} : vector<8x128xbf16>, vector<128x512xbf16>, vector<8x512xf32> -> vector<8x512xf32>
    %157 = arith.addf %152, %156 : vector<8x512xf32>
    %158 = vector.extract_strided_slice %157 {offsets = [0, 0], sizes = [8, 128], strides = [1, 1]} : vector<8x512xf32> to vector<8x128xf32>
    %cst_69 = arith.constant 0.000000e+00 : f32
    %159 = vector.broadcast %cst_69 : f32 to vector<8x128xf32>
    %160 = arith.subf %159, %158 : vector<8x128xf32>
    %161 = math.exp %160 : vector<8x128xf32>
    %cst_70 = arith.constant 1.000000e+00 : f32
    %162 = vector.broadcast %cst_70 : f32 to vector<8x128xf32>
    %163 = arith.addf %162, %161 : vector<8x128xf32>
    %164 = tpu.reciprocal %163 {approx = true} : vector<8x128xf32> -> vector<8x128xf32>
    %165 = vector.extract_strided_slice %157 {offsets = [0, 128], sizes = [8, 128], strides = [1, 1]} : vector<8x512xf32> to vector<8x128xf32>
    %cst_71 = arith.constant 0.000000e+00 : f32
    %166 = vector.broadcast %cst_71 : f32 to vector<8x128xf32>
    %167 = arith.subf %166, %165 : vector<8x128xf32>
    %168 = math.exp %167 : vector<8x128xf32>
    %cst_72 = arith.constant 1.000000e+00 : f32
    %169 = vector.broadcast %cst_72 : f32 to vector<8x128xf32>
    %170 = arith.addf %169, %168 : vector<8x128xf32>
    %171 = tpu.reciprocal %170 {approx = true} : vector<8x128xf32> -> vector<8x128xf32>
    %172 = vector.extract_strided_slice %157 {offsets = [0, 256], sizes = [8, 128], strides = [1, 1]} : vector<8x512xf32> to vector<8x128xf32>
    %173 = math.tanh %172 : vector<8x128xf32>
    %174 = vector.extract_strided_slice %157 {offsets = [0, 384], sizes = [8, 128], strides = [1, 1]} : vector<8x512xf32> to vector<8x128xf32>
    %cst_73 = arith.constant 0.000000e+00 : f32
    %175 = vector.broadcast %cst_73 : f32 to vector<8x128xf32>
    %176 = arith.subf %175, %174 : vector<8x128xf32>
    %177 = math.exp %176 : vector<8x128xf32>
    %cst_74 = arith.constant 1.000000e+00 : f32
    %178 = vector.broadcast %cst_74 : f32 to vector<8x128xf32>
    %179 = arith.addf %178, %177 : vector<8x128xf32>
    %180 = tpu.reciprocal %179 {approx = true} : vector<8x128xf32> -> vector<8x128xf32>
    %181 = arith.mulf %171, %148 : vector<8x128xf32>
    %182 = arith.mulf %164, %173 : vector<8x128xf32>
    %183 = arith.addf %181, %182 : vector<8x128xf32>
    %184 = math.tanh %183 : vector<8x128xf32>
    %185 = arith.mulf %180, %184 : vector<8x128xf32>
    %c32_75 = arith.constant 32 : index
    %c0_76 = arith.constant 0 : index
    %186 = vector.load %arg7[%c32_75, %c0_76] : memref<64x128xf32, #tpu.memory_space<vmem>>, vector<8x128xf32>
    tpu.vector_store %arg7[%c32_75, %c0_76], %185 {strides = array<i32>} : memref<64x128xf32, #tpu.memory_space<vmem>>, vector<8x128xf32>,
    %c40 = arith.constant 40 : index
    %c0_77 = arith.constant 0 : index
    %187 = vector.load %arg8[%c40, %c0_77] : memref<64x512xf32, #tpu.memory_space<vmem>>, vector<8x512xf32>
    %188 = arith.truncf %185 : vector<8x128xf32> to vector<8x128xbf16>
    %c0_78 = arith.constant 0 : index
    %c0_79 = arith.constant 0 : index
    %c0_80 = arith.constant 0 : index
    %189 = vector.load %arg3[%c0_78, %c0_79, %c0_80] : memref<2x128x512xbf16, #tpu.memory_space<vmem>>, vector<1x128x512xbf16>
    %190 = vector.shape_cast %189 : vector<1x128x512xbf16> to vector<128x512xbf16>
    %cst_81 = arith.constant dense<0.000000e+00> : vector<8x512xf32>
    %191 = tpu.matmul %188, %190, %cst_81 {dimension_numbers = #tpu.dot_dimension_numbers<[1], [0], [0], [1], [0, 0, 1, 1], [], []>} : vector<8x128xbf16>, vector<128x512xbf16>, vector<8x512xf32> -> vector<8x512xf32>
    %192 = arith.addf %187, %191 : vector<8x512xf32>
    %193 = vector.extract_strided_slice %192 {offsets = [0, 0], sizes = [8, 128], strides = [1, 1]} : vector<8x512xf32> to vector<8x128xf32>
    %cst_82 = arith.constant 0.000000e+00 : f32
    %194 = vector.broadcast %cst_82 : f32 to vector<8x128xf32>
    %195 = arith.subf %194, %193 : vector<8x128xf32>
    %196 = math.exp %195 : vector<8x128xf32>
    %cst_83 = arith.constant 1.000000e+00 : f32
    %197 = vector.broadcast %cst_83 : f32 to vector<8x128xf32>
    %198 = arith.addf %197, %196 : vector<8x128xf32>
    %199 = tpu.reciprocal %198 {approx = true} : vector<8x128xf32> -> vector<8x128xf32>
    %200 = vector.extract_strided_slice %192 {offsets = [0, 128], sizes = [8, 128], strides = [1, 1]} : vector<8x512xf32> to vector<8x128xf32>
    %cst_84 = arith.constant 0.000000e+00 : f32
    %201 = vector.broadcast %cst_84 : f32 to vector<8x128xf32>
    %202 = arith.subf %201, %200 : vector<8x128xf32>
    %203 = math.exp %202 : vector<8x128xf32>
    %cst_85 = arith.constant 1.000000e+00 : f32
    %204 = vector.broadcast %cst_85 : f32 to vector<8x128xf32>
    %205 = arith.addf %204, %203 : vector<8x128xf32>
    %206 = tpu.reciprocal %205 {approx = true} : vector<8x128xf32> -> vector<8x128xf32>
    %207 = vector.extract_strided_slice %192 {offsets = [0, 256], sizes = [8, 128], strides = [1, 1]} : vector<8x512xf32> to vector<8x128xf32>
    %208 = math.tanh %207 : vector<8x128xf32>
    %209 = vector.extract_strided_slice %192 {offsets = [0, 384], sizes = [8, 128], strides = [1, 1]} : vector<8x512xf32> to vector<8x128xf32>
    %cst_86 = arith.constant 0.000000e+00 : f32
    %210 = vector.broadcast %cst_86 : f32 to vector<8x128xf32>
    %211 = arith.subf %210, %209 : vector<8x128xf32>
    %212 = math.exp %211 : vector<8x128xf32>
    %cst_87 = arith.constant 1.000000e+00 : f32
    %213 = vector.broadcast %cst_87 : f32 to vector<8x128xf32>
    %214 = arith.addf %213, %212 : vector<8x128xf32>
    %215 = tpu.reciprocal %214 {approx = true} : vector<8x128xf32> -> vector<8x128xf32>
    %216 = arith.mulf %206, %183 : vector<8x128xf32>
    %217 = arith.mulf %199, %208 : vector<8x128xf32>
    %218 = arith.addf %216, %217 : vector<8x128xf32>
    %219 = math.tanh %218 : vector<8x128xf32>
    %220 = arith.mulf %215, %219 : vector<8x128xf32>
    %c40_88 = arith.constant 40 : index
    %c0_89 = arith.constant 0 : index
    %221 = vector.load %arg7[%c40_88, %c0_89] : memref<64x128xf32, #tpu.memory_space<vmem>>, vector<8x128xf32>
    tpu.vector_store %arg7[%c40_88, %c0_89], %220 {strides = array<i32>} : memref<64x128xf32, #tpu.memory_space<vmem>>, vector<8x128xf32>,
    %c48 = arith.constant 48 : index
    %c0_90 = arith.constant 0 : index
    %222 = vector.load %arg8[%c48, %c0_90] : memref<64x512xf32, #tpu.memory_space<vmem>>, vector<8x512xf32>
    %223 = arith.truncf %220 : vector<8x128xf32> to vector<8x128xbf16>
    %c0_91 = arith.constant 0 : index
    %c0_92 = arith.constant 0 : index
    %c0_93 = arith.constant 0 : index
    %224 = vector.load %arg3[%c0_91, %c0_92, %c0_93] : memref<2x128x512xbf16, #tpu.memory_space<vmem>>, vector<1x128x512xbf16>
    %225 = vector.shape_cast %224 : vector<1x128x512xbf16> to vector<128x512xbf16>
    %cst_94 = arith.constant dense<0.000000e+00> : vector<8x512xf32>
    %226 = tpu.matmul %223, %225, %cst_94 {dimension_numbers = #tpu.dot_dimension_numbers<[1], [0], [0], [1], [0, 0, 1, 1], [], []>} : vector<8x128xbf16>, vector<128x512xbf16>, vector<8x512xf32> -> vector<8x512xf32>
    %227 = arith.addf %222, %226 : vector<8x512xf32>
    %228 = vector.extract_strided_slice %227 {offsets = [0, 0], sizes = [8, 128], strides = [1, 1]} : vector<8x512xf32> to vector<8x128xf32>
    %cst_95 = arith.constant 0.000000e+00 : f32
    %229 = vector.broadcast %cst_95 : f32 to vector<8x128xf32>
    %230 = arith.subf %229, %228 : vector<8x128xf32>
    %231 = math.exp %230 : vector<8x128xf32>
    %cst_96 = arith.constant 1.000000e+00 : f32
    %232 = vector.broadcast %cst_96 : f32 to vector<8x128xf32>
    %233 = arith.addf %232, %231 : vector<8x128xf32>
    %234 = tpu.reciprocal %233 {approx = true} : vector<8x128xf32> -> vector<8x128xf32>
    %235 = vector.extract_strided_slice %227 {offsets = [0, 128], sizes = [8, 128], strides = [1, 1]} : vector<8x512xf32> to vector<8x128xf32>
    %cst_97 = arith.constant 0.000000e+00 : f32
    %236 = vector.broadcast %cst_97 : f32 to vector<8x128xf32>
    %237 = arith.subf %236, %235 : vector<8x128xf32>
    %238 = math.exp %237 : vector<8x128xf32>
    %cst_98 = arith.constant 1.000000e+00 : f32
    %239 = vector.broadcast %cst_98 : f32 to vector<8x128xf32>
    %240 = arith.addf %239, %238 : vector<8x128xf32>
    %241 = tpu.reciprocal %240 {approx = true} : vector<8x128xf32> -> vector<8x128xf32>
    %242 = vector.extract_strided_slice %227 {offsets = [0, 256], sizes = [8, 128], strides = [1, 1]} : vector<8x512xf32> to vector<8x128xf32>
    %243 = math.tanh %242 : vector<8x128xf32>
    %244 = vector.extract_strided_slice %227 {offsets = [0, 384], sizes = [8, 128], strides = [1, 1]} : vector<8x512xf32> to vector<8x128xf32>
    %cst_99 = arith.constant 0.000000e+00 : f32
    %245 = vector.broadcast %cst_99 : f32 to vector<8x128xf32>
    %246 = arith.subf %245, %244 : vector<8x128xf32>
    %247 = math.exp %246 : vector<8x128xf32>
    %cst_100 = arith.constant 1.000000e+00 : f32
    %248 = vector.broadcast %cst_100 : f32 to vector<8x128xf32>
    %249 = arith.addf %248, %247 : vector<8x128xf32>
    %250 = tpu.reciprocal %249 {approx = true} : vector<8x128xf32> -> vector<8x128xf32>
    %251 = arith.mulf %241, %218 : vector<8x128xf32>
    %252 = arith.mulf %234, %243 : vector<8x128xf32>
    %253 = arith.addf %251, %252 : vector<8x128xf32>
    %254 = math.tanh %253 : vector<8x128xf32>
    %255 = arith.mulf %250, %254 : vector<8x128xf32>
    %c48_101 = arith.constant 48 : index
    %c0_102 = arith.constant 0 : index
    %256 = vector.load %arg7[%c48_101, %c0_102] : memref<64x128xf32, #tpu.memory_space<vmem>>, vector<8x128xf32>
    tpu.vector_store %arg7[%c48_101, %c0_102], %255 {strides = array<i32>} : memref<64x128xf32, #tpu.memory_space<vmem>>, vector<8x128xf32>,
    %c56 = arith.constant 56 : index
    %c0_103 = arith.constant 0 : index
    %257 = vector.load %arg8[%c56, %c0_103] : memref<64x512xf32, #tpu.memory_space<vmem>>, vector<8x512xf32>
    %258 = arith.truncf %255 : vector<8x128xf32> to vector<8x128xbf16>
    %c0_104 = arith.constant 0 : index
    %c0_105 = arith.constant 0 : index
    %c0_106 = arith.constant 0 : index
    %259 = vector.load %arg3[%c0_104, %c0_105, %c0_106] : memref<2x128x512xbf16, #tpu.memory_space<vmem>>, vector<1x128x512xbf16>
    %260 = vector.shape_cast %259 : vector<1x128x512xbf16> to vector<128x512xbf16>
    %cst_107 = arith.constant dense<0.000000e+00> : vector<8x512xf32>
    %261 = tpu.matmul %258, %260, %cst_107 {dimension_numbers = #tpu.dot_dimension_numbers<[1], [0], [0], [1], [0, 0, 1, 1], [], []>} : vector<8x128xbf16>, vector<128x512xbf16>, vector<8x512xf32> -> vector<8x512xf32>
    %262 = arith.addf %257, %261 : vector<8x512xf32>
    %263 = vector.extract_strided_slice %262 {offsets = [0, 0], sizes = [8, 128], strides = [1, 1]} : vector<8x512xf32> to vector<8x128xf32>
    %cst_108 = arith.constant 0.000000e+00 : f32
    %264 = vector.broadcast %cst_108 : f32 to vector<8x128xf32>
    %265 = arith.subf %264, %263 : vector<8x128xf32>
    %266 = math.exp %265 : vector<8x128xf32>
    %cst_109 = arith.constant 1.000000e+00 : f32
    %267 = vector.broadcast %cst_109 : f32 to vector<8x128xf32>
    %268 = arith.addf %267, %266 : vector<8x128xf32>
    %269 = tpu.reciprocal %268 {approx = true} : vector<8x128xf32> -> vector<8x128xf32>
    %270 = vector.extract_strided_slice %262 {offsets = [0, 128], sizes = [8, 128], strides = [1, 1]} : vector<8x512xf32> to vector<8x128xf32>
    %cst_110 = arith.constant 0.000000e+00 : f32
    %271 = vector.broadcast %cst_110 : f32 to vector<8x128xf32>
    %272 = arith.subf %271, %270 : vector<8x128xf32>
    %273 = math.exp %272 : vector<8x128xf32>
    %cst_111 = arith.constant 1.000000e+00 : f32
    %274 = vector.broadcast %cst_111 : f32 to vector<8x128xf32>
    %275 = arith.addf %274, %273 : vector<8x128xf32>
    %276 = tpu.reciprocal %275 {approx = true} : vector<8x128xf32> -> vector<8x128xf32>
    %277 = vector.extract_strided_slice %262 {offsets = [0, 256], sizes = [8, 128], strides = [1, 1]} : vector<8x512xf32> to vector<8x128xf32>
    %278 = math.tanh %277 : vector<8x128xf32>
    %279 = vector.extract_strided_slice %262 {offsets = [0, 384], sizes = [8, 128], strides = [1, 1]} : vector<8x512xf32> to vector<8x128xf32>
    %cst_112 = arith.constant 0.000000e+00 : f32
    %280 = vector.broadcast %cst_112 : f32 to vector<8x128xf32>
    %281 = arith.subf %280, %279 : vector<8x128xf32>
    %282 = math.exp %281 : vector<8x128xf32>
    %cst_113 = arith.constant 1.000000e+00 : f32
    %283 = vector.broadcast %cst_113 : f32 to vector<8x128xf32>
    %284 = arith.addf %283, %282 : vector<8x128xf32>
    %285 = tpu.reciprocal %284 {approx = true} : vector<8x128xf32> -> vector<8x128xf32>
    %286 = arith.mulf %276, %253 : vector<8x128xf32>
    %287 = arith.mulf %269, %278 : vector<8x128xf32>
    %288 = arith.addf %286, %287 : vector<8x128xf32>
    %289 = math.tanh %288 : vector<8x128xf32>
    %290 = arith.mulf %285, %289 : vector<8x128xf32>
    %c56_114 = arith.constant 56 : index
    %c0_115 = arith.constant 0 : index
    %291 = vector.load %arg7[%c56_114, %c0_115] : memref<64x128xf32, #tpu.memory_space<vmem>>, vector<8x128xf32>
    tpu.vector_store %arg7[%c56_114, %c0_115], %290 {strides = array<i32>} : memref<64x128xf32, #tpu.memory_space<vmem>>, vector<8x128xf32>,
    %c0_116 = arith.constant 0 : index
    %c0_117 = arith.constant 0 : index
    %c0_118 = arith.constant 0 : index
    %292 = vector.load %arg5[%c0_116, %c0_117, %c0_118] : memref<2x8x128xf32, #tpu.memory_space<vmem>>, vector<1x8x128xf32>
    %293 = vector.shape_cast %292 : vector<1x8x128xf32> to vector<8x128xf32>
    %294 = vector.shape_cast %290 : vector<8x128xf32> to vector<1x8x128xf32>
    tpu.vector_store %arg5[%c0_116, %c0_117, %c0_118], %294 {strides = array<i32>} : memref<2x8x128xf32, #tpu.memory_space<vmem>>, vector<1x8x128xf32>,
    %c0_119 = arith.constant 0 : index
    %c0_120 = arith.constant 0 : index
    %c0_121 = arith.constant 0 : index
    %295 = vector.load %arg6[%c0_119, %c0_120, %c0_121] : memref<2x8x128xf32, #tpu.memory_space<vmem>>, vector<1x8x128xf32>
    %296 = vector.shape_cast %295 : vector<1x8x128xf32> to vector<8x128xf32>
    %297 = vector.shape_cast %288 : vector<8x128xf32> to vector<1x8x128xf32>
    tpu.vector_store %arg6[%c0_119, %c0_120, %c0_121], %297 {strides = array<i32>} : memref<2x8x128xf32, #tpu.memory_space<vmem>>, vector<1x8x128xf32>,
    %c0_122 = arith.constant 0 : index
    %c0_123 = arith.constant 0 : index
    %298 = vector.load %arg7[%c0_122, %c0_123] : memref<64x128xf32, #tpu.memory_space<vmem>>, vector<64x128xf32>
    %299 = arith.truncf %298 : vector<64x128xf32> to vector<64x128xbf16>
    %c1 = arith.constant 1 : index
    %c0_124 = arith.constant 0 : index
    %c0_125 = arith.constant 0 : index
    %300 = vector.load %arg2[%c1, %c0_124, %c0_125] : memref<2x128x512xbf16, #tpu.memory_space<vmem>>, vector<1x128x512xbf16>
    %301 = vector.shape_cast %300 : vector<1x128x512xbf16> to vector<128x512xbf16>
    %cst_126 = arith.constant dense<0.000000e+00> : vector<64x512xf32>
    %302 = tpu.matmul %299, %301, %cst_126 {dimension_numbers = #tpu.dot_dimension_numbers<[1], [0], [0], [1], [0, 0, 1, 1], [], []>} : vector<64x128xbf16>, vector<128x512xbf16>, vector<64x512xf32> -> vector<64x512xf32>
    %c1_127 = arith.constant 1 : index
    %c0_128 = arith.constant 0 : index
    %c0_129 = arith.constant 0 : index
    %303 = vector.load %arg4[%c1_127, %c0_128, %c0_129] : memref<2x1x512xf32, #tpu.memory_space<vmem>>, vector<1x1x512xf32>
    %304 = vector.shape_cast %303 : vector<1x1x512xf32> to vector<1x512xf32>
    %305 = vector.broadcast %304 : vector<1x512xf32> to vector<64x512xf32>
    %306 = arith.addf %302, %305 : vector<64x512xf32>
    %c0_130 = arith.constant 0 : index
    %c0_131 = arith.constant 0 : index
    %307 = vector.load %arg8[%c0_130, %c0_131] : memref<64x512xf32, #tpu.memory_space<vmem>>, vector<64x512xf32>
    tpu.vector_store %arg8[%c0_130, %c0_131], %306 {strides = array<i32>} : memref<64x512xf32, #tpu.memory_space<vmem>>, vector<64x512xf32>,
    %cst_132 = arith.constant 0.000000e+00 : f32
    %308 = vector.broadcast %cst_132 : f32 to vector<8x128xf32>
    %cst_133 = arith.constant 0.000000e+00 : f32
    %309 = vector.broadcast %cst_133 : f32 to vector<8x128xf32>
    %c0_134 = arith.constant 0 : index
    %c0_135 = arith.constant 0 : index
    %310 = vector.load %arg8[%c0_134, %c0_135] : memref<64x512xf32, #tpu.memory_space<vmem>>, vector<8x512xf32>
    %311 = arith.truncf %308 : vector<8x128xf32> to vector<8x128xbf16>
    %c1_136 = arith.constant 1 : index
    %c0_137 = arith.constant 0 : index
    %c0_138 = arith.constant 0 : index
    %312 = vector.load %arg3[%c1_136, %c0_137, %c0_138] : memref<2x128x512xbf16, #tpu.memory_space<vmem>>, vector<1x128x512xbf16>
    %313 = vector.shape_cast %312 : vector<1x128x512xbf16> to vector<128x512xbf16>
    %cst_139 = arith.constant dense<0.000000e+00> : vector<8x512xf32>
    %314 = tpu.matmul %311, %313, %cst_139 {dimension_numbers = #tpu.dot_dimension_numbers<[1], [0], [0], [1], [0, 0, 1, 1], [], []>} : vector<8x128xbf16>, vector<128x512xbf16>, vector<8x512xf32> -> vector<8x512xf32>
    %315 = arith.addf %310, %314 : vector<8x512xf32>
    %316 = vector.extract_strided_slice %315 {offsets = [0, 0], sizes = [8, 128], strides = [1, 1]} : vector<8x512xf32> to vector<8x128xf32>
    %cst_140 = arith.constant 0.000000e+00 : f32
    %317 = vector.broadcast %cst_140 : f32 to vector<8x128xf32>
    %318 = arith.subf %317, %316 : vector<8x128xf32>
    %319 = math.exp %318 : vector<8x128xf32>
    %cst_141 = arith.constant 1.000000e+00 : f32
    %320 = vector.broadcast %cst_141 : f32 to vector<8x128xf32>
    %321 = arith.addf %320, %319 : vector<8x128xf32>
    %322 = tpu.reciprocal %321 {approx = true} : vector<8x128xf32> -> vector<8x128xf32>
    %323 = vector.extract_strided_slice %315 {offsets = [0, 128], sizes = [8, 128], strides = [1, 1]} : vector<8x512xf32> to vector<8x128xf32>
    %cst_142 = arith.constant 0.000000e+00 : f32
    %324 = vector.broadcast %cst_142 : f32 to vector<8x128xf32>
    %325 = arith.subf %324, %323 : vector<8x128xf32>
    %326 = math.exp %325 : vector<8x128xf32>
    %cst_143 = arith.constant 1.000000e+00 : f32
    %327 = vector.broadcast %cst_143 : f32 to vector<8x128xf32>
    %328 = arith.addf %327, %326 : vector<8x128xf32>
    %329 = tpu.reciprocal %328 {approx = true} : vector<8x128xf32> -> vector<8x128xf32>
    %330 = vector.extract_strided_slice %315 {offsets = [0, 256], sizes = [8, 128], strides = [1, 1]} : vector<8x512xf32> to vector<8x128xf32>
    %331 = math.tanh %330 : vector<8x128xf32>
    %332 = vector.extract_strided_slice %315 {offsets = [0, 384], sizes = [8, 128], strides = [1, 1]} : vector<8x512xf32> to vector<8x128xf32>
    %cst_144 = arith.constant 0.000000e+00 : f32
    %333 = vector.broadcast %cst_144 : f32 to vector<8x128xf32>
    %334 = arith.subf %333, %332 : vector<8x128xf32>
    %335 = math.exp %334 : vector<8x128xf32>
    %cst_145 = arith.constant 1.000000e+00 : f32
    %336 = vector.broadcast %cst_145 : f32 to vector<8x128xf32>
    %337 = arith.addf %336, %335 : vector<8x128xf32>
    %338 = tpu.reciprocal %337 {approx = true} : vector<8x128xf32> -> vector<8x128xf32>
    %339 = arith.mulf %329, %309 : vector<8x128xf32>
    %340 = arith.mulf %322, %331 : vector<8x128xf32>
    %341 = arith.addf %339, %340 : vector<8x128xf32>
    %342 = math.tanh %341 : vector<8x128xf32>
    %343 = arith.mulf %338, %342 : vector<8x128xf32>
    %c8_146 = arith.constant 8 : index
    %c0_147 = arith.constant 0 : index
    %344 = vector.load %arg8[%c8_146, %c0_147] : memref<64x512xf32, #tpu.memory_space<vmem>>, vector<8x512xf32>
    %345 = arith.truncf %343 : vector<8x128xf32> to vector<8x128xbf16>
    %c1_148 = arith.constant 1 : index
    %c0_149 = arith.constant 0 : index
    %c0_150 = arith.constant 0 : index
    %346 = vector.load %arg3[%c1_148, %c0_149, %c0_150] : memref<2x128x512xbf16, #tpu.memory_space<vmem>>, vector<1x128x512xbf16>
    %347 = vector.shape_cast %346 : vector<1x128x512xbf16> to vector<128x512xbf16>
    %cst_151 = arith.constant dense<0.000000e+00> : vector<8x512xf32>
    %348 = tpu.matmul %345, %347, %cst_151 {dimension_numbers = #tpu.dot_dimension_numbers<[1], [0], [0], [1], [0, 0, 1, 1], [], []>} : vector<8x128xbf16>, vector<128x512xbf16>, vector<8x512xf32> -> vector<8x512xf32>
    %349 = arith.addf %344, %348 : vector<8x512xf32>
    %350 = vector.extract_strided_slice %349 {offsets = [0, 0], sizes = [8, 128], strides = [1, 1]} : vector<8x512xf32> to vector<8x128xf32>
    %cst_152 = arith.constant 0.000000e+00 : f32
    %351 = vector.broadcast %cst_152 : f32 to vector<8x128xf32>
    %352 = arith.subf %351, %350 : vector<8x128xf32>
    %353 = math.exp %352 : vector<8x128xf32>
    %cst_153 = arith.constant 1.000000e+00 : f32
    %354 = vector.broadcast %cst_153 : f32 to vector<8x128xf32>
    %355 = arith.addf %354, %353 : vector<8x128xf32>
    %356 = tpu.reciprocal %355 {approx = true} : vector<8x128xf32> -> vector<8x128xf32>
    %357 = vector.extract_strided_slice %349 {offsets = [0, 128], sizes = [8, 128], strides = [1, 1]} : vector<8x512xf32> to vector<8x128xf32>
    %cst_154 = arith.constant 0.000000e+00 : f32
    %358 = vector.broadcast %cst_154 : f32 to vector<8x128xf32>
    %359 = arith.subf %358, %357 : vector<8x128xf32>
    %360 = math.exp %359 : vector<8x128xf32>
    %cst_155 = arith.constant 1.000000e+00 : f32
    %361 = vector.broadcast %cst_155 : f32 to vector<8x128xf32>
    %362 = arith.addf %361, %360 : vector<8x128xf32>
    %363 = tpu.reciprocal %362 {approx = true} : vector<8x128xf32> -> vector<8x128xf32>
    %364 = vector.extract_strided_slice %349 {offsets = [0, 256], sizes = [8, 128], strides = [1, 1]} : vector<8x512xf32> to vector<8x128xf32>
    %365 = math.tanh %364 : vector<8x128xf32>
    %366 = vector.extract_strided_slice %349 {offsets = [0, 384], sizes = [8, 128], strides = [1, 1]} : vector<8x512xf32> to vector<8x128xf32>
    %cst_156 = arith.constant 0.000000e+00 : f32
    %367 = vector.broadcast %cst_156 : f32 to vector<8x128xf32>
    %368 = arith.subf %367, %366 : vector<8x128xf32>
    %369 = math.exp %368 : vector<8x128xf32>
    %cst_157 = arith.constant 1.000000e+00 : f32
    %370 = vector.broadcast %cst_157 : f32 to vector<8x128xf32>
    %371 = arith.addf %370, %369 : vector<8x128xf32>
    %372 = tpu.reciprocal %371 {approx = true} : vector<8x128xf32> -> vector<8x128xf32>
    %373 = arith.mulf %363, %341 : vector<8x128xf32>
    %374 = arith.mulf %356, %365 : vector<8x128xf32>
    %375 = arith.addf %373, %374 : vector<8x128xf32>
    %376 = math.tanh %375 : vector<8x128xf32>
    %377 = arith.mulf %372, %376 : vector<8x128xf32>
    %c16_158 = arith.constant 16 : index
    %c0_159 = arith.constant 0 : index
    %378 = vector.load %arg8[%c16_158, %c0_159] : memref<64x512xf32, #tpu.memory_space<vmem>>, vector<8x512xf32>
    %379 = arith.truncf %377 : vector<8x128xf32> to vector<8x128xbf16>
    %c1_160 = arith.constant 1 : index
    %c0_161 = arith.constant 0 : index
    %c0_162 = arith.constant 0 : index
    %380 = vector.load %arg3[%c1_160, %c0_161, %c0_162] : memref<2x128x512xbf16, #tpu.memory_space<vmem>>, vector<1x128x512xbf16>
    %381 = vector.shape_cast %380 : vector<1x128x512xbf16> to vector<128x512xbf16>
    %cst_163 = arith.constant dense<0.000000e+00> : vector<8x512xf32>
    %382 = tpu.matmul %379, %381, %cst_163 {dimension_numbers = #tpu.dot_dimension_numbers<[1], [0], [0], [1], [0, 0, 1, 1], [], []>} : vector<8x128xbf16>, vector<128x512xbf16>, vector<8x512xf32> -> vector<8x512xf32>
    %383 = arith.addf %378, %382 : vector<8x512xf32>
    %384 = vector.extract_strided_slice %383 {offsets = [0, 0], sizes = [8, 128], strides = [1, 1]} : vector<8x512xf32> to vector<8x128xf32>
    %cst_164 = arith.constant 0.000000e+00 : f32
    %385 = vector.broadcast %cst_164 : f32 to vector<8x128xf32>
    %386 = arith.subf %385, %384 : vector<8x128xf32>
    %387 = math.exp %386 : vector<8x128xf32>
    %cst_165 = arith.constant 1.000000e+00 : f32
    %388 = vector.broadcast %cst_165 : f32 to vector<8x128xf32>
    %389 = arith.addf %388, %387 : vector<8x128xf32>
    %390 = tpu.reciprocal %389 {approx = true} : vector<8x128xf32> -> vector<8x128xf32>
    %391 = vector.extract_strided_slice %383 {offsets = [0, 128], sizes = [8, 128], strides = [1, 1]} : vector<8x512xf32> to vector<8x128xf32>
    %cst_166 = arith.constant 0.000000e+00 : f32
    %392 = vector.broadcast %cst_166 : f32 to vector<8x128xf32>
    %393 = arith.subf %392, %391 : vector<8x128xf32>
    %394 = math.exp %393 : vector<8x128xf32>
    %cst_167 = arith.constant 1.000000e+00 : f32
    %395 = vector.broadcast %cst_167 : f32 to vector<8x128xf32>
    %396 = arith.addf %395, %394 : vector<8x128xf32>
    %397 = tpu.reciprocal %396 {approx = true} : vector<8x128xf32> -> vector<8x128xf32>
    %398 = vector.extract_strided_slice %383 {offsets = [0, 256], sizes = [8, 128], strides = [1, 1]} : vector<8x512xf32> to vector<8x128xf32>
    %399 = math.tanh %398 : vector<8x128xf32>
    %400 = vector.extract_strided_slice %383 {offsets = [0, 384], sizes = [8, 128], strides = [1, 1]} : vector<8x512xf32> to vector<8x128xf32>
    %cst_168 = arith.constant 0.000000e+00 : f32
    %401 = vector.broadcast %cst_168 : f32 to vector<8x128xf32>
    %402 = arith.subf %401, %400 : vector<8x128xf32>
    %403 = math.exp %402 : vector<8x128xf32>
    %cst_169 = arith.constant 1.000000e+00 : f32
    %404 = vector.broadcast %cst_169 : f32 to vector<8x128xf32>
    %405 = arith.addf %404, %403 : vector<8x128xf32>
    %406 = tpu.reciprocal %405 {approx = true} : vector<8x128xf32> -> vector<8x128xf32>
    %407 = arith.mulf %397, %375 : vector<8x128xf32>
    %408 = arith.mulf %390, %399 : vector<8x128xf32>
    %409 = arith.addf %407, %408 : vector<8x128xf32>
    %410 = math.tanh %409 : vector<8x128xf32>
    %411 = arith.mulf %406, %410 : vector<8x128xf32>
    %c24_170 = arith.constant 24 : index
    %c0_171 = arith.constant 0 : index
    %412 = vector.load %arg8[%c24_170, %c0_171] : memref<64x512xf32, #tpu.memory_space<vmem>>, vector<8x512xf32>
    %413 = arith.truncf %411 : vector<8x128xf32> to vector<8x128xbf16>
    %c1_172 = arith.constant 1 : index
    %c0_173 = arith.constant 0 : index
    %c0_174 = arith.constant 0 : index
    %414 = vector.load %arg3[%c1_172, %c0_173, %c0_174] : memref<2x128x512xbf16, #tpu.memory_space<vmem>>, vector<1x128x512xbf16>
    %415 = vector.shape_cast %414 : vector<1x128x512xbf16> to vector<128x512xbf16>
    %cst_175 = arith.constant dense<0.000000e+00> : vector<8x512xf32>
    %416 = tpu.matmul %413, %415, %cst_175 {dimension_numbers = #tpu.dot_dimension_numbers<[1], [0], [0], [1], [0, 0, 1, 1], [], []>} : vector<8x128xbf16>, vector<128x512xbf16>, vector<8x512xf32> -> vector<8x512xf32>
    %417 = arith.addf %412, %416 : vector<8x512xf32>
    %418 = vector.extract_strided_slice %417 {offsets = [0, 0], sizes = [8, 128], strides = [1, 1]} : vector<8x512xf32> to vector<8x128xf32>
    %cst_176 = arith.constant 0.000000e+00 : f32
    %419 = vector.broadcast %cst_176 : f32 to vector<8x128xf32>
    %420 = arith.subf %419, %418 : vector<8x128xf32>
    %421 = math.exp %420 : vector<8x128xf32>
    %cst_177 = arith.constant 1.000000e+00 : f32
    %422 = vector.broadcast %cst_177 : f32 to vector<8x128xf32>
    %423 = arith.addf %422, %421 : vector<8x128xf32>
    %424 = tpu.reciprocal %423 {approx = true} : vector<8x128xf32> -> vector<8x128xf32>
    %425 = vector.extract_strided_slice %417 {offsets = [0, 128], sizes = [8, 128], strides = [1, 1]} : vector<8x512xf32> to vector<8x128xf32>
    %cst_178 = arith.constant 0.000000e+00 : f32
    %426 = vector.broadcast %cst_178 : f32 to vector<8x128xf32>
    %427 = arith.subf %426, %425 : vector<8x128xf32>
    %428 = math.exp %427 : vector<8x128xf32>
    %cst_179 = arith.constant 1.000000e+00 : f32
    %429 = vector.broadcast %cst_179 : f32 to vector<8x128xf32>
    %430 = arith.addf %429, %428 : vector<8x128xf32>
    %431 = tpu.reciprocal %430 {approx = true} : vector<8x128xf32> -> vector<8x128xf32>
    %432 = vector.extract_strided_slice %417 {offsets = [0, 256], sizes = [8, 128], strides = [1, 1]} : vector<8x512xf32> to vector<8x128xf32>
    %433 = math.tanh %432 : vector<8x128xf32>
    %434 = vector.extract_strided_slice %417 {offsets = [0, 384], sizes = [8, 128], strides = [1, 1]} : vector<8x512xf32> to vector<8x128xf32>
    %cst_180 = arith.constant 0.000000e+00 : f32
    %435 = vector.broadcast %cst_180 : f32 to vector<8x128xf32>
    %436 = arith.subf %435, %434 : vector<8x128xf32>
    %437 = math.exp %436 : vector<8x128xf32>
    %cst_181 = arith.constant 1.000000e+00 : f32
    %438 = vector.broadcast %cst_181 : f32 to vector<8x128xf32>
    %439 = arith.addf %438, %437 : vector<8x128xf32>
    %440 = tpu.reciprocal %439 {approx = true} : vector<8x128xf32> -> vector<8x128xf32>
    %441 = arith.mulf %431, %409 : vector<8x128xf32>
    %442 = arith.mulf %424, %433 : vector<8x128xf32>
    %443 = arith.addf %441, %442 : vector<8x128xf32>
    %444 = math.tanh %443 : vector<8x128xf32>
    %445 = arith.mulf %440, %444 : vector<8x128xf32>
    %c32_182 = arith.constant 32 : index
    %c0_183 = arith.constant 0 : index
    %446 = vector.load %arg8[%c32_182, %c0_183] : memref<64x512xf32, #tpu.memory_space<vmem>>, vector<8x512xf32>
    %447 = arith.truncf %445 : vector<8x128xf32> to vector<8x128xbf16>
    %c1_184 = arith.constant 1 : index
    %c0_185 = arith.constant 0 : index
    %c0_186 = arith.constant 0 : index
    %448 = vector.load %arg3[%c1_184, %c0_185, %c0_186] : memref<2x128x512xbf16, #tpu.memory_space<vmem>>, vector<1x128x512xbf16>
    %449 = vector.shape_cast %448 : vector<1x128x512xbf16> to vector<128x512xbf16>
    %cst_187 = arith.constant dense<0.000000e+00> : vector<8x512xf32>
    %450 = tpu.matmul %447, %449, %cst_187 {dimension_numbers = #tpu.dot_dimension_numbers<[1], [0], [0], [1], [0, 0, 1, 1], [], []>} : vector<8x128xbf16>, vector<128x512xbf16>, vector<8x512xf32> -> vector<8x512xf32>
    %451 = arith.addf %446, %450 : vector<8x512xf32>
    %452 = vector.extract_strided_slice %451 {offsets = [0, 0], sizes = [8, 128], strides = [1, 1]} : vector<8x512xf32> to vector<8x128xf32>
    %cst_188 = arith.constant 0.000000e+00 : f32
    %453 = vector.broadcast %cst_188 : f32 to vector<8x128xf32>
    %454 = arith.subf %453, %452 : vector<8x128xf32>
    %455 = math.exp %454 : vector<8x128xf32>
    %cst_189 = arith.constant 1.000000e+00 : f32
    %456 = vector.broadcast %cst_189 : f32 to vector<8x128xf32>
    %457 = arith.addf %456, %455 : vector<8x128xf32>
    %458 = tpu.reciprocal %457 {approx = true} : vector<8x128xf32> -> vector<8x128xf32>
    %459 = vector.extract_strided_slice %451 {offsets = [0, 128], sizes = [8, 128], strides = [1, 1]} : vector<8x512xf32> to vector<8x128xf32>
    %cst_190 = arith.constant 0.000000e+00 : f32
    %460 = vector.broadcast %cst_190 : f32 to vector<8x128xf32>
    %461 = arith.subf %460, %459 : vector<8x128xf32>
    %462 = math.exp %461 : vector<8x128xf32>
    %cst_191 = arith.constant 1.000000e+00 : f32
    %463 = vector.broadcast %cst_191 : f32 to vector<8x128xf32>
    %464 = arith.addf %463, %462 : vector<8x128xf32>
    %465 = tpu.reciprocal %464 {approx = true} : vector<8x128xf32> -> vector<8x128xf32>
    %466 = vector.extract_strided_slice %451 {offsets = [0, 256], sizes = [8, 128], strides = [1, 1]} : vector<8x512xf32> to vector<8x128xf32>
    %467 = math.tanh %466 : vector<8x128xf32>
    %468 = vector.extract_strided_slice %451 {offsets = [0, 384], sizes = [8, 128], strides = [1, 1]} : vector<8x512xf32> to vector<8x128xf32>
    %cst_192 = arith.constant 0.000000e+00 : f32
    %469 = vector.broadcast %cst_192 : f32 to vector<8x128xf32>
    %470 = arith.subf %469, %468 : vector<8x128xf32>
    %471 = math.exp %470 : vector<8x128xf32>
    %cst_193 = arith.constant 1.000000e+00 : f32
    %472 = vector.broadcast %cst_193 : f32 to vector<8x128xf32>
    %473 = arith.addf %472, %471 : vector<8x128xf32>
    %474 = tpu.reciprocal %473 {approx = true} : vector<8x128xf32> -> vector<8x128xf32>
    %475 = arith.mulf %465, %443 : vector<8x128xf32>
    %476 = arith.mulf %458, %467 : vector<8x128xf32>
    %477 = arith.addf %475, %476 : vector<8x128xf32>
    %478 = math.tanh %477 : vector<8x128xf32>
    %479 = arith.mulf %474, %478 : vector<8x128xf32>
    %c40_194 = arith.constant 40 : index
    %c0_195 = arith.constant 0 : index
    %480 = vector.load %arg8[%c40_194, %c0_195] : memref<64x512xf32, #tpu.memory_space<vmem>>, vector<8x512xf32>
    %481 = arith.truncf %479 : vector<8x128xf32> to vector<8x128xbf16>
    %c1_196 = arith.constant 1 : index
    %c0_197 = arith.constant 0 : index
    %c0_198 = arith.constant 0 : index
    %482 = vector.load %arg3[%c1_196, %c0_197, %c0_198] : memref<2x128x512xbf16, #tpu.memory_space<vmem>>, vector<1x128x512xbf16>
    %483 = vector.shape_cast %482 : vector<1x128x512xbf16> to vector<128x512xbf16>
    %cst_199 = arith.constant dense<0.000000e+00> : vector<8x512xf32>
    %484 = tpu.matmul %481, %483, %cst_199 {dimension_numbers = #tpu.dot_dimension_numbers<[1], [0], [0], [1], [0, 0, 1, 1], [], []>} : vector<8x128xbf16>, vector<128x512xbf16>, vector<8x512xf32> -> vector<8x512xf32>
    %485 = arith.addf %480, %484 : vector<8x512xf32>
    %486 = vector.extract_strided_slice %485 {offsets = [0, 0], sizes = [8, 128], strides = [1, 1]} : vector<8x512xf32> to vector<8x128xf32>
    %cst_200 = arith.constant 0.000000e+00 : f32
    %487 = vector.broadcast %cst_200 : f32 to vector<8x128xf32>
    %488 = arith.subf %487, %486 : vector<8x128xf32>
    %489 = math.exp %488 : vector<8x128xf32>
    %cst_201 = arith.constant 1.000000e+00 : f32
    %490 = vector.broadcast %cst_201 : f32 to vector<8x128xf32>
    %491 = arith.addf %490, %489 : vector<8x128xf32>
    %492 = tpu.reciprocal %491 {approx = true} : vector<8x128xf32> -> vector<8x128xf32>
    %493 = vector.extract_strided_slice %485 {offsets = [0, 128], sizes = [8, 128], strides = [1, 1]} : vector<8x512xf32> to vector<8x128xf32>
    %cst_202 = arith.constant 0.000000e+00 : f32
    %494 = vector.broadcast %cst_202 : f32 to vector<8x128xf32>
    %495 = arith.subf %494, %493 : vector<8x128xf32>
    %496 = math.exp %495 : vector<8x128xf32>
    %cst_203 = arith.constant 1.000000e+00 : f32
    %497 = vector.broadcast %cst_203 : f32 to vector<8x128xf32>
    %498 = arith.addf %497, %496 : vector<8x128xf32>
    %499 = tpu.reciprocal %498 {approx = true} : vector<8x128xf32> -> vector<8x128xf32>
    %500 = vector.extract_strided_slice %485 {offsets = [0, 256], sizes = [8, 128], strides = [1, 1]} : vector<8x512xf32> to vector<8x128xf32>
    %501 = math.tanh %500 : vector<8x128xf32>
    %502 = vector.extract_strided_slice %485 {offsets = [0, 384], sizes = [8, 128], strides = [1, 1]} : vector<8x512xf32> to vector<8x128xf32>
    %cst_204 = arith.constant 0.000000e+00 : f32
    %503 = vector.broadcast %cst_204 : f32 to vector<8x128xf32>
    %504 = arith.subf %503, %502 : vector<8x128xf32>
    %505 = math.exp %504 : vector<8x128xf32>
    %cst_205 = arith.constant 1.000000e+00 : f32
    %506 = vector.broadcast %cst_205 : f32 to vector<8x128xf32>
    %507 = arith.addf %506, %505 : vector<8x128xf32>
    %508 = tpu.reciprocal %507 {approx = true} : vector<8x128xf32> -> vector<8x128xf32>
    %509 = arith.mulf %499, %477 : vector<8x128xf32>
    %510 = arith.mulf %492, %501 : vector<8x128xf32>
    %511 = arith.addf %509, %510 : vector<8x128xf32>
    %512 = math.tanh %511 : vector<8x128xf32>
    %513 = arith.mulf %508, %512 : vector<8x128xf32>
    %c48_206 = arith.constant 48 : index
    %c0_207 = arith.constant 0 : index
    %514 = vector.load %arg8[%c48_206, %c0_207] : memref<64x512xf32, #tpu.memory_space<vmem>>, vector<8x512xf32>
    %515 = arith.truncf %513 : vector<8x128xf32> to vector<8x128xbf16>
    %c1_208 = arith.constant 1 : index
    %c0_209 = arith.constant 0 : index
    %c0_210 = arith.constant 0 : index
    %516 = vector.load %arg3[%c1_208, %c0_209, %c0_210] : memref<2x128x512xbf16, #tpu.memory_space<vmem>>, vector<1x128x512xbf16>
    %517 = vector.shape_cast %516 : vector<1x128x512xbf16> to vector<128x512xbf16>
    %cst_211 = arith.constant dense<0.000000e+00> : vector<8x512xf32>
    %518 = tpu.matmul %515, %517, %cst_211 {dimension_numbers = #tpu.dot_dimension_numbers<[1], [0], [0], [1], [0, 0, 1, 1], [], []>} : vector<8x128xbf16>, vector<128x512xbf16>, vector<8x512xf32> -> vector<8x512xf32>
    %519 = arith.addf %514, %518 : vector<8x512xf32>
    %520 = vector.extract_strided_slice %519 {offsets = [0, 0], sizes = [8, 128], strides = [1, 1]} : vector<8x512xf32> to vector<8x128xf32>
    %cst_212 = arith.constant 0.000000e+00 : f32
    %521 = vector.broadcast %cst_212 : f32 to vector<8x128xf32>
    %522 = arith.subf %521, %520 : vector<8x128xf32>
    %523 = math.exp %522 : vector<8x128xf32>
    %cst_213 = arith.constant 1.000000e+00 : f32
    %524 = vector.broadcast %cst_213 : f32 to vector<8x128xf32>
    %525 = arith.addf %524, %523 : vector<8x128xf32>
    %526 = tpu.reciprocal %525 {approx = true} : vector<8x128xf32> -> vector<8x128xf32>
    %527 = vector.extract_strided_slice %519 {offsets = [0, 128], sizes = [8, 128], strides = [1, 1]} : vector<8x512xf32> to vector<8x128xf32>
    %cst_214 = arith.constant 0.000000e+00 : f32
    %528 = vector.broadcast %cst_214 : f32 to vector<8x128xf32>
    %529 = arith.subf %528, %527 : vector<8x128xf32>
    %530 = math.exp %529 : vector<8x128xf32>
    %cst_215 = arith.constant 1.000000e+00 : f32
    %531 = vector.broadcast %cst_215 : f32 to vector<8x128xf32>
    %532 = arith.addf %531, %530 : vector<8x128xf32>
    %533 = tpu.reciprocal %532 {approx = true} : vector<8x128xf32> -> vector<8x128xf32>
    %534 = vector.extract_strided_slice %519 {offsets = [0, 256], sizes = [8, 128], strides = [1, 1]} : vector<8x512xf32> to vector<8x128xf32>
    %535 = math.tanh %534 : vector<8x128xf32>
    %536 = vector.extract_strided_slice %519 {offsets = [0, 384], sizes = [8, 128], strides = [1, 1]} : vector<8x512xf32> to vector<8x128xf32>
    %cst_216 = arith.constant 0.000000e+00 : f32
    %537 = vector.broadcast %cst_216 : f32 to vector<8x128xf32>
    %538 = arith.subf %537, %536 : vector<8x128xf32>
    %539 = math.exp %538 : vector<8x128xf32>
    %cst_217 = arith.constant 1.000000e+00 : f32
    %540 = vector.broadcast %cst_217 : f32 to vector<8x128xf32>
    %541 = arith.addf %540, %539 : vector<8x128xf32>
    %542 = tpu.reciprocal %541 {approx = true} : vector<8x128xf32> -> vector<8x128xf32>
    %543 = arith.mulf %533, %511 : vector<8x128xf32>
    %544 = arith.mulf %526, %535 : vector<8x128xf32>
    %545 = arith.addf %543, %544 : vector<8x128xf32>
    %546 = math.tanh %545 : vector<8x128xf32>
    %547 = arith.mulf %542, %546 : vector<8x128xf32>
    %c56_218 = arith.constant 56 : index
    %c0_219 = arith.constant 0 : index
    %548 = vector.load %arg8[%c56_218, %c0_219] : memref<64x512xf32, #tpu.memory_space<vmem>>, vector<8x512xf32>
    %549 = arith.truncf %547 : vector<8x128xf32> to vector<8x128xbf16>
    %c1_220 = arith.constant 1 : index
    %c0_221 = arith.constant 0 : index
    %c0_222 = arith.constant 0 : index
    %550 = vector.load %arg3[%c1_220, %c0_221, %c0_222] : memref<2x128x512xbf16, #tpu.memory_space<vmem>>, vector<1x128x512xbf16>
    %551 = vector.shape_cast %550 : vector<1x128x512xbf16> to vector<128x512xbf16>
    %cst_223 = arith.constant dense<0.000000e+00> : vector<8x512xf32>
    %552 = tpu.matmul %549, %551, %cst_223 {dimension_numbers = #tpu.dot_dimension_numbers<[1], [0], [0], [1], [0, 0, 1, 1], [], []>} : vector<8x128xbf16>, vector<128x512xbf16>, vector<8x512xf32> -> vector<8x512xf32>
    %553 = arith.addf %548, %552 : vector<8x512xf32>
    %554 = vector.extract_strided_slice %553 {offsets = [0, 0], sizes = [8, 128], strides = [1, 1]} : vector<8x512xf32> to vector<8x128xf32>
    %cst_224 = arith.constant 0.000000e+00 : f32
    %555 = vector.broadcast %cst_224 : f32 to vector<8x128xf32>
    %556 = arith.subf %555, %554 : vector<8x128xf32>
    %557 = math.exp %556 : vector<8x128xf32>
    %cst_225 = arith.constant 1.000000e+00 : f32
    %558 = vector.broadcast %cst_225 : f32 to vector<8x128xf32>
    %559 = arith.addf %558, %557 : vector<8x128xf32>
    %560 = tpu.reciprocal %559 {approx = true} : vector<8x128xf32> -> vector<8x128xf32>
    %561 = vector.extract_strided_slice %553 {offsets = [0, 128], sizes = [8, 128], strides = [1, 1]} : vector<8x512xf32> to vector<8x128xf32>
    %cst_226 = arith.constant 0.000000e+00 : f32
    %562 = vector.broadcast %cst_226 : f32 to vector<8x128xf32>
    %563 = arith.subf %562, %561 : vector<8x128xf32>
    %564 = math.exp %563 : vector<8x128xf32>
    %cst_227 = arith.constant 1.000000e+00 : f32
    %565 = vector.broadcast %cst_227 : f32 to vector<8x128xf32>
    %566 = arith.addf %565, %564 : vector<8x128xf32>
    %567 = tpu.reciprocal %566 {approx = true} : vector<8x128xf32> -> vector<8x128xf32>
    %568 = vector.extract_strided_slice %553 {offsets = [0, 256], sizes = [8, 128], strides = [1, 1]} : vector<8x512xf32> to vector<8x128xf32>
    %569 = math.tanh %568 : vector<8x128xf32>
    %570 = vector.extract_strided_slice %553 {offsets = [0, 384], sizes = [8, 128], strides = [1, 1]} : vector<8x512xf32> to vector<8x128xf32>
    %cst_228 = arith.constant 0.000000e+00 : f32
    %571 = vector.broadcast %cst_228 : f32 to vector<8x128xf32>
    %572 = arith.subf %571, %570 : vector<8x128xf32>
    %573 = math.exp %572 : vector<8x128xf32>
    %cst_229 = arith.constant 1.000000e+00 : f32
    %574 = vector.broadcast %cst_229 : f32 to vector<8x128xf32>
    %575 = arith.addf %574, %573 : vector<8x128xf32>
    %576 = tpu.reciprocal %575 {approx = true} : vector<8x128xf32> -> vector<8x128xf32>
    %577 = arith.mulf %567, %545 : vector<8x128xf32>
    %578 = arith.mulf %560, %569 : vector<8x128xf32>
    %579 = arith.addf %577, %578 : vector<8x128xf32>
    %580 = math.tanh %579 : vector<8x128xf32>
    %581 = arith.mulf %576, %580 : vector<8x128xf32>
    %c1_230 = arith.constant 1 : index
    %c0_231 = arith.constant 0 : index
    %c0_232 = arith.constant 0 : index
    %582 = vector.load %arg5[%c1_230, %c0_231, %c0_232] : memref<2x8x128xf32, #tpu.memory_space<vmem>>, vector<1x8x128xf32>
    %583 = vector.shape_cast %582 : vector<1x8x128xf32> to vector<8x128xf32>
    %584 = vector.shape_cast %581 : vector<8x128xf32> to vector<1x8x128xf32>
    tpu.vector_store %arg5[%c1_230, %c0_231, %c0_232], %584 {strides = array<i32>} : memref<2x8x128xf32, #tpu.memory_space<vmem>>, vector<1x8x128xf32>,
    %c1_233 = arith.constant 1 : index
    %c0_234 = arith.constant 0 : index
    %c0_235 = arith.constant 0 : index
    %585 = vector.load %arg6[%c1_233, %c0_234, %c0_235] : memref<2x8x128xf32, #tpu.memory_space<vmem>>, vector<1x8x128xf32>
    %586 = vector.shape_cast %585 : vector<1x8x128xf32> to vector<8x128xf32>
    %587 = vector.shape_cast %579 : vector<8x128xf32> to vector<1x8x128xf32>
    tpu.vector_store %arg6[%c1_233, %c0_234, %c0_235], %587 {strides = array<i32>} : memref<2x8x128xf32, #tpu.memory_space<vmem>>, vector<1x8x128xf32>,
    return
  }
  func.func @transform_0(%arg0: i32) -> (i32, i32) {
    %c0_i32 = arith.constant 0 : i32
    %c0_i32_0 = arith.constant 0 : i32
    %c0_i32_1 = arith.constant 0 : i32
    return %c0_i32, %c0_i32_0 : i32, i32
  }
  func.func @transform_1(%arg0: i32) -> (i32, i32, i32) {
    %c0_i32 = arith.constant 0 : i32
    %c0_i32_0 = arith.constant 0 : i32
    %c0_i32_1 = arith.constant 0 : i32
    %c0_i32_2 = arith.constant 0 : i32
    return %c0_i32, %c0_i32_0, %c0_i32_1 : i32, i32, i32
  }
  func.func @transform_2(%arg0: i32) -> (i32, i32, i32) {
    %c0_i32 = arith.constant 0 : i32
    %c0_i32_0 = arith.constant 0 : i32
    %c0_i32_1 = arith.constant 0 : i32
    %c0_i32_2 = arith.constant 0 : i32
    return %c0_i32, %c0_i32_0, %c0_i32_1 : i32, i32, i32
  }
  func.func @transform_3(%arg0: i32) -> (i32, i32, i32) {
    %c0_i32 = arith.constant 0 : i32
    %c0_i32_0 = arith.constant 0 : i32
    %c0_i32_1 = arith.constant 0 : i32
    %c0_i32_2 = arith.constant 0 : i32
    return %c0_i32, %c0_i32_0, %c0_i32_1 : i32, i32, i32
  }
  func.func @transform_4(%arg0: i32) -> (i32, i32, i32) {
    %c0_i32 = arith.constant 0 : i32
    %c0_i32_0 = arith.constant 0 : i32
    %c0_i32_1 = arith.constant 0 : i32
    %c0_i32_2 = arith.constant 0 : i32
    return %c0_i32, %c0_i32_0, %c0_i32_1 : i32, i32, i32
  }
  func.func @transform_5(%arg0: i32) -> (i32, i32, i32) {
    %c0_i32 = arith.constant 0 : i32
    %c0_i32_0 = arith.constant 0 : i32
    %c0_i32_1 = arith.constant 0 : i32
    %c0_i32_2 = arith.constant 0 : i32
    return %c0_i32, %c0_i32_0, %c0_i32_1 : i32, i32, i32
  }
}

</mosaic_0001>

<llo_original>
// kernel: tpu_custom_call.1
$region0: #{tpu_custom_call.1}
  #allocation0 [shape = 'u32[]', space=smem, size = 0x4, offset = 0x4, fixed_abs, tag = 'smem constant byte address 0x4 - core index']
  #allocation1 [shape = 'u32[144,128]{1,0:T(1,128)}', space=vmem, size = 0x12000, scoped, tag = 'internal scratch']
  #allocation2 [shape = 'f32[64,128]{1,0:T(8,128)}', space=vmem, size = 0x8000, scoped, tag = 'scratch operand']
  #allocation3 [shape = 'f32[64,512]{1,0:T(8,128)}', space=vmem, size = 0x20000, scoped, tag = 'scratch operand']
  %s0 = inlined_call_operand.hbm [shape: f32[64,128], index: 0, kind: input, shape index: {}]
  %s1 = inlined_call_operand.hbm [shape: bf16[2,128,512], index: 1, kind: input, shape index: {}]
  %s2 = inlined_call_operand.hbm [shape: bf16[2,128,512], index: 2, kind: input, shape index: {}]
  %s3 = inlined_call_operand.vmem [shape: f32[2,1,512], index: 3, kind: input, shape index: {}]
  %s4 = inlined_call_operand.hbm [shape: f32[2,8,128], index: 4, kind: output, shape index: {0}]
  %s5 = inlined_call_operand.hbm [shape: f32[2,8,128], index: 5, kind: output, shape index: {1}]
  %6 = xla_tuple %s4, %s5
  %s7 = sld [smem:[#allocation0]]
  $region46: #{tpu_custom_call.1} parent=0
    _
  %s9 = ssub.s32 1, %s7
  %s10 = scalar_select 0, %s9, %s7
  $region1: #{tpu_custom_call.1} parent=0
    #allocation4 [shape = 'u8[32768]{0}', space=vmem, size = 0x8000, scoped, tag = 'input window, operand 0, single buffered']
    #allocation5 [shape = 's32[1]{0}', space=sflag, size = 0x4, scoped, tag = 'scoped memory for tpu_custom_call.1']
    #allocation6 [shape = 's32[1]{0}', space=sflag, size = 0x4, scoped, tag = 'scoped memory for tpu_custom_call.1']
    #allocation7 [shape = 'u8[262144]{0}', space=vmem, size = 0x40000, scoped, tag = 'input window, operand 1, single buffered']
    #allocation8 [shape = 's32[1]{0}', space=sflag, size = 0x4, scoped, tag = 'scoped memory for tpu_custom_call.1']
    #allocation9 [shape = 'u8[262144]{0}', space=vmem, size = 0x40000, scoped, tag = 'input window, operand 2, single buffered']
    #allocation10 [shape = 'u8[8192]{0}', space=vmem, size = 0x2000, scoped, tag = 'output window, operand 0, single buffered']
    #allocation11 [shape = 'u8[8192]{0}', space=vmem, size = 0x2000, scoped, tag = 'output window, operand 1, single buffered']
    #allocation12 [shape = 's32[1]{0}', space=sflag, size = 0x4, scoped, tag = 'scoped memory for tpu_custom_call.1']
    %11 = vsyncpa [#allocation5], 0
    %12 = vsyncpa [#allocation8], 0
    %13 = vsyncpa [#allocation6], 0
    %14 = vsyncpa [#allocation12], 0
    // Predicated region
    $region2: #{tpu_custom_call.1} parent=1 // pred_check
      _
    $region3: #{tpu_custom_call.1} parent=1 // pred_check_branch
      %16 = sbr.rel (0) target = $region5
    $region4: #{tpu_custom_call.1} parent=1 // pred_region
      %s18 = ssub.s32 1024, 1024
      %19 = vsyncadd [#allocation5], %s18
      %s20 = sshll.u32 [#allocation4], 4
      %s21 = int_to_ptr.vmem [resolvable:$true] %s20
      %26 = dma.hbm_to_vmem [thread:$0]  %s0, 1024, %s21, [#allocation5], 128, 128, 8
    $region5: #{tpu_custom_call.1} parent=1 // pred_fallthru
      _
    // Predicated region
    $region6: #{tpu_custom_call.1} parent=1 // pred_check
      _
    $region7: #{tpu_custom_call.1} parent=1 // pred_check_branch
      %28 = sbr.rel (0) target = $region9
    $region8: #{tpu_custom_call.1} parent=1 // pred_region
      %s30 = ssub.s32 8192, 8192
      %31 = vsyncadd [#allocation8], %s30
      %s32 = sshll.u32 [#allocation7], 4
      %s33 = int_to_ptr.vmem [resolvable:$true] %s32
      %38 = dma.hbm_to_vmem [thread:$0]  %s1, 8192, %s33, [#allocation8], 256, 256, 16
    $region9: #{tpu_custom_call.1} parent=1 // pred_fallthru
      _
    // Predicated region
    $region10: #{tpu_custom_call.1} parent=1 // pred_check
      _
    $region11: #{tpu_custom_call.1} parent=1 // pred_check_branch
      %40 = sbr.rel (0) target = $region13
    $region12: #{tpu_custom_call.1} parent=1 // pred_region
      %s42 = ssub.s32 8192, 8192
      %43 = vsyncadd [#allocation8], %s42
      %s44 = sshll.u32 [#allocation9], 4
      %s45 = int_to_ptr.vmem [resolvable:$true] %s44
      %50 = dma.hbm_to_vmem [thread:$0]  %s2, 8192, %s45, [#allocation8], 256, 256, 16
    $region13: #{tpu_custom_call.1} parent=1 // pred_fallthru
      _
    // Predicated region
    $region14: #{tpu_custom_call.1} parent=1 // pred_check
      _
    $region15: #{tpu_custom_call.1} parent=1 // pred_check_branch
      %52 = sbr.rel (0) target = $region17
    $region16: #{tpu_custom_call.1} parent=1 // pred_region
      _
    $region17: #{tpu_custom_call.1} parent=1 // pred_fallthru
      _
    // Predicated region
    $region18: #{tpu_custom_call.1} parent=1 // pred_check
      _
    $region19: #{tpu_custom_call.1} parent=1 // pred_check_branch
      %54 = sbr.rel (0) target = $region21
    $region20: #{tpu_custom_call.1} parent=1 // pred_region
      %55 = dma.done [#allocation5], 1024
    $region21: #{tpu_custom_call.1} parent=1 // pred_fallthru
      _
    // Predicated region
    $region22: #{tpu_custom_call.1} parent=1 // pred_check
      _
    $region23: #{tpu_custom_call.1} parent=1 // pred_check_branch
      %57 = sbr.rel (0) target = $region25
    $region24: #{tpu_custom_call.1} parent=1 // pred_region
      %58 = dma.done [#allocation8], 8192
    $region25: #{tpu_custom_call.1} parent=1 // pred_fallthru
      _
    // Predicated region
    $region26: #{tpu_custom_call.1} parent=1 // pred_check
      _
    $region27: #{tpu_custom_call.1} parent=1 // pred_check_branch
      %60 = sbr.rel (0) target = $region29
    $region28: #{tpu_custom_call.1} parent=1 // pred_region
      %61 = dma.done [#allocation8], 8192
    $region29: #{tpu_custom_call.1} parent=1 // pred_fallthru
      _
    %v63 = vld [vmem:[#allocation4] sm:$0xff]
    %v64 = vld [vmem:[#allocation4 + $0x8] sm:$0xff]
    %v65 = vld [vmem:[#allocation4 + $0x10] sm:$0xff]
    %v66 = vld [vmem:[#allocation4 + $0x18] sm:$0xff]
    %v67 = vld [vmem:[#allocation4 + $0x20] sm:$0xff]
    %v68 = vld [vmem:[#allocation4 + $0x28] sm:$0xff]
    %v69 = vld [vmem:[#allocation4 + $0x30] sm:$0xff]
    %v70 = vld [vmem:[#allocation4 + $0x38] sm:$0xff]
    %v71 = vpack.c.bf16 %v64, %v63
    %v72 = vpack.c.bf16 %v66, %v65
    %v73 = vpack.c.bf16 %v68, %v67
    %v74 = vpack.c.bf16 %v70, %v69
    %v75 = vld [vmem:[#allocation7] sm:$0xff]
    %v76 = vld [vmem:[#allocation7 + $0x8] sm:$0xff]
    %v77 = vld [vmem:[#allocation7 + $0x10] sm:$0xff]
    %v78 = vld [vmem:[#allocation7 + $0x18] sm:$0xff]
    %v79 = vld [vmem:[#allocation7 + $0x20] sm:$0xff]
    %v80 = vld [vmem:[#allocation7 + $0x28] sm:$0xff]
    %v81 = vld [vmem:[#allocation7 + $0x30] sm:$0xff]
    %v82 = vld [vmem:[#allocation7 + $0x38] sm:$0xff]
    %v83 = vld [vmem:[#allocation7 + $0x40] sm:$0xff]
    %v84 = vld [vmem:[#allocation7 + $0x48] sm:$0xff]
    %v85 = vld [vmem:[#allocation7 + $0x50] sm:$0xff]
    %v86 = vld [vmem:[#allocation7 + $0x58] sm:$0xff]
    %v87 = vld [vmem:[#allocation7 + $0x60] sm:$0xff]
    %v88 = vld [vmem:[#allocation7 + $0x68] sm:$0xff]
    %v89 = vld [vmem:[#allocation7 + $0x70] sm:$0xff]
    %v90 = vld [vmem:[#allocation7 + $0x78] sm:$0xff]
    %v91 = vld [vmem:[#allocation7 + $0x80] sm:$0xff]
    %v92 = vld [vmem:[#allocation7 + $0x88] sm:$0xff]
    %v93 = vld [vmem:[#allocation7 + $0x90] sm:$0xff]
    %v94 = vld [vmem:[#allocation7 + $0x98] sm:$0xff]
    %v95 = vld [vmem:[#allocation7 + $0xa0] sm:$0xff]
    %v96 = vld [vmem:[#allocation7 + $0xa8] sm:$0xff]
    %v97 = vld [vmem:[#allocation7 + $0xb0] sm:$0xff]
    %v98 = vld [vmem:[#allocation7 + $0xb8] sm:$0xff]
    %v99 = vld [vmem:[#allocation7 + $0xc0] sm:$0xff]
    %v100 = vld [vmem:[#allocation7 + $0xc8] sm:$0xff]
    %v101 = vld [vmem:[#allocation7 + $0xd0] sm:$0xff]
    %v102 = vld [vmem:[#allocation7 + $0xd8] sm:$0xff]
    %v103 = vld [vmem:[#allocation7 + $0xe0] sm:$0xff]
    %v104 = vld [vmem:[#allocation7 + $0xe8] sm:$0xff]
    %v105 = vld [vmem:[#allocation7 + $0xf0] sm:$0xff]
    %v106 = vld [vmem:[#allocation7 + $0xf8] sm:$0xff]
    %v107 = vld [vmem:[%s3] sm:$0xf]
    %v109 = vlaneseq
    %v110 = vshrl.u32 %v109, 7
    %v111 = vsub.s32 0, %v110
    %v112 = vrot.slane %v107, %v111
    %v113 = vlaneseq
    %v114 = vshrl.u32 %v113, 7
    %v115 = vsub.s32 1, %v114
    %v116 = vrot.slane %v107, %v115
    %v117 = vlaneseq
    %v118 = vshrl.u32 %v117, 7
    %v119 = vsub.s32 2, %v118
    %v120 = vrot.slane %v107, %v119
    %v121 = vlaneseq
    %v122 = vshrl.u32 %v121, 7
    %v123 = vsub.s32 3, %v122
    %v124 = vrot.slane %v107, %v123
    %v161 = vunpack.c.l.b16 %v75
    %v162 = vunpack.c.h.b16 %v75
    %v163 = vunpack.c.l.b16 %v76
    %v164 = vunpack.c.h.b16 %v76
    %v165 = vunpack.c.l.b16 %v77
    %v166 = vunpack.c.h.b16 %v77
    %v167 = vunpack.c.l.b16 %v78
    %v168 = vunpack.c.h.b16 %v78
    %v169 = vunpack.c.l.b16 %v79
    %v170 = vunpack.c.h.b16 %v79
    %v171 = vunpack.c.l.b16 %v80
    %v172 = vunpack.c.h.b16 %v80
    %v173 = vunpack.c.l.b16 %v81
    %v174 = vunpack.c.h.b16 %v81
    %v175 = vunpack.c.l.b16 %v82
    %v176 = vunpack.c.h.b16 %v82
    %v177 = vunpack.c.l.b16 %v83
    %v178 = vunpack.c.h.b16 %v83
    %v179 = vunpack.c.l.b16 %v84
    %v180 = vunpack.c.h.b16 %v84
    %v181 = vunpack.c.l.b16 %v85
    %v182 = vunpack.c.h.b16 %v85
    %v183 = vunpack.c.l.b16 %v86
    %v184 = vunpack.c.h.b16 %v86
    %v185 = vunpack.c.l.b16 %v87
    %v186 = vunpack.c.h.b16 %v87
    %v187 = vunpack.c.l.b16 %v88
    %v188 = vunpack.c.h.b16 %v88
    %v189 = vunpack.c.l.b16 %v89
    %v190 = vunpack.c.h.b16 %v89
    %v191 = vunpack.c.l.b16 %v90
    %v192 = vunpack.c.h.b16 %v90
    %v193 = vunpack.c.l.b16 %v91
    %v194 = vunpack.c.h.b16 %v91
    %v195 = vunpack.c.l.b16 %v92
    %v196 = vunpack.c.h.b16 %v92
    %v197 = vunpack.c.l.b16 %v93
    %v198 = vunpack.c.h.b16 %v93
    %v199 = vunpack.c.l.b16 %v94
    %v200 = vunpack.c.h.b16 %v94
    %v201 = vunpack.c.l.b16 %v95
    %v202 = vunpack.c.h.b16 %v95
    %v203 = vunpack.c.l.b16 %v96
    %v204 = vunpack.c.h.b16 %v96
    %v205 = vunpack.c.l.b16 %v97
    %v206 = vunpack.c.h.b16 %v97
    %v207 = vunpack.c.l.b16 %v98
    %v208 = vunpack.c.h.b16 %v98
    %v209 = vunpack.c.l.b16 %v99
    %v210 = vunpack.c.h.b16 %v99
    %v211 = vunpack.c.l.b16 %v100
    %v212 = vunpack.c.h.b16 %v100
    %v213 = vunpack.c.l.b16 %v101
    %v214 = vunpack.c.h.b16 %v101
    %v215 = vunpack.c.l.b16 %v102
    %v216 = vunpack.c.h.b16 %v102
    %v217 = vunpack.c.l.b16 %v103
    %v218 = vunpack.c.h.b16 %v103
    %v219 = vunpack.c.l.b16 %v104
    %v220 = vunpack.c.h.b16 %v104
    %v221 = vunpack.c.l.b16 %v105
    %v222 = vunpack.c.h.b16 %v105
    %v223 = vunpack.c.l.b16 %v106
    %v224 = vunpack.c.h.b16 %v106
    %v225 = vpack.c.b16 %v165, %v161
    %v226 = vpack.c.b16 %v166, %v162
    %v227 = vpack.c.b16 %v167, %v163
    %v228 = vpack.c.b16 %v168, %v164
    %v229 = vpack.c.b16 %v173, %v169
    %v230 = vpack.c.b16 %v174, %v170
    %v231 = vpack.c.b16 %v175, %v171
    %v232 = vpack.c.b16 %v176, %v172
    %v233 = vpack.c.b16 %v181, %v177
    %v234 = vpack.c.b16 %v182, %v178
    %v235 = vpack.c.b16 %v183, %v179
    %v236 = vpack.c.b16 %v184, %v180
    %v237 = vpack.c.b16 %v189, %v185
    %v238 = vpack.c.b16 %v190, %v186
    %v239 = vpack.c.b16 %v191, %v187
    %v240 = vpack.c.b16 %v192, %v188
    %v241 = vpack.c.b16 %v197, %v193
    %v242 = vpack.c.b16 %v198, %v194
    %v243 = vpack.c.b16 %v199, %v195
    %v244 = vpack.c.b16 %v200, %v196
    %v245 = vpack.c.b16 %v205, %v201
    %v246 = vpack.c.b16 %v206, %v202
    %v247 = vpack.c.b16 %v207, %v203
    %v248 = vpack.c.b16 %v208, %v204
    %v249 = vpack.c.b16 %v213, %v209
    %v250 = vpack.c.b16 %v214, %v210
    %v251 = vpack.c.b16 %v215, %v211
    %v252 = vpack.c.b16 %v216, %v212
    %v253 = vpack.c.b16 %v221, %v217
    %v254 = vpack.c.b16 %v222, %v218
    %v255 = vpack.c.b16 %v223, %v219
    %v256 = vpack.c.b16 %v224, %v220
    %289 = vmatprep.subr.bf16.mxu0 %v226
    %290 = vmatpush1.bf16.msra.mxu0 %v225
    %291 = vmatprep.subr.bf16.mxu0 %v230
    %292 = vmatpush1.bf16.msra.mxu0 %v229
    %293 = vmatprep.subr.bf16.mxu0 %v234
    %294 = vmatpush1.bf16.msra.mxu0 %v233
    %295 = vmatprep.subr.bf16.mxu0 %v238
    %296 = vmatpush1.bf16.msra.mxu0 %v237
    %297 = vmatprep.subr.bf16.mxu0 %v242
    %298 = vmatpush1.bf16.msra.mxu0 %v241
    %299 = vmatprep.subr.bf16.mxu0 %v246
    %300 = vmatpush1.bf16.msra.mxu0 %v245
    %301 = vmatprep.subr.bf16.mxu0 %v250
    %302 = vmatpush1.bf16.msra.mxu0 %v249
    %303 = vmatprep.subr.bf16.mxu0 %v254
    %304 = vmatpush1.bf16.msra.mxu0 %v253
    %305 = vmatprep.subr.bf16.mxu0 0
    %306 = vmatpush1.bf16.msra.mxu0 0
    %307 = vmatprep.subr.bf16.mxu0 0
    %308 = vmatpush1.bf16.msra.mxu0 0
    %309 = vmatprep.subr.bf16.mxu0 0
    %310 = vmatpush1.bf16.msra.mxu0 0
    %311 = vmatprep.subr.bf16.mxu0 0
    %312 = vmatpush1.bf16.msra.mxu0 0
    %313 = vmatprep.subr.bf16.mxu0 0
    %314 = vmatpush1.bf16.msra.mxu0 0
    %315 = vmatprep.subr.bf16.mxu0 0
    %316 = vmatpush1.bf16.msra.mxu0 0
    %317 = vmatprep.subr.bf16.mxu0 0
    %318 = vmatpush1.bf16.msra.mxu0 0
    %319 = vmatprep.subr.bf16.mxu0 0
    %320 = vmatpush1.bf16.msra.mxu0 0
    %321 = vmatprep.mubr.bf16.mxu0 0
    %322 = vmatmul.mubr.bf16.gmra.mrb[0].mxu0 %v71
    %v323 = vpop.f32.mrb[0].mxu0
    %v324 = vadd.f32 %v112, %v323
    %v325 = vpop.f32.mrb[0].mxu0
    %v326 = vadd.f32 %v116, %v325
    %v327 = vpop.f32.mrb[0].mxu0
    %v328 = vadd.f32 %v112, %v327
    %v329 = vpop.f32.mrb[0].mxu0
    %v330 = vadd.f32 %v116, %v329
    %331 = vmatprep.mubr.bf16.mxu0 0
    %332 = vmatmul.mubr.bf16.gmra.mrb[0].mxu0 %v72
    %v333 = vpop.f32.mrb[0].mxu0
    %v334 = vadd.f32 %v112, %v333
    %v335 = vpop.f32.mrb[0].mxu0
    %v336 = vadd.f32 %v116, %v335
    %v337 = vpop.f32.mrb[0].mxu0
    %v338 = vadd.f32 %v112, %v337
    %v339 = vpop.f32.mrb[0].mxu0
    %v340 = vadd.f32 %v116, %v339
    %341 = vmatprep.mubr.bf16.mxu0 0
    %342 = vmatmul.mubr.bf16.gmra.mrb[0].mxu0 %v73
    %v343 = vpop.f32.mrb[0].mxu0
    %v344 = vadd.f32 %v112, %v343
    %v345 = vpop.f32.mrb[0].mxu0
    %v346 = vadd.f32 %v116, %v345
    %v347 = vpop.f32.mrb[0].mxu0
    %v348 = vadd.f32 %v112, %v347
    %v349 = vpop.f32.mrb[0].mxu0
    %v350 = vadd.f32 %v116, %v349
    %351 = vmatprep.mubr.bf16.mxu0 0
    %352 = vmatmul.mubr.bf16.gmra.mrb[0].mxu0 %v74
    %v353 = vpop.f32.mrb[0].mxu0
    %v354 = vadd.f32 %v112, %v353
    %v355 = vpop.f32.mrb[0].mxu0
    %v356 = vadd.f32 %v116, %v355
    %v357 = vpop.f32.mrb[0].mxu0
    %v358 = vadd.f32 %v112, %v357
    %v359 = vpop.f32.mrb[0].mxu0
    %v360 = vadd.f32 %v116, %v359
    %361 = vdwg.mxu0
    %362 = vmatprep.subr.bf16.mxu0 %v228
    %363 = vmatpush1.bf16.msra.mxu0 %v227
    %364 = vmatprep.subr.bf16.mxu0 %v232
    %365 = vmatpush1.bf16.msra.mxu0 %v231
    %366 = vmatprep.subr.bf16.mxu0 %v236
    %367 = vmatpush1.bf16.msra.mxu0 %v235
    %368 = vmatprep.subr.bf16.mxu0 %v240
    %369 = vmatpush1.bf16.msra.mxu0 %v239
    %370 = vmatprep.subr.bf16.mxu0 %v244
    %371 = vmatpush1.bf16.msra.mxu0 %v243
    %372 = vmatprep.subr.bf16.mxu0 %v248
    %373 = vmatpush1.bf16.msra.mxu0 %v247
    %374 = vmatprep.subr.bf16.mxu0 %v252
    %375 = vmatpush1.bf16.msra.mxu0 %v251
    %376 = vmatprep.subr.bf16.mxu0 %v256
    %377 = vmatpush1.bf16.msra.mxu0 %v255
    %378 = vmatprep.subr.bf16.mxu0 0
    %379 = vmatpush1.bf16.msra.mxu0 0
    %380 = vmatprep.subr.bf16.mxu0 0
    %381 = vmatpush1.bf16.msra.mxu0 0
    %382 = vmatprep.subr.bf16.mxu0 0
    %383 = vmatpush1.bf16.msra.mxu0 0
    %384 = vmatprep.subr.bf16.mxu0 0
    %385 = vmatpush1.bf16.msra.mxu0 0
    %386 = vmatprep.subr.bf16.mxu0 0
    %387 = vmatpush1.bf16.msra.mxu0 0
    %388 = vmatprep.subr.bf16.mxu0 0
    %389 = vmatpush1.bf16.msra.mxu0 0
    %390 = vmatprep.subr.bf16.mxu0 0
    %391 = vmatpush1.bf16.msra.mxu0 0
    %392 = vmatprep.subr.bf16.mxu0 0
    %393 = vmatpush1.bf16.msra.mxu0 0
    %394 = vmatprep.mubr.bf16.mxu0 0
    %395 = vmatmul.mubr.bf16.gmra.mrb[0].mxu0 %v71
    %v396 = vpop.f32.mrb[0].mxu0
    %v397 = vadd.f32 %v120, %v396
    %v398 = vpop.f32.mrb[0].mxu0
    %v399 = vadd.f32 %v124, %v398
    %v400 = vpop.f32.mrb[0].mxu0
    %v401 = vadd.f32 %v120, %v400
    %v402 = vpop.f32.mrb[0].mxu0
    %v403 = vadd.f32 %v124, %v402
    %404 = vmatprep.mubr.bf16.mxu0 0
    %405 = vmatmul.mubr.bf16.gmra.mrb[0].mxu0 %v72
    %v406 = vpop.f32.mrb[0].mxu0
    %v407 = vadd.f32 %v120, %v406
    %v408 = vpop.f32.mrb[0].mxu0
    %v409 = vadd.f32 %v124, %v408
    %v410 = vpop.f32.mrb[0].mxu0
    %v411 = vadd.f32 %v120, %v410
    %v412 = vpop.f32.mrb[0].mxu0
    %v413 = vadd.f32 %v124, %v412
    %414 = vmatprep.mubr.bf16.mxu0 0
    %415 = vmatmul.mubr.bf16.gmra.mrb[0].mxu0 %v73
    %v416 = vpop.f32.mrb[0].mxu0
    %v417 = vadd.f32 %v120, %v416
    %v418 = vpop.f32.mrb[0].mxu0
    %v419 = vadd.f32 %v124, %v418
    %v420 = vpop.f32.mrb[0].mxu0
    %v421 = vadd.f32 %v120, %v420
    %v422 = vpop.f32.mrb[0].mxu0
    %v423 = vadd.f32 %v124, %v422
    %424 = vmatprep.mubr.bf16.mxu0 0
    %425 = vmatmul.mubr.bf16.gmra.mrb[0].mxu0 %v74
    %v426 = vpop.f32.mrb[0].mxu0
    %v427 = vadd.f32 %v120, %v426
    %v428 = vpop.f32.mrb[0].mxu0
    %v429 = vadd.f32 %v124, %v428
    %v430 = vpop.f32.mrb[0].mxu0
    %v431 = vadd.f32 %v120, %v430
    %v432 = vpop.f32.mrb[0].mxu0
    %v433 = vadd.f32 %v124, %v432
    %434 = vdwg.mxu0
    %435 = vst [vmem:[#allocation3] sm:$0xff] %v324
    %436 = vst [vmem:[#allocation3 + $0x8] sm:$0xff] %v326
    %437 = vst [vmem:[#allocation3 + $0x10] sm:$0xff] %v397
    %438 = vst [vmem:[#allocation3 + $0x18] sm:$0xff] %v399
    %439 = vst [vmem:[#allocation3 + $0x20] sm:$0xff] %v328
    %440 = vst [vmem:[#allocation3 + $0x28] sm:$0xff] %v330
    %441 = vst [vmem:[#allocation3 + $0x30] sm:$0xff] %v401
    %442 = vst [vmem:[#allocation3 + $0x38] sm:$0xff] %v403
    %443 = vst [vmem:[#allocation3 + $0x40] sm:$0xff] %v334
    %444 = vst [vmem:[#allocation3 + $0x48] sm:$0xff] %v336
    %445 = vst [vmem:[#allocation3 + $0x50] sm:$0xff] %v407
    %446 = vst [vmem:[#allocation3 + $0x58] sm:$0xff] %v409
    %447 = vst [vmem:[#allocation3 + $0x60] sm:$0xff] %v338
    %448 = vst [vmem:[#allocation3 + $0x68] sm:$0xff] %v340
    %449 = vst [vmem:[#allocation3 + $0x70] sm:$0xff] %v411
    %450 = vst [vmem:[#allocation3 + $0x78] sm:$0xff] %v413
    %451 = vst [vmem:[#allocation3 + $0x80] sm:$0xff] %v344
    %452 = vst [vmem:[#allocation3 + $0x88] sm:$0xff] %v346
    %453 = vst [vmem:[#allocation3 + $0x90] sm:$0xff] %v417
    %454 = vst [vmem:[#allocation3 + $0x98] sm:$0xff] %v419
    %455 = vst [vmem:[#allocation3 + $0xa0] sm:$0xff] %v348
    %456 = vst [vmem:[#allocation3 + $0xa8] sm:$0xff] %v350
    %457 = vst [vmem:[#allocation3 + $0xb0] sm:$0xff] %v421
    %458 = vst [vmem:[#allocation3 + $0xb8] sm:$0xff] %v423
    %459 = vst [vmem:[#allocation3 + $0xc0] sm:$0xff] %v354
    %460 = vst [vmem:[#allocation3 + $0xc8] sm:$0xff] %v356
    %461 = vst [vmem:[#allocation3 + $0xd0] sm:$0xff] %v427
    %462 = vst [vmem:[#allocation3 + $0xd8] sm:$0xff] %v429
    %463 = vst [vmem:[#allocation3 + $0xe0] sm:$0xff] %v358
    %464 = vst [vmem:[#allocation3 + $0xe8] sm:$0xff] %v360
    %465 = vst [vmem:[#allocation3 + $0xf0] sm:$0xff] %v431
    %466 = vst [vmem:[#allocation3 + $0xf8] sm:$0xff] %v433
    %v467 = vld [vmem:[#allocation3] sm:$0xff]
    %v468 = vld [vmem:[#allocation3 + $0x8] sm:$0xff]
    %v469 = vld [vmem:[#allocation3 + $0x10] sm:$0xff]
    %v470 = vld [vmem:[#allocation3 + $0x18] sm:$0xff]
    %v471 = vld [vmem:[#allocation9] sm:$0xff]
    %v472 = vld [vmem:[#allocation9 + $0x8] sm:$0xff]
    %v473 = vld [vmem:[#allocation9 + $0x10] sm:$0xff]
    %v474 = vld [vmem:[#allocation9 + $0x18] sm:$0xff]
    %v475 = vld [vmem:[#allocation9 + $0x20] sm:$0xff]
    %v476 = vld [vmem:[#allocation9 + $0x28] sm:$0xff]
    %v477 = vld [vmem:[#allocation9 + $0x30] sm:$0xff]
    %v478 = vld [vmem:[#allocation9 + $0x38] sm:$0xff]
    %v479 = vld [vmem:[#allocation9 + $0x40] sm:$0xff]
    %v480 = vld [vmem:[#allocation9 + $0x48] sm:$0xff]
    %v481 = vld [vmem:[#allocation9 + $0x50] sm:$0xff]
    %v482 = vld [vmem:[#allocation9 + $0x58] sm:$0xff]
    %v483 = vld [vmem:[#allocation9 + $0x60] sm:$0xff]
    %v484 = vld [vmem:[#allocation9 + $0x68] sm:$0xff]
    %v485 = vld [vmem:[#allocation9 + $0x70] sm:$0xff]
    %v486 = vld [vmem:[#allocation9 + $0x78] sm:$0xff]
    %v487 = vld [vmem:[#allocation9 + $0x80] sm:$0xff]
    %v488 = vld [vmem:[#allocation9 + $0x88] sm:$0xff]
    %v489 = vld [vmem:[#allocation9 + $0x90] sm:$0xff]
    %v490 = vld [vmem:[#allocation9 + $0x98] sm:$0xff]
    %v491 = vld [vmem:[#allocation9 + $0xa0] sm:$0xff]
    %v492 = vld [vmem:[#allocation9 + $0xa8] sm:$0xff]
    %v493 = vld [vmem:[#allocation9 + $0xb0] sm:$0xff]
    %v494 = vld [vmem:[#allocation9 + $0xb8] sm:$0xff]
    %v495 = vld [vmem:[#allocation9 + $0xc0] sm:$0xff]
    %v496 = vld [vmem:[#allocation9 + $0xc8] sm:$0xff]
    %v497 = vld [vmem:[#allocation9 + $0xd0] sm:$0xff]
    %v498 = vld [vmem:[#allocation9 + $0xd8] sm:$0xff]
    %v499 = vld [vmem:[#allocation9 + $0xe0] sm:$0xff]
    %v500 = vld [vmem:[#allocation9 + $0xe8] sm:$0xff]
    %v501 = vld [vmem:[#allocation9 + $0xf0] sm:$0xff]
    %v502 = vld [vmem:[#allocation9 + $0xf8] sm:$0xff]
    %v535 = vunpack.c.l.b16 %v471
    %v536 = vunpack.c.h.b16 %v471
    %v537 = vunpack.c.l.b16 %v472
    %v538 = vunpack.c.h.b16 %v472
    %v539 = vunpack.c.l.b16 %v473
    %v540 = vunpack.c.h.b16 %v473
    %v541 = vunpack.c.l.b16 %v474
    %v542 = vunpack.c.h.b16 %v474
    %v543 = vunpack.c.l.b16 %v475
    %v544 = vunpack.c.h.b16 %v475
    %v545 = vunpack.c.l.b16 %v476
    %v546 = vunpack.c.h.b16 %v476
    %v547 = vunpack.c.l.b16 %v477
    %v548 = vunpack.c.h.b16 %v477
    %v549 = vunpack.c.l.b16 %v478
    %v550 = vunpack.c.h.b16 %v478
    %v551 = vunpack.c.l.b16 %v479
    %v552 = vunpack.c.h.b16 %v479
    %v553 = vunpack.c.l.b16 %v480
    %v554 = vunpack.c.h.b16 %v480
    %v555 = vunpack.c.l.b16 %v481
    %v556 = vunpack.c.h.b16 %v481
    %v557 = vunpack.c.l.b16 %v482
    %v558 = vunpack.c.h.b16 %v482
    %v559 = vunpack.c.l.b16 %v483
    %v560 = vunpack.c.h.b16 %v483
    %v561 = vunpack.c.l.b16 %v484
    %v562 = vunpack.c.h.b16 %v484
    %v563 = vunpack.c.l.b16 %v485
    %v564 = vunpack.c.h.b16 %v485
    %v565 = vunpack.c.l.b16 %v486
    %v566 = vunpack.c.h.b16 %v486
    %v567 = vunpack.c.l.b16 %v487
    %v568 = vunpack.c.h.b16 %v487
    %v569 = vunpack.c.l.b16 %v488
    %v570 = vunpack.c.h.b16 %v488
    %v571 = vunpack.c.l.b16 %v489
    %v572 = vunpack.c.h.b16 %v489
    %v573 = vunpack.c.l.b16 %v490
    %v574 = vunpack.c.h.b16 %v490
    %v575 = vunpack.c.l.b16 %v491
    %v576 = vunpack.c.h.b16 %v491
    %v577 = vunpack.c.l.b16 %v492
    %v578 = vunpack.c.h.b16 %v492
    %v579 = vunpack.c.l.b16 %v493
    %v580 = vunpack.c.h.b16 %v493
    %v581 = vunpack.c.l.b16 %v494
    %v582 = vunpack.c.h.b16 %v494
    %v583 = vunpack.c.l.b16 %v495
    %v584 = vunpack.c.h.b16 %v495
    %v585 = vunpack.c.l.b16 %v496
    %v586 = vunpack.c.h.b16 %v496
    %v587 = vunpack.c.l.b16 %v497
    %v588 = vunpack.c.h.b16 %v497
    %v589 = vunpack.c.l.b16 %v498
    %v590 = vunpack.c.h.b16 %v498
    %v591 = vunpack.c.l.b16 %v499
    %v592 = vunpack.c.h.b16 %v499
    %v593 = vunpack.c.l.b16 %v500
    %v594 = vunpack.c.h.b16 %v500
    %v595 = vunpack.c.l.b16 %v501
    %v596 = vunpack.c.h.b16 %v501
    %v597 = vunpack.c.l.b16 %v502
    %v598 = vunpack.c.h.b16 %v502
    %v599 = vpack.c.b16 %v539, %v535
    %v600 = vpack.c.b16 %v540, %v536
    %v601 = vpack.c.b16 %v541, %v537
    %v602 = vpack.c.b16 %v542, %v538
    %v603 = vpack.c.b16 %v547, %v543
    %v604 = vpack.c.b16 %v548, %v544
    %v605 = vpack.c.b16 %v549, %v545
    %v606 = vpack.c.b16 %v550, %v546
    %v607 = vpack.c.b16 %v555, %v551
    %v608 = vpack.c.b16 %v556, %v552
    %v609 = vpack.c.b16 %v557, %v553
    %v610 = vpack.c.b16 %v558, %v554
    %v611 = vpack.c.b16 %v563, %v559
    %v612 = vpack.c.b16 %v564, %v560
    %v613 = vpack.c.b16 %v565, %v561
    %v614 = vpack.c.b16 %v566, %v562
    %v615 = vpack.c.b16 %v571, %v567
    %v616 = vpack.c.b16 %v572, %v568
    %v617 = vpack.c.b16 %v573, %v569
    %v618 = vpack.c.b16 %v574, %v570
    %v619 = vpack.c.b16 %v579, %v575
    %v620 = vpack.c.b16 %v580, %v576
    %v621 = vpack.c.b16 %v581, %v577
    %v622 = vpack.c.b16 %v582, %v578
    %v623 = vpack.c.b16 %v587, %v583
    %v624 = vpack.c.b16 %v588, %v584
    %v625 = vpack.c.b16 %v589, %v585
    %v626 = vpack.c.b16 %v590, %v586
    %v627 = vpack.c.b16 %v595, %v591
    %v628 = vpack.c.b16 %v596, %v592
    %v629 = vpack.c.b16 %v597, %v593
    %v630 = vpack.c.b16 %v598, %v594
    %663 = vmatprep.subr.bf16.mxu0 %v600
    %664 = vmatpush1.bf16.msra.mxu0 %v599
    %665 = vmatprep.subr.bf16.mxu0 %v604
    %666 = vmatpush1.bf16.msra.mxu0 %v603
    %667 = vmatprep.subr.bf16.mxu0 %v608
    %668 = vmatpush1.bf16.msra.mxu0 %v607
    %669 = vmatprep.subr.bf16.mxu0 %v612
    %670 = vmatpush1.bf16.msra.mxu0 %v611
    %671 = vmatprep.subr.bf16.mxu0 %v616
    %672 = vmatpush1.bf16.msra.mxu0 %v615
    %673 = vmatprep.subr.bf16.mxu0 %v620
    %674 = vmatpush1.bf16.msra.mxu0 %v619
    %675 = vmatprep.subr.bf16.mxu0 %v624
    %676 = vmatpush1.bf16.msra.mxu0 %v623
    %677 = vmatprep.subr.bf16.mxu0 %v628
    %678 = vmatpush1.bf16.msra.mxu0 %v627
    %679 = vmatprep.subr.bf16.mxu0 0
    %680 = vmatpush1.bf16.msra.mxu0 0
    %681 = vmatprep.subr.bf16.mxu0 0
    %682 = vmatpush1.bf16.msra.mxu0 0
    %683 = vmatprep.subr.bf16.mxu0 0
    %684 = vmatpush1.bf16.msra.mxu0 0
    %685 = vmatprep.subr.bf16.mxu0 0
    %686 = vmatpush1.bf16.msra.mxu0 0
    %687 = vmatprep.subr.bf16.mxu0 0
    %688 = vmatpush1.bf16.msra.mxu0 0
    %689 = vmatprep.subr.bf16.mxu0 0
    %690 = vmatpush1.bf16.msra.mxu0 0
    %691 = vmatprep.subr.bf16.mxu0 0
    %692 = vmatpush1.bf16.msra.mxu0 0
    %693 = vmatprep.subr.bf16.mxu0 0
    %694 = vmatpush1.bf16.msra.mxu0 0
    %695 = vmatprep.mubr.bf16.mxu0 0
    %696 = vmatmul.mubr.bf16.gmra.mrb[0].mxu0 0
    %v697 = vpop.f32.mrb[0].mxu0
    %v698 = vadd.f32 0.0, %v697
    %v699 = vpop.f32.mrb[0].mxu0
    %v700 = vadd.f32 0.0, %v699
    %v701 = vpop.f32.mrb[0].mxu0
    %v702 = vpop.f32.mrb[0].mxu0
    %703 = vdwg.mxu0
    %704 = vmatprep.subr.bf16.mxu0 %v602
    %705 = vmatpush1.bf16.msra.mxu0 %v601
    %706 = vmatprep.subr.bf16.mxu0 %v606
    %707 = vmatpush1.bf16.msra.mxu0 %v605
    %708 = vmatprep.subr.bf16.mxu0 %v610
    %709 = vmatpush1.bf16.msra.mxu0 %v609
    %710 = vmatprep.subr.bf16.mxu0 %v614
    %711 = vmatpush1.bf16.msra.mxu0 %v613
    %712 = vmatprep.subr.bf16.mxu0 %v618
    %713 = vmatpush1.bf16.msra.mxu0 %v617
    %714 = vmatprep.subr.bf16.mxu0 %v622
    %715 = vmatpush1.bf16.msra.mxu0 %v621
    %716 = vmatprep.subr.bf16.mxu0 %v626
    %717 = vmatpush1.bf16.msra.mxu0 %v625
    %718 = vmatprep.subr.bf16.mxu0 %v630
    %719 = vmatpush1.bf16.msra.mxu0 %v629
    %720 = vmatprep.subr.bf16.mxu0 0
    %721 = vmatpush1.bf16.msra.mxu0 0
    %722 = vmatprep.subr.bf16.mxu0 0
    %723 = vmatpush1.bf16.msra.mxu0 0
    %724 = vmatprep.subr.bf16.mxu0 0
    %725 = vmatpush1.bf16.msra.mxu0 0
    %726 = vmatprep.subr.bf16.mxu0 0
    %727 = vmatpush1.bf16.msra.mxu0 0
    %728 = vmatprep.subr.bf16.mxu0 0
    %729 = vmatpush1.bf16.msra.mxu0 0
    %730 = vmatprep.subr.bf16.mxu0 0
    %731 = vmatpush1.bf16.msra.mxu0 0
    %732 = vmatprep.subr.bf16.mxu0 0
    %733 = vmatpush1.bf16.msra.mxu0 0
    %734 = vmatprep.subr.bf16.mxu0 0
    %735 = vmatpush1.bf16.msra.mxu0 0
    %736 = vmatprep.mubr.bf16.mxu0 0
    %737 = vmatmul.mubr.bf16.gmra.mrb[0].mxu0 0
    %v738 = vpop.f32.mrb[0].mxu0
    %v739 = vadd.f32 0.0, %v738
    %v740 = vpop.f32.mrb[0].mxu0
    %v741 = vadd.f32 0.0, %v740
    %v742 = vpop.f32.mrb[0].mxu0
    %v743 = vpop.f32.mrb[0].mxu0
    %744 = vdwg.mxu0
    %v745 = vadd.f32 %v467, %v698
    %v746 = vadd.f32 %v468, %v700
    %v747 = vadd.f32 %v469, %v739
    %v748 = vadd.f32 %v470, %v741
    %v749 = vsub.f32 0.0, %v745
    %v750 = vmul.f32 %v749, 1.442695
    %v751 = vpow.pop %v750
    %v752 = vadd.f32 %v751, 1.0
    %v753 = vrcp.pop %v752
    %v754 = vsub.f32 0.0, %v746
    %v755 = vmul.f32 %v754, 1.442695
    %v756 = vpow.pop %v755
    %v757 = vadd.f32 %v756, 1.0
    %v758 = vrcp.pop %v757
    %v759 = vtanh.pop %v747
    %v760 = vsub.f32 0.0, %v748
    %v761 = vmul.f32 %v760, 1.442695
    %v762 = vpow.pop %v761
    %v763 = vadd.f32 %v762, 1.0
    %v764 = vrcp.pop %v763
    %v765 = vmul.f32 %v758, 0.0
    %v766 = vmul.f32 %v753, %v759
    %v767 = vadd.f32 %v765, %v766
    %v768 = vtanh.pop %v767
    %v769 = vmul.f32 %v764, %v768
    %770 = vst [vmem:[#allocation2] sm:$0xff] %v769
    %v771 = vld [vmem:[#allocation3 + $0x20] sm:$0xff]
    %v772 = vld [vmem:[#allocation3 + $0x28] sm:$0xff]
    %v773 = vld [vmem:[#allocation3 + $0x30] sm:$0xff]
    %v774 = vld [vmem:[#allocation3 + $0x38] sm:$0xff]
    %v775 = vpack.c.bf16 %v769, %v769
    %v776 = vld [vmem:[#allocation9] sm:$0xff]
    %v777 = vld [vmem:[#allocation9 + $0x8] sm:$0xff]
    %v778 = vld [vmem:[#allocation9 + $0x10] sm:$0xff]
    %v779 = vld [vmem:[#allocation9 + $0x18] sm:$0xff]
    %v780 = vld [vmem:[#allocation9 + $0x20] sm:$0xff]
    %v781 = vld [vmem:[#allocation9 + $0x28] sm:$0xff]
    %v782 = vld [vmem:[#allocation9 + $0x30] sm:$0xff]
    %v783 = vld [vmem:[#allocation9 + $0x38] sm:$0xff]
    %v784 = vld [vmem:[#allocation9 + $0x40] sm:$0xff]
    %v785 = vld [vmem:[#allocation9 + $0x48] sm:$0xff]
    %v786 = vld [vmem:[#allocation9 + $0x50] sm:$0xff]
    %v787 = vld [vmem:[#allocation9 + $0x58] sm:$0xff]
    %v788 = vld [vmem:[#allocation9 + $0x60] sm:$0xff]
    %v789 = vld [vmem:[#allocation9 + $0x68] sm:$0xff]
    %v790 = vld [vmem:[#allocation9 + $0x70] sm:$0xff]
    %v791 = vld [vmem:[#allocation9 + $0x78] sm:$0xff]
    %v792 = vld [vmem:[#allocation9 + $0x80] sm:$0xff]
    %v793 = vld [vmem:[#allocation9 + $0x88] sm:$0xff]
    %v794 = vld [vmem:[#allocation9 + $0x90] sm:$0xff]
    %v795 = vld [vmem:[#allocation9 + $0x98] sm:$0xff]
    %v796 = vld [vmem:[#allocation9 + $0xa0] sm:$0xff]
    %v797 = vld [vmem:[#allocation9 + $0xa8] sm:$0xff]
    %v798 = vld [vmem:[#allocation9 + $0xb0] sm:$0xff]
    %v799 = vld [vmem:[#allocation9 + $0xb8] sm:$0xff]
    %v800 = vld [vmem:[#allocation9 + $0xc0] sm:$0xff]
    %v801 = vld [vmem:[#allocation9 + $0xc8] sm:$0xff]
    %v802 = vld [vmem:[#allocation9 + $0xd0] sm:$0xff]
    %v803 = vld [vmem:[#allocation9 + $0xd8] sm:$0xff]
    %v804 = vld [vmem:[#allocation9 + $0xe0] sm:$0xff]
    %v805 = vld [vmem:[#allocation9 + $0xe8] sm:$0xff]
    %v806 = vld [vmem:[#allocation9 + $0xf0] sm:$0xff]
    %v807 = vld [vmem:[#allocation9 + $0xf8] sm:$0xff]
    %v840 = vunpack.c.l.b16 %v776
    %v841 = vunpack.c.h.b16 %v776
    %v842 = vunpack.c.l.b16 %v777
    %v843 = vunpack.c.h.b16 %v777
    %v844 = vunpack.c.l.b16 %v778
    %v845 = vunpack.c.h.b16 %v778
    %v846 = vunpack.c.l.b16 %v779
    %v847 = vunpack.c.h.b16 %v779
    %v848 = vunpack.c.l.b16 %v780
    %v849 = vunpack.c.h.b16 %v780
    %v850 = vunpack.c.l.b16 %v781
    %v851 = vunpack.c.h.b16 %v781
    %v852 = vunpack.c.l.b16 %v782
    %v853 = vunpack.c.h.b16 %v782
    %v854 = vunpack.c.l.b16 %v783
    %v855 = vunpack.c.h.b16 %v783
    %v856 = vunpack.c.l.b16 %v784
    %v857 = vunpack.c.h.b16 %v784
    %v858 = vunpack.c.l.b16 %v785
    %v859 = vunpack.c.h.b16 %v785
    %v860 = vunpack.c.l.b16 %v786
    %v861 = vunpack.c.h.b16 %v786
    %v862 = vunpack.c.l.b16 %v787
    %v863 = vunpack.c.h.b16 %v787
    %v864 = vunpack.c.l.b16 %v788
    %v865 = vunpack.c.h.b16 %v788
    %v866 = vunpack.c.l.b16 %v789
    %v867 = vunpack.c.h.b16 %v789
    %v868 = vunpack.c.l.b16 %v790
    %v869 = vunpack.c.h.b16 %v790
    %v870 = vunpack.c.l.b16 %v791
    %v871 = vunpack.c.h.b16 %v791
    %v872 = vunpack.c.l.b16 %v792
    %v873 = vunpack.c.h.b16 %v792
    %v874 = vunpack.c.l.b16 %v793
    %v875 = vunpack.c.h.b16 %v793
    %v876 = vunpack.c.l.b16 %v794
    %v877 = vunpack.c.h.b16 %v794
    %v878 = vunpack.c.l.b16 %v795
    %v879 = vunpack.c.h.b16 %v795
    %v880 = vunpack.c.l.b16 %v796
    %v881 = vunpack.c.h.b16 %v796
    %v882 = vunpack.c.l.b16 %v797
    %v883 = vunpack.c.h.b16 %v797
    %v884 = vunpack.c.l.b16 %v798
    %v885 = vunpack.c.h.b16 %v798
    %v886 = vunpack.c.l.b16 %v799
    %v887 = vunpack.c.h.b16 %v799
    %v888 = vunpack.c.l.b16 %v800
    %v889 = vunpack.c.h.b16 %v800
    %v890 = vunpack.c.l.b16 %v801
    %v891 = vunpack.c.h.b16 %v801
    %v892 = vunpack.c.l.b16 %v802
    %v893 = vunpack.c.h.b16 %v802
    %v894 = vunpack.c.l.b16 %v803
    %v895 = vunpack.c.h.b16 %v803
    %v896 = vunpack.c.l.b16 %v804
    %v897 = vunpack.c.h.b16 %v804
    %v898 = vunpack.c.l.b16 %v805
    %v899 = vunpack.c.h.b16 %v805
    %v900 = vunpack.c.l.b16 %v806
    %v901 = vunpack.c.h.b16 %v806
    %v902 = vunpack.c.l.b16 %v807
    %v903 = vunpack.c.h.b16 %v807
    %v904 = vpack.c.b16 %v844, %v840
    %v905 = vpack.c.b16 %v845, %v841
    %v906 = vpack.c.b16 %v846, %v842
    %v907 = vpack.c.b16 %v847, %v843
    %v908 = vpack.c.b16 %v852, %v848
    %v909 = vpack.c.b16 %v853, %v849
    %v910 = vpack.c.b16 %v854, %v850
    %v911 = vpack.c.b16 %v855, %v851
    %v912 = vpack.c.b16 %v860, %v856
    %v913 = vpack.c.b16 %v861, %v857
    %v914 = vpack.c.b16 %v862, %v858
    %v915 = vpack.c.b16 %v863, %v859
    %v916 = vpack.c.b16 %v868, %v864
    %v917 = vpack.c.b16 %v869, %v865
    %v918 = vpack.c.b16 %v870, %v866
    %v919 = vpack.c.b16 %v871, %v867
    %v920 = vpack.c.b16 %v876, %v872
    %v921 = vpack.c.b16 %v877, %v873
    %v922 = vpack.c.b16 %v878, %v874
    %v923 = vpack.c.b16 %v879, %v875
    %v924 = vpack.c.b16 %v884, %v880
    %v925 = vpack.c.b16 %v885, %v881
    %v926 = vpack.c.b16 %v886, %v882
    %v927 = vpack.c.b16 %v887, %v883
    %v928 = vpack.c.b16 %v892, %v888
    %v929 = vpack.c.b16 %v893, %v889
    %v930 = vpack.c.b16 %v894, %v890
    %v931 = vpack.c.b16 %v895, %v891
    %v932 = vpack.c.b16 %v900, %v896
    %v933 = vpack.c.b16 %v901, %v897
    %v934 = vpack.c.b16 %v902, %v898
    %v935 = vpack.c.b16 %v903, %v899
    %968 = vmatprep.subr.bf16.mxu0 %v905
    %969 = vmatpush1.bf16.msra.mxu0 %v904
    %970 = vmatprep.subr.bf16.mxu0 %v909
    %971 = vmatpush1.bf16.msra.mxu0 %v908
    %972 = vmatprep.subr.bf16.mxu0 %v913
    %973 = vmatpush1.bf16.msra.mxu0 %v912
    %974 = vmatprep.subr.bf16.mxu0 %v917
    %975 = vmatpush1.bf16.msra.mxu0 %v916
    %976 = vmatprep.subr.bf16.mxu0 %v921
    %977 = vmatpush1.bf16.msra.mxu0 %v920
    %978 = vmatprep.subr.bf16.mxu0 %v925
    %979 = vmatpush1.bf16.msra.mxu0 %v924
    %980 = vmatprep.subr.bf16.mxu0 %v929
    %981 = vmatpush1.bf16.msra.mxu0 %v928
    %982 = vmatprep.subr.bf16.mxu0 %v933
    %983 = vmatpush1.bf16.msra.mxu0 %v932
    %984 = vmatprep.subr.bf16.mxu0 0
    %985 = vmatpush1.bf16.msra.mxu0 0
    %986 = vmatprep.subr.bf16.mxu0 0
    %987 = vmatpush1.bf16.msra.mxu0 0
    %988 = vmatprep.subr.bf16.mxu0 0
    %989 = vmatpush1.bf16.msra.mxu0 0
    %990 = vmatprep.subr.bf16.mxu0 0
    %991 = vmatpush1.bf16.msra.mxu0 0
    %992 = vmatprep.subr.bf16.mxu0 0
    %993 = vmatpush1.bf16.msra.mxu0 0
    %994 = vmatprep.subr.bf16.mxu0 0
    %995 = vmatpush1.bf16.msra.mxu0 0
    %996 = vmatprep.subr.bf16.mxu0 0
    %997 = vmatpush1.bf16.msra.mxu0 0
    %998 = vmatprep.subr.bf16.mxu0 0
    %999 = vmatpush1.bf16.msra.mxu0 0
    %1000 = vmatprep.mubr.bf16.mxu0 0
    %1001 = vmatmul.mubr.bf16.gmra.mrb[0].mxu0 %v775
    %v1002 = vpop.f32.mrb[0].mxu0
    %v1003 = vadd.f32 0.0, %v1002
    %v1004 = vpop.f32.mrb[0].mxu0
    %v1005 = vadd.f32 0.0, %v1004
    %v1006 = vpop.f32.mrb[0].mxu0
    %v1007 = vpop.f32.mrb[0].mxu0
    %1008 = vdwg.mxu0
    %1009 = vmatprep.subr.bf16.mxu0 %v907
    %1010 = vmatpush1.bf16.msra.mxu0 %v906
    %1011 = vmatprep.subr.bf16.mxu0 %v911
    %1012 = vmatpush1.bf16.msra.mxu0 %v910
    %1013 = vmatprep.subr.bf16.mxu0 %v915
    %1014 = vmatpush1.bf16.msra.mxu0 %v914
    %1015 = vmatprep.subr.bf16.mxu0 %v919
    %1016 = vmatpush1.bf16.msra.mxu0 %v918
    %1017 = vmatprep.subr.bf16.mxu0 %v923
    %1018 = vmatpush1.bf16.msra.mxu0 %v922
    %1019 = vmatprep.subr.bf16.mxu0 %v927
    %1020 = vmatpush1.bf16.msra.mxu0 %v926
    %1021 = vmatprep.subr.bf16.mxu0 %v931
    %1022 = vmatpush1.bf16.msra.mxu0 %v930
    %1023 = vmatprep.subr.bf16.mxu0 %v935
    %1024 = vmatpush1.bf16.msra.mxu0 %v934
    %1025 = vmatprep.subr.bf16.mxu0 0
    %1026 = vmatpush1.bf16.msra.mxu0 0
    %1027 = vmatprep.subr.bf16.mxu0 0
    %1028 = vmatpush1.bf16.msra.mxu0 0
    %1029 = vmatprep.subr.bf16.mxu0 0
    %1030 = vmatpush1.bf16.msra.mxu0 0
    %1031 = vmatprep.subr.bf16.mxu0 0
    %1032 = vmatpush1.bf16.msra.mxu0 0
    %1033 = vmatprep.subr.bf16.mxu0 0
    %1034 = vmatpush1.bf16.msra.mxu0 0
    %1035 = vmatprep.subr.bf16.mxu0 0
    %1036 = vmatpush1.bf16.msra.mxu0 0
    %1037 = vmatprep.subr.bf16.mxu0 0
    %1038 = vmatpush1.bf16.msra.mxu0 0
    %1039 = vmatprep.subr.bf16.mxu0 0
    %1040 = vmatpush1.bf16.msra.mxu0 0
    %1041 = vmatprep.mubr.bf16.mxu0 0
    %1042 = vmatmul.mubr.bf16.gmra.mrb[0].mxu0 %v775
    %v1043 = vpop.f32.mrb[0].mxu0
    %v1044 = vadd.f32 0.0, %v1043
    %v1045 = vpop.f32.mrb[0].mxu0
    %v1046 = vadd.f32 0.0, %v1045
    %v1047 = vpop.f32.mrb[0].mxu0
    %v1048 = vpop.f32.mrb[0].mxu0
    %1049 = vdwg.mxu0
    %v1050 = vadd.f32 %v771, %v1003
    %v1051 = vadd.f32 %v772, %v1005
    %v1052 = vadd.f32 %v773, %v1044
    %v1053 = vadd.f32 %v774, %v1046
    %v1054 = vsub.f32 0.0, %v1050
    %v1055 = vmul.f32 %v1054, 1.442695
    %v1056 = vpow.pop %v1055
    %v1057 = vadd.f32 %v1056, 1.0
    %v1058 = vrcp.pop %v1057
    %v1059 = vsub.f32 0.0, %v1051
    %v1060 = vmul.f32 %v1059, 1.442695
    %v1061 = vpow.pop %v1060
    %v1062 = vadd.f32 %v1061, 1.0
    %v1063 = vrcp.pop %v1062
    %v1064 = vtanh.pop %v1052
    %v1065 = vsub.f32 0.0, %v1053
    %v1066 = vmul.f32 %v1065, 1.442695
    %v1067 = vpow.pop %v1066
    %v1068 = vadd.f32 %v1067, 1.0
    %v1069 = vrcp.pop %v1068
    %v1070 = vmul.f32 %v1063, %v767
    %v1071 = vmul.f32 %v1058, %v1064
    %v1072 = vadd.f32 %v1070, %v1071
    %v1073 = vtanh.pop %v1072
    %v1074 = vmul.f32 %v1069, %v1073
    %1075 = vst [vmem:[#allocation2 + $0x8] sm:$0xff] %v1074
    %v1076 = vld [vmem:[#allocation3 + $0x40] sm:$0xff]
    %v1077 = vld [vmem:[#allocation3 + $0x48] sm:$0xff]
    %v1078 = vld [vmem:[#allocation3 + $0x50] sm:$0xff]
    %v1079 = vld [vmem:[#allocation3 + $0x58] sm:$0xff]
    %v1080 = vpack.c.bf16 %v1074, %v1074
    %v1081 = vld [vmem:[#allocation9] sm:$0xff]
    %v1082 = vld [vmem:[#allocation9 + $0x8] sm:$0xff]
    %v1083 = vld [vmem:[#allocation9 + $0x10] sm:$0xff]
    %v1084 = vld [vmem:[#allocation9 + $0x18] sm:$0xff]
    %v1085 = vld [vmem:[#allocation9 + $0x20] sm:$0xff]
    %v1086 = vld [vmem:[#allocation9 + $0x28] sm:$0xff]
    %v1087 = vld [vmem:[#allocation9 + $0x30] sm:$0xff]
    %v1088 = vld [vmem:[#allocation9 + $0x38] sm:$0xff]
    %v1089 = vld [vmem:[#allocation9 + $0x40] sm:$0xff]
    %v1090 = vld [vmem:[#allocation9 + $0x48] sm:$0xff]
    %v1091 = vld [vmem:[#allocation9 + $0x50] sm:$0xff]
    %v1092 = vld [vmem:[#allocation9 + $0x58] sm:$0xff]
    %v1093 = vld [vmem:[#allocation9 + $0x60] sm:$0xff]
    %v1094 = vld [vmem:[#allocation9 + $0x68] sm:$0xff]
    %v1095 = vld [vmem:[#allocation9 + $0x70] sm:$0xff]
    %v1096 = vld [vmem:[#allocation9 + $0x78] sm:$0xff]
    %v1097 = vld [vmem:[#allocation9 + $0x80] sm:$0xff]
    %v1098 = vld [vmem:[#allocation9 + $0x88] sm:$0xff]
    %v1099 = vld [vmem:[#allocation9 + $0x90] sm:$0xff]
    %v1100 = vld [vmem:[#allocation9 + $0x98] sm:$0xff]
    %v1101 = vld [vmem:[#allocation9 + $0xa0] sm:$0xff]
    %v1102 = vld [vmem:[#allocation9 + $0xa8] sm:$0xff]
    %v1103 = vld [vmem:[#allocation9 + $0xb0] sm:$0xff]
    %v1104 = vld [vmem:[#allocation9 + $0xb8] sm:$0xff]
    %v1105 = vld [vmem:[#allocation9 + $0xc0] sm:$0xff]
    %v1106 = vld [vmem:[#allocation9 + $0xc8] sm:$0xff]
    %v1107 = vld [vmem:[#allocation9 + $0xd0] sm:$0xff]
    %v1108 = vld [vmem:[#allocation9 + $0xd8] sm:$0xff]
    %v1109 = vld [vmem:[#allocation9 + $0xe0] sm:$0xff]
    %v1110 = vld [vmem:[#allocation9 + $0xe8] sm:$0xff]
    %v1111 = vld [vmem:[#allocation9 + $0xf0] sm:$0xff]
    %v1112 = vld [vmem:[#allocation9 + $0xf8] sm:$0xff]
    %v1145 = vunpack.c.l.b16 %v1081
    %v1146 = vunpack.c.h.b16 %v1081
    %v1147 = vunpack.c.l.b16 %v1082
    %v1148 = vunpack.c.h.b16 %v1082
    %v1149 = vunpack.c.l.b16 %v1083
    %v1150 = vunpack.c.h.b16 %v1083
    %v1151 = vunpack.c.l.b16 %v1084
    %v1152 = vunpack.c.h.b16 %v1084
    %v1153 = vunpack.c.l.b16 %v1085
    %v1154 = vunpack.c.h.b16 %v1085
    %v1155 = vunpack.c.l.b16 %v1086
    %v1156 = vunpack.c.h.b16 %v1086
    %v1157 = vunpack.c.l.b16 %v1087
    %v1158 = vunpack.c.h.b16 %v1087
    %v1159 = vunpack.c.l.b16 %v1088
    %v1160 = vunpack.c.h.b16 %v1088
    %v1161 = vunpack.c.l.b16 %v1089
    %v1162 = vunpack.c.h.b16 %v1089
    %v1163 = vunpack.c.l.b16 %v1090
    %v1164 = vunpack.c.h.b16 %v1090
    %v1165 = vunpack.c.l.b16 %v1091
    %v1166 = vunpack.c.h.b16 %v1091
    %v1167 = vunpack.c.l.b16 %v1092
    %v1168 = vunpack.c.h.b16 %v1092
    %v1169 = vunpack.c.l.b16 %v1093
    %v1170 = vunpack.c.h.b16 %v1093
    %v1171 = vunpack.c.l.b16 %v1094
    %v1172 = vunpack.c.h.b16 %v1094
    %v1173 = vunpack.c.l.b16 %v1095
    %v1174 = vunpack.c.h.b16 %v1095
    %v1175 = vunpack.c.l.b16 %v1096
    %v1176 = vunpack.c.h.b16 %v1096
    %v1177 = vunpack.c.l.b16 %v1097
    %v1178 = vunpack.c.h.b16 %v1097
    %v1179 = vunpack.c.l.b16 %v1098
    %v1180 = vunpack.c.h.b16 %v1098
    %v1181 = vunpack.c.l.b16 %v1099
    %v1182 = vunpack.c.h.b16 %v1099
    %v1183 = vunpack.c.l.b16 %v1100
    %v1184 = vunpack.c.h.b16 %v1100
    %v1185 = vunpack.c.l.b16 %v1101
    %v1186 = vunpack.c.h.b16 %v1101
    %v1187 = vunpack.c.l.b16 %v1102
    %v1188 = vunpack.c.h.b16 %v1102
    %v1189 = vunpack.c.l.b16 %v1103
    %v1190 = vunpack.c.h.b16 %v1103
    %v1191 = vunpack.c.l.b16 %v1104
    %v1192 = vunpack.c.h.b16 %v1104
    %v1193 = vunpack.c.l.b16 %v1105
    %v1194 = vunpack.c.h.b16 %v1105
    %v1195 = vunpack.c.l.b16 %v1106
    %v1196 = vunpack.c.h.b16 %v1106
    %v1197 = vunpack.c.l.b16 %v1107
    %v1198 = vunpack.c.h.b16 %v1107
    %v1199 = vunpack.c.l.b16 %v1108
    %v1200 = vunpack.c.h.b16 %v1108
    %v1201 = vunpack.c.l.b16 %v1109
    %v1202 = vunpack.c.h.b16 %v1109
    %v1203 = vunpack.c.l.b16 %v1110
    %v1204 = vunpack.c.h.b16 %v1110
    %v1205 = vunpack.c.l.b16 %v1111
    %v1206 = vunpack.c.h.b16 %v1111
    %v1207 = vunpack.c.l.b16 %v1112
    %v1208 = vunpack.c.h.b16 %v1112
    %v1209 = vpack.c.b16 %v1149, %v1145
    %v1210 = vpack.c.b16 %v1150, %v1146
    %v1211 = vpack.c.b16 %v1151, %v1147
    %v1212 = vpack.c.b16 %v1152, %v1148
    %v1213 = vpack.c.b16 %v1157, %v1153
    %v1214 = vpack.c.b16 %v1158, %v1154
    %v1215 = vpack.c.b16 %v1159, %v1155
    %v1216 = vpack.c.b16 %v1160, %v1156
    %v1217 = vpack.c.b16 %v1165, %v1161
    %v1218 = vpack.c.b16 %v1166, %v1162
    %v1219 = vpack.c.b16 %v1167, %v1163
    %v1220 = vpack.c.b16 %v1168, %v1164
    %v1221 = vpack.c.b16 %v1173, %v1169
    %v1222 = vpack.c.b16 %v1174, %v1170
    %v1223 = vpack.c.b16 %v1175, %v1171
    %v1224 = vpack.c.b16 %v1176, %v1172
    %v1225 = vpack.c.b16 %v1181, %v1177
    %v1226 = vpack.c.b16 %v1182, %v1178
    %v1227 = vpack.c.b16 %v1183, %v1179
    %v1228 = vpack.c.b16 %v1184, %v1180
    %v1229 = vpack.c.b16 %v1189, %v1185
    %v1230 = vpack.c.b16 %v1190, %v1186
    %v1231 = vpack.c.b16 %v1191, %v1187
    %v1232 = vpack.c.b16 %v1192, %v1188
    %v1233 = vpack.c.b16 %v1197, %v1193
    %v1234 = vpack.c.b16 %v1198, %v1194
    %v1235 = vpack.c.b16 %v1199, %v1195
    %v1236 = vpack.c.b16 %v1200, %v1196
    %v1237 = vpack.c.b16 %v1205, %v1201
    %v1238 = vpack.c.b16 %v1206, %v1202
    %v1239 = vpack.c.b16 %v1207, %v1203
    %v1240 = vpack.c.b16 %v1208, %v1204
    %1273 = vmatprep.subr.bf16.mxu0 %v1210
    %1274 = vmatpush1.bf16.msra.mxu0 %v1209
    %1275 = vmatprep.subr.bf16.mxu0 %v1214
    %1276 = vmatpush1.bf16.msra.mxu0 %v1213
    %1277 = vmatprep.subr.bf16.mxu0 %v1218
    %1278 = vmatpush1.bf16.msra.mxu0 %v1217
    %1279 = vmatprep.subr.bf16.mxu0 %v1222
    %1280 = vmatpush1.bf16.msra.mxu0 %v1221
    %1281 = vmatprep.subr.bf16.mxu0 %v1226
    %1282 = vmatpush1.bf16.msra.mxu0 %v1225
    %1283 = vmatprep.subr.bf16.mxu0 %v1230
    %1284 = vmatpush1.bf16.msra.mxu0 %v1229
    %1285 = vmatprep.subr.bf16.mxu0 %v1234
    %1286 = vmatpush1.bf16.msra.mxu0 %v1233
    %1287 = vmatprep.subr.bf16.mxu0 %v1238
    %1288 = vmatpush1.bf16.msra.mxu0 %v1237
    %1289 = vmatprep.subr.bf16.mxu0 0
    %1290 = vmatpush1.bf16.msra.mxu0 0
    %1291 = vmatprep.subr.bf16.mxu0 0
    %1292 = vmatpush1.bf16.msra.mxu0 0
    %1293 = vmatprep.subr.bf16.mxu0 0
    %1294 = vmatpush1.bf16.msra.mxu0 0
    %1295 = vmatprep.subr.bf16.mxu0 0
    %1296 = vmatpush1.bf16.msra.mxu0 0
    %1297 = vmatprep.subr.bf16.mxu0 0
    %1298 = vmatpush1.bf16.msra.mxu0 0
    %1299 = vmatprep.subr.bf16.mxu0 0
    %1300 = vmatpush1.bf16.msra.mxu0 0
    %1301 = vmatprep.subr.bf16.mxu0 0
    %1302 = vmatpush1.bf16.msra.mxu0 0
    %1303 = vmatprep.subr.bf16.mxu0 0
    %1304 = vmatpush1.bf16.msra.mxu0 0
    %1305 = vmatprep.mubr.bf16.mxu0 0
    %1306 = vmatmul.mubr.bf16.gmra.mrb[0].mxu0 %v1080
    %v1307 = vpop.f32.mrb[0].mxu0
    %v1308 = vadd.f32 0.0, %v1307
    %v1309 = vpop.f32.mrb[0].mxu0
    %v1310 = vadd.f32 0.0, %v1309
    %v1311 = vpop.f32.mrb[0].mxu0
    %v1312 = vpop.f32.mrb[0].mxu0
    %1313 = vdwg.mxu0
    %1314 = vmatprep.subr.bf16.mxu0 %v1212
    %1315 = vmatpush1.bf16.msra.mxu0 %v1211
    %1316 = vmatprep.subr.bf16.mxu0 %v1216
    %1317 = vmatpush1.bf16.msra.mxu0 %v1215
    %1318 = vmatprep.subr.bf16.mxu0 %v1220
    %1319 = vmatpush1.bf16.msra.mxu0 %v1219
    %1320 = vmatprep.subr.bf16.mxu0 %v1224
    %1321 = vmatpush1.bf16.msra.mxu0 %v1223
    %1322 = vmatprep.subr.bf16.mxu0 %v1228
    %1323 = vmatpush1.bf16.msra.mxu0 %v1227
    %1324 = vmatprep.subr.bf16.mxu0 %v1232
    %1325 = vmatpush1.bf16.msra.mxu0 %v1231
    %1326 = vmatprep.subr.bf16.mxu0 %v1236
    %1327 = vmatpush1.bf16.msra.mxu0 %v1235
    %1328 = vmatprep.subr.bf16.mxu0 %v1240
    %1329 = vmatpush1.bf16.msra.mxu0 %v1239
    %1330 = vmatprep.subr.bf16.mxu0 0
    %1331 = vmatpush1.bf16.msra.mxu0 0
    %1332 = vmatprep.subr.bf16.mxu0 0
    %1333 = vmatpush1.bf16.msra.mxu0 0
    %1334 = vmatprep.subr.bf16.mxu0 0
    %1335 = vmatpush1.bf16.msra.mxu0 0
    %1336 = vmatprep.subr.bf16.mxu0 0
    %1337 = vmatpush1.bf16.msra.mxu0 0
    %1338 = vmatprep.subr.bf16.mxu0 0
    %1339 = vmatpush1.bf16.msra.mxu0 0
    %1340 = vmatprep.subr.bf16.mxu0 0
    %1341 = vmatpush1.bf16.msra.mxu0 0
    %1342 = vmatprep.subr.bf16.mxu0 0
    %1343 = vmatpush1.bf16.msra.mxu0 0
    %1344 = vmatprep.subr.bf16.mxu0 0
    %1345 = vmatpush1.bf16.msra.mxu0 0
    %1346 = vmatprep.mubr.bf16.mxu0 0
    %1347 = vmatmul.mubr.bf16.gmra.mrb[0].mxu0 %v1080
    %v1348 = vpop.f32.mrb[0].mxu0
    %v1349 = vadd.f32 0.0, %v1348
    %v1350 = vpop.f32.mrb[0].mxu0
    %v1351 = vadd.f32 0.0, %v1350
    %v1352 = vpop.f32.mrb[0].mxu0
    %v1353 = vpop.f32.mrb[0].mxu0
    %1354 = vdwg.mxu0
    %v1355 = vadd.f32 %v1076, %v1308
    %v1356 = vadd.f32 %v1077, %v1310
    %v1357 = vadd.f32 %v1078, %v1349
    %v1358 = vadd.f32 %v1079, %v1351
    %v1359 = vsub.f32 0.0, %v1355
    %v1360 = vmul.f32 %v1359, 1.442695
    %v1361 = vpow.pop %v1360
    %v1362 = vadd.f32 %v1361, 1.0
    %v1363 = vrcp.pop %v1362
    %v1364 = vsub.f32 0.0, %v1356
    %v1365 = vmul.f32 %v1364, 1.442695
    %v1366 = vpow.pop %v1365
    %v1367 = vadd.f32 %v1366, 1.0
    %v1368 = vrcp.pop %v1367
    %v1369 = vtanh.pop %v1357
    %v1370 = vsub.f32 0.0, %v1358
    %v1371 = vmul.f32 %v1370, 1.442695
    %v1372 = vpow.pop %v1371
    %v1373 = vadd.f32 %v1372, 1.0
    %v1374 = vrcp.pop %v1373
    %v1375 = vmul.f32 %v1368, %v1072
    %v1376 = vmul.f32 %v1363, %v1369
    %v1377 = vadd.f32 %v1375, %v1376
    %v1378 = vtanh.pop %v1377
    %v1379 = vmul.f32 %v1374, %v1378
    %1380 = vst [vmem:[#allocation2 + $0x10] sm:$0xff] %v1379
    %v1381 = vld [vmem:[#allocation3 + $0x60] sm:$0xff]
    %v1382 = vld [vmem:[#allocation3 + $0x68] sm:$0xff]
    %v1383 = vld [vmem:[#allocation3 + $0x70] sm:$0xff]
    %v1384 = vld [vmem:[#allocation3 + $0x78] sm:$0xff]
    %v1385 = vpack.c.bf16 %v1379, %v1379
    %v1386 = vld [vmem:[#allocation9] sm:$0xff]
    %v1387 = vld [vmem:[#allocation9 + $0x8] sm:$0xff]
    %v1388 = vld [vmem:[#allocation9 + $0x10] sm:$0xff]
    %v1389 = vld [vmem:[#allocation9 + $0x18] sm:$0xff]
    %v1390 = vld [vmem:[#allocation9 + $0x20] sm:$0xff]
    %v1391 = vld [vmem:[#allocation9 + $0x28] sm:$0xff]
    %v1392 = vld [vmem:[#allocation9 + $0x30] sm:$0xff]
    %v1393 = vld [vmem:[#allocation9 + $0x38] sm:$0xff]
    %v1394 = vld [vmem:[#allocation9 + $0x40] sm:$0xff]
    %v1395 = vld [vmem:[#allocation9 + $0x48] sm:$0xff]
    %v1396 = vld [vmem:[#allocation9 + $0x50] sm:$0xff]
    %v1397 = vld [vmem:[#allocation9 + $0x58] sm:$0xff]
    %v1398 = vld [vmem:[#allocation9 + $0x60] sm:$0xff]
    %v1399 = vld [vmem:[#allocation9 + $0x68] sm:$0xff]
    %v1400 = vld [vmem:[#allocation9 + $0x70] sm:$0xff]
    %v1401 = vld [vmem:[#allocation9 + $0x78] sm:$0xff]
    %v1402 = vld [vmem:[#allocation9 + $0x80] sm:$0xff]
    %v1403 = vld [vmem:[#allocation9 + $0x88] sm:$0xff]
    %v1404 = vld [vmem:[#allocation9 + $0x90] sm:$0xff]
    %v1405 = vld [vmem:[#allocation9 + $0x98] sm:$0xff]
    %v1406 = vld [vmem:[#allocation9 + $0xa0] sm:$0xff]
    %v1407 = vld [vmem:[#allocation9 + $0xa8] sm:$0xff]
    %v1408 = vld [vmem:[#allocation9 + $0xb0] sm:$0xff]
    %v1409 = vld [vmem:[#allocation9 + $0xb8] sm:$0xff]
    %v1410 = vld [vmem:[#allocation9 + $0xc0] sm:$0xff]
    %v1411 = vld [vmem:[#allocation9 + $0xc8] sm:$0xff]
    %v1412 = vld [vmem:[#allocation9 + $0xd0] sm:$0xff]
    %v1413 = vld [vmem:[#allocation9 + $0xd8] sm:$0xff]
    %v1414 = vld [vmem:[#allocation9 + $0xe0] sm:$0xff]
    %v1415 = vld [vmem:[#allocation9 + $0xe8] sm:$0xff]
    %v1416 = vld [vmem:[#allocation9 + $0xf0] sm:$0xff]
    %v1417 = vld [vmem:[#allocation9 + $0xf8] sm:$0xff]
    %v1450 = vunpack.c.l.b16 %v1386
    %v1451 = vunpack.c.h.b16 %v1386
    %v1452 = vunpack.c.l.b16 %v1387
    %v1453 = vunpack.c.h.b16 %v1387
    %v1454 = vunpack.c.l.b16 %v1388
    %v1455 = vunpack.c.h.b16 %v1388
    %v1456 = vunpack.c.l.b16 %v1389
    %v1457 = vunpack.c.h.b16 %v1389
    %v1458 = vunpack.c.l.b16 %v1390
    %v1459 = vunpack.c.h.b16 %v1390
    %v1460 = vunpack.c.l.b16 %v1391
    %v1461 = vunpack.c.h.b16 %v1391
    %v1462 = vunpack.c.l.b16 %v1392
    %v1463 = vunpack.c.h.b16 %v1392
    %v1464 = vunpack.c.l.b16 %v1393
    %v1465 = vunpack.c.h.b16 %v1393
    %v1466 = vunpack.c.l.b16 %v1394
    %v1467 = vunpack.c.h.b16 %v1394
    %v1468 = vunpack.c.l.b16 %v1395
    %v1469 = vunpack.c.h.b16 %v1395
    %v1470 = vunpack.c.l.b16 %v1396
    %v1471 = vunpack.c.h.b16 %v1396
    %v1472 = vunpack.c.l.b16 %v1397
    %v1473 = vunpack.c.h.b16 %v1397
    %v1474 = vunpack.c.l.b16 %v1398
    %v1475 = vunpack.c.h.b16 %v1398
    %v1476 = vunpack.c.l.b16 %v1399
    %v1477 = vunpack.c.h.b16 %v1399
    %v1478 = vunpack.c.l.b16 %v1400
    %v1479 = vunpack.c.h.b16 %v1400
    %v1480 = vunpack.c.l.b16 %v1401
    %v1481 = vunpack.c.h.b16 %v1401
    %v1482 = vunpack.c.l.b16 %v1402
    %v1483 = vunpack.c.h.b16 %v1402
    %v1484 = vunpack.c.l.b16 %v1403
    %v1485 = vunpack.c.h.b16 %v1403
    %v1486 = vunpack.c.l.b16 %v1404
    %v1487 = vunpack.c.h.b16 %v1404
    %v1488 = vunpack.c.l.b16 %v1405
    %v1489 = vunpack.c.h.b16 %v1405
    %v1490 = vunpack.c.l.b16 %v1406
    %v1491 = vunpack.c.h.b16 %v1406
    %v1492 = vunpack.c.l.b16 %v1407
    %v1493 = vunpack.c.h.b16 %v1407
    %v1494 = vunpack.c.l.b16 %v1408
    %v1495 = vunpack.c.h.b16 %v1408
    %v1496 = vunpack.c.l.b16 %v1409
    %v1497 = vunpack.c.h.b16 %v1409
    %v1498 = vunpack.c.l.b16 %v1410
    %v1499 = vunpack.c.h.b16 %v1410
    %v1500 = vunpack.c.l.b16 %v1411
    %v1501 = vunpack.c.h.b16 %v1411
    %v1502 = vunpack.c.l.b16 %v1412
    %v1503 = vunpack.c.h.b16 %v1412
    %v1504 = vunpack.c.l.b16 %v1413
    %v1505 = vunpack.c.h.b16 %v1413
    %v1506 = vunpack.c.l.b16 %v1414
    %v1507 = vunpack.c.h.b16 %v1414
    %v1508 = vunpack.c.l.b16 %v1415
    %v1509 = vunpack.c.h.b16 %v1415
    %v1510 = vunpack.c.l.b16 %v1416
    %v1511 = vunpack.c.h.b16 %v1416
    %v1512 = vunpack.c.l.b16 %v1417
    %v1513 = vunpack.c.h.b16 %v1417
    %v1514 = vpack.c.b16 %v1454, %v1450
    %v1515 = vpack.c.b16 %v1455, %v1451
    %v1516 = vpack.c.b16 %v1456, %v1452
    %v1517 = vpack.c.b16 %v1457, %v1453
    %v1518 = vpack.c.b16 %v1462, %v1458
    %v1519 = vpack.c.b16 %v1463, %v1459
    %v1520 = vpack.c.b16 %v1464, %v1460
    %v1521 = vpack.c.b16 %v1465, %v1461
    %v1522 = vpack.c.b16 %v1470, %v1466
    %v1523 = vpack.c.b16 %v1471, %v1467
    %v1524 = vpack.c.b16 %v1472, %v1468
    %v1525 = vpack.c.b16 %v1473, %v1469
    %v1526 = vpack.c.b16 %v1478, %v1474
    %v1527 = vpack.c.b16 %v1479, %v1475
    %v1528 = vpack.c.b16 %v1480, %v1476
    %v1529 = vpack.c.b16 %v1481, %v1477
    %v1530 = vpack.c.b16 %v1486, %v1482
    %v1531 = vpack.c.b16 %v1487, %v1483
    %v1532 = vpack.c.b16 %v1488, %v1484
    %v1533 = vpack.c.b16 %v1489, %v1485
    %v1534 = vpack.c.b16 %v1494, %v1490
    %v1535 = vpack.c.b16 %v1495, %v1491
    %v1536 = vpack.c.b16 %v1496, %v1492
    %v1537 = vpack.c.b16 %v1497, %v1493
    %v1538 = vpack.c.b16 %v1502, %v1498
    %v1539 = vpack.c.b16 %v1503, %v1499
    %v1540 = vpack.c.b16 %v1504, %v1500
    %v1541 = vpack.c.b16 %v1505, %v1501
    %v1542 = vpack.c.b16 %v1510, %v1506
    %v1543 = vpack.c.b16 %v1511, %v1507
    %v1544 = vpack.c.b16 %v1512, %v1508
    %v1545 = vpack.c.b16 %v1513, %v1509
    %1578 = vmatprep.subr.bf16.mxu0 %v1515
    %1579 = vmatpush1.bf16.msra.mxu0 %v1514
    %1580 = vmatprep.subr.bf16.mxu0 %v1519
    %1581 = vmatpush1.bf16.msra.mxu0 %v1518
    %1582 = vmatprep.subr.bf16.mxu0 %v1523
    %1583 = vmatpush1.bf16.msra.mxu0 %v1522
    %1584 = vmatprep.subr.bf16.mxu0 %v1527
    %1585 = vmatpush1.bf16.msra.mxu0 %v1526
    %1586 = vmatprep.subr.bf16.mxu0 %v1531
    %1587 = vmatpush1.bf16.msra.mxu0 %v1530
    %1588 = vmatprep.subr.bf16.mxu0 %v1535
    %1589 = vmatpush1.bf16.msra.mxu0 %v1534
    %1590 = vmatprep.subr.bf16.mxu0 %v1539
    %1591 = vmatpush1.bf16.msra.mxu0 %v1538
    %1592 = vmatprep.subr.bf16.mxu0 %v1543
    %1593 = vmatpush1.bf16.msra.mxu0 %v1542
    %1594 = vmatprep.subr.bf16.mxu0 0
    %1595 = vmatpush1.bf16.msra.mxu0 0
    %1596 = vmatprep.subr.bf16.mxu0 0
    %1597 = vmatpush1.bf16.msra.mxu0 0
    %1598 = vmatprep.subr.bf16.mxu0 0
    %1599 = vmatpush1.bf16.msra.mxu0 0
    %1600 = vmatprep.subr.bf16.mxu0 0
    %1601 = vmatpush1.bf16.msra.mxu0 0
    %1602 = vmatprep.subr.bf16.mxu0 0
    %1603 = vmatpush1.bf16.msra.mxu0 0
    %1604 = vmatprep.subr.bf16.mxu0 0
    %1605 = vmatpush1.bf16.msra.mxu0 0
    %1606 = vmatprep.subr.bf16.mxu0 0
    %1607 = vmatpush1.bf16.msra.mxu0 0
    %1608 = vmatprep.subr.bf16.mxu0 0
    %1609 = vmatpush1.bf16.msra.mxu0 0
    %1610 = vmatprep.mubr.bf16.mxu0 0
    %1611 = vmatmul.mubr.bf16.gmra.mrb[0].mxu0 %v1385
    %v1612 = vpop.f32.mrb[0].mxu0
    %v1613 = vadd.f32 0.0, %v1612
    %v1614 = vpop.f32.mrb[0].mxu0
    %v1615 = vadd.f32 0.0, %v1614
    %v1616 = vpop.f32.mrb[0].mxu0
    %v1617 = vpop.f32.mrb[0].mxu0
    %1618 = vdwg.mxu0
    %1619 = vmatprep.subr.bf16.mxu0 %v1517
    %1620 = vmatpush1.bf16.msra.mxu0 %v1516
    %1621 = vmatprep.subr.bf16.mxu0 %v1521
    %1622 = vmatpush1.bf16.msra.mxu0 %v1520
    %1623 = vmatprep.subr.bf16.mxu0 %v1525
    %1624 = vmatpush1.bf16.msra.mxu0 %v1524
    %1625 = vmatprep.subr.bf16.mxu0 %v1529
    %1626 = vmatpush1.bf16.msra.mxu0 %v1528
    %1627 = vmatprep.subr.bf16.mxu0 %v1533
    %1628 = vmatpush1.bf16.msra.mxu0 %v1532
    %1629 = vmatprep.subr.bf16.mxu0 %v1537
    %1630 = vmatpush1.bf16.msra.mxu0 %v1536
    %1631 = vmatprep.subr.bf16.mxu0 %v1541
    %1632 = vmatpush1.bf16.msra.mxu0 %v1540
    %1633 = vmatprep.subr.bf16.mxu0 %v1545
    %1634 = vmatpush1.bf16.msra.mxu0 %v1544
    %1635 = vmatprep.subr.bf16.mxu0 0
    %1636 = vmatpush1.bf16.msra.mxu0 0
    %1637 = vmatprep.subr.bf16.mxu0 0
    %1638 = vmatpush1.bf16.msra.mxu0 0
    %1639 = vmatprep.subr.bf16.mxu0 0
    %1640 = vmatpush1.bf16.msra.mxu0 0
    %1641 = vmatprep.subr.bf16.mxu0 0
    %1642 = vmatpush1.bf16.msra.mxu0 0
    %1643 = vmatprep.subr.bf16.mxu0 0
    %1644 = vmatpush1.bf16.msra.mxu0 0
    %1645 = vmatprep.subr.bf16.mxu0 0
    %1646 = vmatpush1.bf16.msra.mxu0 0
    %1647 = vmatprep.subr.bf16.mxu0 0
    %1648 = vmatpush1.bf16.msra.mxu0 0
    %1649 = vmatprep.subr.bf16.mxu0 0
    %1650 = vmatpush1.bf16.msra.mxu0 0
    %1651 = vmatprep.mubr.bf16.mxu0 0
    %1652 = vmatmul.mubr.bf16.gmra.mrb[0].mxu0 %v1385
    %v1653 = vpop.f32.mrb[0].mxu0
    %v1654 = vadd.f32 0.0, %v1653
    %v1655 = vpop.f32.mrb[0].mxu0
    %v1656 = vadd.f32 0.0, %v1655
    %v1657 = vpop.f32.mrb[0].mxu0
    %v1658 = vpop.f32.mrb[0].mxu0
    %1659 = vdwg.mxu0
    %v1660 = vadd.f32 %v1381, %v1613
    %v1661 = vadd.f32 %v1382, %v1615
    %v1662 = vadd.f32 %v1383, %v1654
    %v1663 = vadd.f32 %v1384, %v1656
    %v1664 = vsub.f32 0.0, %v1660
    %v1665 = vmul.f32 %v1664, 1.442695
    %v1666 = vpow.pop %v1665
    %v1667 = vadd.f32 %v1666, 1.0
    %v1668 = vrcp.pop %v1667
    %v1669 = vsub.f32 0.0, %v1661
    %v1670 = vmul.f32 %v1669, 1.442695
    %v1671 = vpow.pop %v1670
    %v1672 = vadd.f32 %v1671, 1.0
    %v1673 = vrcp.pop %v1672
    %v1674 = vtanh.pop %v1662
    %v1675 = vsub.f32 0.0, %v1663
    %v1676 = vmul.f32 %v1675, 1.442695
    %v1677 = vpow.pop %v1676
    %v1678 = vadd.f32 %v1677, 1.0
    %v1679 = vrcp.pop %v1678
    %v1680 = vmul.f32 %v1673, %v1377
    %v1681 = vmul.f32 %v1668, %v1674
    %v1682 = vadd.f32 %v1680, %v1681
    %v1683 = vtanh.pop %v1682
    %v1684 = vmul.f32 %v1679, %v1683
    %1685 = vst [vmem:[#allocation2 + $0x18] sm:$0xff] %v1684
    %v1686 = vld [vmem:[#allocation3 + $0x80] sm:$0xff]
    %v1687 = vld [vmem:[#allocation3 + $0x88] sm:$0xff]
    %v1688 = vld [vmem:[#allocation3 + $0x90] sm:$0xff]
    %v1689 = vld [vmem:[#allocation3 + $0x98] sm:$0xff]
    %v1690 = vpack.c.bf16 %v1684, %v1684
    %v1691 = vld [vmem:[#allocation9] sm:$0xff]
    %v1692 = vld [vmem:[#allocation9 + $0x8] sm:$0xff]
    %v1693 = vld [vmem:[#allocation9 + $0x10] sm:$0xff]
    %v1694 = vld [vmem:[#allocation9 + $0x18] sm:$0xff]
    %v1695 = vld [vmem:[#allocation9 + $0x20] sm:$0xff]
    %v1696 = vld [vmem:[#allocation9 + $0x28] sm:$0xff]
    %v1697 = vld [vmem:[#allocation9 + $0x30] sm:$0xff]
    %v1698 = vld [vmem:[#allocation9 + $0x38] sm:$0xff]
    %v1699 = vld [vmem:[#allocation9 + $0x40] sm:$0xff]
    %v1700 = vld [vmem:[#allocation9 + $0x48] sm:$0xff]
    %v1701 = vld [vmem:[#allocation9 + $0x50] sm:$0xff]
    %v1702 = vld [vmem:[#allocation9 + $0x58] sm:$0xff]
    %v1703 = vld [vmem:[#allocation9 + $0x60] sm:$0xff]
    %v1704 = vld [vmem:[#allocation9 + $0x68] sm:$0xff]
    %v1705 = vld [vmem:[#allocation9 + $0x70] sm:$0xff]
    %v1706 = vld [vmem:[#allocation9 + $0x78] sm:$0xff]
    %v1707 = vld [vmem:[#allocation9 + $0x80] sm:$0xff]
    %v1708 = vld [vmem:[#allocation9 + $0x88] sm:$0xff]
    %v1709 = vld [vmem:[#allocation9 + $0x90] sm:$0xff]
    %v1710 = vld [vmem:[#allocation9 + $0x98] sm:$0xff]
    %v1711 = vld [vmem:[#allocation9 + $0xa0] sm:$0xff]
    %v1712 = vld [vmem:[#allocation9 + $0xa8] sm:$0xff]
    %v1713 = vld [vmem:[#allocation9 + $0xb0] sm:$0xff]
    %v1714 = vld [vmem:[#allocation9 + $0xb8] sm:$0xff]
    %v1715 = vld [vmem:[#allocation9 + $0xc0] sm:$0xff]
    %v1716 = vld [vmem:[#allocation9 + $0xc8] sm:$0xff]
    %v1717 = vld [vmem:[#allocation9 + $0xd0] sm:$0xff]
    %v1718 = vld [vmem:[#allocation9 + $0xd8] sm:$0xff]
    %v1719 = vld [vmem:[#allocation9 + $0xe0] sm:$0xff]
    %v1720 = vld [vmem:[#allocation9 + $0xe8] sm:$0xff]
    %v1721 = vld [vmem:[#allocation9 + $0xf0] sm:$0xff]
    %v1722 = vld [vmem:[#allocation9 + $0xf8] sm:$0xff]
    %v1755 = vunpack.c.l.b16 %v1691
    %v1756 = vunpack.c.h.b16 %v1691
    %v1757 = vunpack.c.l.b16 %v1692
    %v1758 = vunpack.c.h.b16 %v1692
    %v1759 = vunpack.c.l.b16 %v1693
    %v1760 = vunpack.c.h.b16 %v1693
    %v1761 = vunpack.c.l.b16 %v1694
    %v1762 = vunpack.c.h.b16 %v1694
    %v1763 = vunpack.c.l.b16 %v1695
    %v1764 = vunpack.c.h.b16 %v1695
    %v1765 = vunpack.c.l.b16 %v1696
    %v1766 = vunpack.c.h.b16 %v1696
    %v1767 = vunpack.c.l.b16 %v1697
    %v1768 = vunpack.c.h.b16 %v1697
    %v1769 = vunpack.c.l.b16 %v1698
    %v1770 = vunpack.c.h.b16 %v1698
    %v1771 = vunpack.c.l.b16 %v1699
    %v1772 = vunpack.c.h.b16 %v1699
    %v1773 = vunpack.c.l.b16 %v1700
    %v1774 = vunpack.c.h.b16 %v1700
    %v1775 = vunpack.c.l.b16 %v1701
    %v1776 = vunpack.c.h.b16 %v1701
    %v1777 = vunpack.c.l.b16 %v1702
    %v1778 = vunpack.c.h.b16 %v1702
    %v1779 = vunpack.c.l.b16 %v1703
    %v1780 = vunpack.c.h.b16 %v1703
    %v1781 = vunpack.c.l.b16 %v1704
    %v1782 = vunpack.c.h.b16 %v1704
    %v1783 = vunpack.c.l.b16 %v1705
    %v1784 = vunpack.c.h.b16 %v1705
    %v1785 = vunpack.c.l.b16 %v1706
    %v1786 = vunpack.c.h.b16 %v1706
    %v1787 = vunpack.c.l.b16 %v1707
    %v1788 = vunpack.c.h.b16 %v1707
    %v1789 = vunpack.c.l.b16 %v1708
    %v1790 = vunpack.c.h.b16 %v1708
    %v1791 = vunpack.c.l.b16 %v1709
    %v1792 = vunpack.c.h.b16 %v1709
    %v1793 = vunpack.c.l.b16 %v1710
    %v1794 = vunpack.c.h.b16 %v1710
    %v1795 = vunpack.c.l.b16 %v1711
    %v1796 = vunpack.c.h.b16 %v1711
    %v1797 = vunpack.c.l.b16 %v1712
    %v1798 = vunpack.c.h.b16 %v1712
    %v1799 = vunpack.c.l.b16 %v1713
    %v1800 = vunpack.c.h.b16 %v1713
    %v1801 = vunpack.c.l.b16 %v1714
    %v1802 = vunpack.c.h.b16 %v1714
    %v1803 = vunpack.c.l.b16 %v1715
    %v1804 = vunpack.c.h.b16 %v1715
    %v1805 = vunpack.c.l.b16 %v1716
    %v1806 = vunpack.c.h.b16 %v1716
    %v1807 = vunpack.c.l.b16 %v1717
    %v1808 = vunpack.c.h.b16 %v1717
    %v1809 = vunpack.c.l.b16 %v1718
    %v1810 = vunpack.c.h.b16 %v1718
    %v1811 = vunpack.c.l.b16 %v1719
    %v1812 = vunpack.c.h.b16 %v1719
    %v1813 = vunpack.c.l.b16 %v1720
    %v1814 = vunpack.c.h.b16 %v1720
    %v1815 = vunpack.c.l.b16 %v1721
    %v1816 = vunpack.c.h.b16 %v1721
    %v1817 = vunpack.c.l.b16 %v1722
    %v1818 = vunpack.c.h.b16 %v1722
    %v1819 = vpack.c.b16 %v1759, %v1755
    %v1820 = vpack.c.b16 %v1760, %v1756
    %v1821 = vpack.c.b16 %v1761, %v1757
    %v1822 = vpack.c.b16 %v1762, %v1758
    %v1823 = vpack.c.b16 %v1767, %v1763
    %v1824 = vpack.c.b16 %v1768, %v1764
    %v1825 = vpack.c.b16 %v1769, %v1765
    %v1826 = vpack.c.b16 %v1770, %v1766
    %v1827 = vpack.c.b16 %v1775, %v1771
    %v1828 = vpack.c.b16 %v1776, %v1772
    %v1829 = vpack.c.b16 %v1777, %v1773
    %v1830 = vpack.c.b16 %v1778, %v1774
    %v1831 = vpack.c.b16 %v1783, %v1779
    %v1832 = vpack.c.b16 %v1784, %v1780
    %v1833 = vpack.c.b16 %v1785, %v1781
    %v1834 = vpack.c.b16 %v1786, %v1782
    %v1835 = vpack.c.b16 %v1791, %v1787
    %v1836 = vpack.c.b16 %v1792, %v1788
    %v1837 = vpack.c.b16 %v1793, %v1789
    %v1838 = vpack.c.b16 %v1794, %v1790
    %v1839 = vpack.c.b16 %v1799, %v1795
    %v1840 = vpack.c.b16 %v1800, %v1796
    %v1841 = vpack.c.b16 %v1801, %v1797
    %v1842 = vpack.c.b16 %v1802, %v1798
    %v1843 = vpack.c.b16 %v1807, %v1803
    %v1844 = vpack.c.b16 %v1808, %v1804
    %v1845 = vpack.c.b16 %v1809, %v1805
    %v1846 = vpack.c.b16 %v1810, %v1806
    %v1847 = vpack.c.b16 %v1815, %v1811
    %v1848 = vpack.c.b16 %v1816, %v1812
    %v1849 = vpack.c.b16 %v1817, %v1813
    %v1850 = vpack.c.b16 %v1818, %v1814
    %1883 = vmatprep.subr.bf16.mxu0 %v1820
    %1884 = vmatpush1.bf16.msra.mxu0 %v1819
    %1885 = vmatprep.subr.bf16.mxu0 %v1824
    %1886 = vmatpush1.bf16.msra.mxu0 %v1823
    %1887 = vmatprep.subr.bf16.mxu0 %v1828
    %1888 = vmatpush1.bf16.msra.mxu0 %v1827
    %1889 = vmatprep.subr.bf16.mxu0 %v1832
    %1890 = vmatpush1.bf16.msra.mxu0 %v1831
    %1891 = vmatprep.subr.bf16.mxu0 %v1836
    %1892 = vmatpush1.bf16.msra.mxu0 %v1835
    %1893 = vmatprep.subr.bf16.mxu0 %v1840
    %1894 = vmatpush1.bf16.msra.mxu0 %v1839
    %1895 = vmatprep.subr.bf16.mxu0 %v1844
    %1896 = vmatpush1.bf16.msra.mxu0 %v1843
    %1897 = vmatprep.subr.bf16.mxu0 %v1848
    %1898 = vmatpush1.bf16.msra.mxu0 %v1847
    %1899 = vmatprep.subr.bf16.mxu0 0
    %1900 = vmatpush1.bf16.msra.mxu0 0
    %1901 = vmatprep.subr.bf16.mxu0 0
    %1902 = vmatpush1.bf16.msra.mxu0 0
    %1903 = vmatprep.subr.bf16.mxu0 0
    %1904 = vmatpush1.bf16.msra.mxu0 0
    %1905 = vmatprep.subr.bf16.mxu0 0
    %1906 = vmatpush1.bf16.msra.mxu0 0
    %1907 = vmatprep.subr.bf16.mxu0 0
    %1908 = vmatpush1.bf16.msra.mxu0 0
    %1909 = vmatprep.subr.bf16.mxu0 0
    %1910 = vmatpush1.bf16.msra.mxu0 0
    %1911 = vmatprep.subr.bf16.mxu0 0
    %1912 = vmatpush1.bf16.msra.mxu0 0
    %1913 = vmatprep.subr.bf16.mxu0 0
    %1914 = vmatpush1.bf16.msra.mxu0 0
    %1915 = vmatprep.mubr.bf16.mxu0 0
    %1916 = vmatmul.mubr.bf16.gmra.mrb[0].mxu0 %v1690
    %v1917 = vpop.f32.mrb[0].mxu0
    %v1918 = vadd.f32 0.0, %v1917
    %v1919 = vpop.f32.mrb[0].mxu0
    %v1920 = vadd.f32 0.0, %v1919
    %v1921 = vpop.f32.mrb[0].mxu0
    %v1922 = vpop.f32.mrb[0].mxu0
    %1923 = vdwg.mxu0
    %1924 = vmatprep.subr.bf16.mxu0 %v1822
    %1925 = vmatpush1.bf16.msra.mxu0 %v1821
    %1926 = vmatprep.subr.bf16.mxu0 %v1826
    %1927 = vmatpush1.bf16.msra.mxu0 %v1825
    %1928 = vmatprep.subr.bf16.mxu0 %v1830
    %1929 = vmatpush1.bf16.msra.mxu0 %v1829
    %1930 = vmatprep.subr.bf16.mxu0 %v1834
    %1931 = vmatpush1.bf16.msra.mxu0 %v1833
    %1932 = vmatprep.subr.bf16.mxu0 %v1838
    %1933 = vmatpush1.bf16.msra.mxu0 %v1837
    %1934 = vmatprep.subr.bf16.mxu0 %v1842
    %1935 = vmatpush1.bf16.msra.mxu0 %v1841
    %1936 = vmatprep.subr.bf16.mxu0 %v1846
    %1937 = vmatpush1.bf16.msra.mxu0 %v1845
    %1938 = vmatprep.subr.bf16.mxu0 %v1850
    %1939 = vmatpush1.bf16.msra.mxu0 %v1849
    %1940 = vmatprep.subr.bf16.mxu0 0
    %1941 = vmatpush1.bf16.msra.mxu0 0
    %1942 = vmatprep.subr.bf16.mxu0 0
    %1943 = vmatpush1.bf16.msra.mxu0 0
    %1944 = vmatprep.subr.bf16.mxu0 0
    %1945 = vmatpush1.bf16.msra.mxu0 0
    %1946 = vmatprep.subr.bf16.mxu0 0
    %1947 = vmatpush1.bf16.msra.mxu0 0
    %1948 = vmatprep.subr.bf16.mxu0 0
    %1949 = vmatpush1.bf16.msra.mxu0 0
    %1950 = vmatprep.subr.bf16.mxu0 0
    %1951 = vmatpush1.bf16.msra.mxu0 0
    %1952 = vmatprep.subr.bf16.mxu0 0
    %1953 = vmatpush1.bf16.msra.mxu0 0
    %1954 = vmatprep.subr.bf16.mxu0 0
    %1955 = vmatpush1.bf16.msra.mxu0 0
    %1956 = vmatprep.mubr.bf16.mxu0 0
    %1957 = vmatmul.mubr.bf16.gmra.mrb[0].mxu0 %v1690
    %v1958 = vpop.f32.mrb[0].mxu0
    %v1959 = vadd.f32 0.0, %v1958
    %v1960 = vpop.f32.mrb[0].mxu0
    %v1961 = vadd.f32 0.0, %v1960
    %v1962 = vpop.f32.mrb[0].mxu0
    %v1963 = vpop.f32.mrb[0].mxu0
    %1964 = vdwg.mxu0
    %v1965 = vadd.f32 %v1686, %v1918
    %v1966 = vadd.f32 %v1687, %v1920
    %v1967 = vadd.f32 %v1688, %v1959
    %v1968 = vadd.f32 %v1689, %v1961
    %v1969 = vsub.f32 0.0, %v1965
    %v1970 = vmul.f32 %v1969, 1.442695
    %v1971 = vpow.pop %v1970
    %v1972 = vadd.f32 %v1971, 1.0
    %v1973 = vrcp.pop %v1972
    %v1974 = vsub.f32 0.0, %v1966
    %v1975 = vmul.f32 %v1974, 1.442695
    %v1976 = vpow.pop %v1975
    %v1977 = vadd.f32 %v1976, 1.0
    %v1978 = vrcp.pop %v1977
    %v1979 = vtanh.pop %v1967
    %v1980 = vsub.f32 0.0, %v1968
    %v1981 = vmul.f32 %v1980, 1.442695
    %v1982 = vpow.pop %v1981
    %v1983 = vadd.f32 %v1982, 1.0
    %v1984 = vrcp.pop %v1983
    %v1985 = vmul.f32 %v1978, %v1682
    %v1986 = vmul.f32 %v1973, %v1979
    %v1987 = vadd.f32 %v1985, %v1986
    %v1988 = vtanh.pop %v1987
    %v1989 = vmul.f32 %v1984, %v1988
    %1990 = vst [vmem:[#allocation2 + $0x20] sm:$0xff] %v1989
    %v1991 = vld [vmem:[#allocation3 + $0xa0] sm:$0xff]
    %v1992 = vld [vmem:[#allocation3 + $0xa8] sm:$0xff]
    %v1993 = vld [vmem:[#allocation3 + $0xb0] sm:$0xff]
    %v1994 = vld [vmem:[#allocation3 + $0xb8] sm:$0xff]
    %v1995 = vpack.c.bf16 %v1989, %v1989
    %v1996 = vld [vmem:[#allocation9] sm:$0xff]
    %v1997 = vld [vmem:[#allocation9 + $0x8] sm:$0xff]
    %v1998 = vld [vmem:[#allocation9 + $0x10] sm:$0xff]
    %v1999 = vld [vmem:[#allocation9 + $0x18] sm:$0xff]
    %v2000 = vld [vmem:[#allocation9 + $0x20] sm:$0xff]
    %v2001 = vld [vmem:[#allocation9 + $0x28] sm:$0xff]
    %v2002 = vld [vmem:[#allocation9 + $0x30] sm:$0xff]
    %v2003 = vld [vmem:[#allocation9 + $0x38] sm:$0xff]
    %v2004 = vld [vmem:[#allocation9 + $0x40] sm:$0xff]
    %v2005 = vld [vmem:[#allocation9 + $0x48] sm:$0xff]
    %v2006 = vld [vmem:[#allocation9 + $0x50] sm:$0xff]
    %v2007 = vld [vmem:[#allocation9 + $0x58] sm:$0xff]
    %v2008 = vld [vmem:[#allocation9 + $0x60] sm:$0xff]
    %v2009 = vld [vmem:[#allocation9 + $0x68] sm:$0xff]
    %v2010 = vld [vmem:[#allocation9 + $0x70] sm:$0xff]
    %v2011 = vld [vmem:[#allocation9 + $0x78] sm:$0xff]
    %v2012 = vld [vmem:[#allocation9 + $0x80] sm:$0xff]
    %v2013 = vld [vmem:[#allocation9 + $0x88] sm:$0xff]
    %v2014 = vld [vmem:[#allocation9 + $0x90] sm:$0xff]
    %v2015 = vld [vmem:[#allocation9 + $0x98] sm:$0xff]
    %v2016 = vld [vmem:[#allocation9 + $0xa0] sm:$0xff]
    %v2017 = vld [vmem:[#allocation9 + $0xa8] sm:$0xff]
    %v2018 = vld [vmem:[#allocation9 + $0xb0] sm:$0xff]
    %v2019 = vld [vmem:[#allocation9 + $0xb8] sm:$0xff]
    %v2020 = vld [vmem:[#allocation9 + $0xc0] sm:$0xff]
    %v2021 = vld [vmem:[#allocation9 + $0xc8] sm:$0xff]
    %v2022 = vld [vmem:[#allocation9 + $0xd0] sm:$0xff]
    %v2023 = vld [vmem:[#allocation9 + $0xd8] sm:$0xff]
    %v2024 = vld [vmem:[#allocation9 + $0xe0] sm:$0xff]
    %v2025 = vld [vmem:[#allocation9 + $0xe8] sm:$0xff]
    %v2026 = vld [vmem:[#allocation9 + $0xf0] sm:$0xff]
    %v2027 = vld [vmem:[#allocation9 + $0xf8] sm:$0xff]
    %v2060 = vunpack.c.l.b16 %v1996
    %v2061 = vunpack.c.h.b16 %v1996
    %v2062 = vunpack.c.l.b16 %v1997
    %v2063 = vunpack.c.h.b16 %v1997
    %v2064 = vunpack.c.l.b16 %v1998
    %v2065 = vunpack.c.h.b16 %v1998
    %v2066 = vunpack.c.l.b16 %v1999
    %v2067 = vunpack.c.h.b16 %v1999
    %v2068 = vunpack.c.l.b16 %v2000
    %v2069 = vunpack.c.h.b16 %v2000
    %v2070 = vunpack.c.l.b16 %v2001
    %v2071 = vunpack.c.h.b16 %v2001
    %v2072 = vunpack.c.l.b16 %v2002
    %v2073 = vunpack.c.h.b16 %v2002
    %v2074 = vunpack.c.l.b16 %v2003
    %v2075 = vunpack.c.h.b16 %v2003
    %v2076 = vunpack.c.l.b16 %v2004
    %v2077 = vunpack.c.h.b16 %v2004
    %v2078 = vunpack.c.l.b16 %v2005
    %v2079 = vunpack.c.h.b16 %v2005
    %v2080 = vunpack.c.l.b16 %v2006
    %v2081 = vunpack.c.h.b16 %v2006
    %v2082 = vunpack.c.l.b16 %v2007
    %v2083 = vunpack.c.h.b16 %v2007
    %v2084 = vunpack.c.l.b16 %v2008
    %v2085 = vunpack.c.h.b16 %v2008
    %v2086 = vunpack.c.l.b16 %v2009
    %v2087 = vunpack.c.h.b16 %v2009
    %v2088 = vunpack.c.l.b16 %v2010
    %v2089 = vunpack.c.h.b16 %v2010
    %v2090 = vunpack.c.l.b16 %v2011
    %v2091 = vunpack.c.h.b16 %v2011
    %v2092 = vunpack.c.l.b16 %v2012
    %v2093 = vunpack.c.h.b16 %v2012
    %v2094 = vunpack.c.l.b16 %v2013
    %v2095 = vunpack.c.h.b16 %v2013
    %v2096 = vunpack.c.l.b16 %v2014
    %v2097 = vunpack.c.h.b16 %v2014
    %v2098 = vunpack.c.l.b16 %v2015
    %v2099 = vunpack.c.h.b16 %v2015
    %v2100 = vunpack.c.l.b16 %v2016
    %v2101 = vunpack.c.h.b16 %v2016
    %v2102 = vunpack.c.l.b16 %v2017
    %v2103 = vunpack.c.h.b16 %v2017
    %v2104 = vunpack.c.l.b16 %v2018
    %v2105 = vunpack.c.h.b16 %v2018
    %v2106 = vunpack.c.l.b16 %v2019
    %v2107 = vunpack.c.h.b16 %v2019
    %v2108 = vunpack.c.l.b16 %v2020
    %v2109 = vunpack.c.h.b16 %v2020
    %v2110 = vunpack.c.l.b16 %v2021
    %v2111 = vunpack.c.h.b16 %v2021
    %v2112 = vunpack.c.l.b16 %v2022
    %v2113 = vunpack.c.h.b16 %v2022
    %v2114 = vunpack.c.l.b16 %v2023
    %v2115 = vunpack.c.h.b16 %v2023
    %v2116 = vunpack.c.l.b16 %v2024
    %v2117 = vunpack.c.h.b16 %v2024
    %v2118 = vunpack.c.l.b16 %v2025
    %v2119 = vunpack.c.h.b16 %v2025
    %v2120 = vunpack.c.l.b16 %v2026
    %v2121 = vunpack.c.h.b16 %v2026
    %v2122 = vunpack.c.l.b16 %v2027
    %v2123 = vunpack.c.h.b16 %v2027
    %v2124 = vpack.c.b16 %v2064, %v2060
    %v2125 = vpack.c.b16 %v2065, %v2061
    %v2126 = vpack.c.b16 %v2066, %v2062
    %v2127 = vpack.c.b16 %v2067, %v2063
    %v2128 = vpack.c.b16 %v2072, %v2068
    %v2129 = vpack.c.b16 %v2073, %v2069
    %v2130 = vpack.c.b16 %v2074, %v2070
    %v2131 = vpack.c.b16 %v2075, %v2071
    %v2132 = vpack.c.b16 %v2080, %v2076
    %v2133 = vpack.c.b16 %v2081, %v2077
    %v2134 = vpack.c.b16 %v2082, %v2078
    %v2135 = vpack.c.b16 %v2083, %v2079
    %v2136 = vpack.c.b16 %v2088, %v2084
    %v2137 = vpack.c.b16 %v2089, %v2085
    %v2138 = vpack.c.b16 %v2090, %v2086
    %v2139 = vpack.c.b16 %v2091, %v2087
    %v2140 = vpack.c.b16 %v2096, %v2092
    %v2141 = vpack.c.b16 %v2097, %v2093
    %v2142 = vpack.c.b16 %v2098, %v2094
    %v2143 = vpack.c.b16 %v2099, %v2095
    %v2144 = vpack.c.b16 %v2104, %v2100
    %v2145 = vpack.c.b16 %v2105, %v2101
    %v2146 = vpack.c.b16 %v2106, %v2102
    %v2147 = vpack.c.b16 %v2107, %v2103
    %v2148 = vpack.c.b16 %v2112, %v2108
    %v2149 = vpack.c.b16 %v2113, %v2109
    %v2150 = vpack.c.b16 %v2114, %v2110
    %v2151 = vpack.c.b16 %v2115, %v2111
    %v2152 = vpack.c.b16 %v2120, %v2116
    %v2153 = vpack.c.b16 %v2121, %v2117
    %v2154 = vpack.c.b16 %v2122, %v2118
    %v2155 = vpack.c.b16 %v2123, %v2119
    %2188 = vmatprep.subr.bf16.mxu0 %v2125
    %2189 = vmatpush1.bf16.msra.mxu0 %v2124
    %2190 = vmatprep.subr.bf16.mxu0 %v2129
    %2191 = vmatpush1.bf16.msra.mxu0 %v2128
    %2192 = vmatprep.subr.bf16.mxu0 %v2133
    %2193 = vmatpush1.bf16.msra.mxu0 %v2132
    %2194 = vmatprep.subr.bf16.mxu0 %v2137
    %2195 = vmatpush1.bf16.msra.mxu0 %v2136
    %2196 = vmatprep.subr.bf16.mxu0 %v2141
    %2197 = vmatpush1.bf16.msra.mxu0 %v2140
    %2198 = vmatprep.subr.bf16.mxu0 %v2145
    %2199 = vmatpush1.bf16.msra.mxu0 %v2144
    %2200 = vmatprep.subr.bf16.mxu0 %v2149
    %2201 = vmatpush1.bf16.msra.mxu0 %v2148
    %2202 = vmatprep.subr.bf16.mxu0 %v2153
    %2203 = vmatpush1.bf16.msra.mxu0 %v2152
    %2204 = vmatprep.subr.bf16.mxu0 0
    %2205 = vmatpush1.bf16.msra.mxu0 0
    %2206 = vmatprep.subr.bf16.mxu0 0
    %2207 = vmatpush1.bf16.msra.mxu0 0
    %2208 = vmatprep.subr.bf16.mxu0 0
    %2209 = vmatpush1.bf16.msra.mxu0 0
    %2210 = vmatprep.subr.bf16.mxu0 0
    %2211 = vmatpush1.bf16.msra.mxu0 0
    %2212 = vmatprep.subr.bf16.mxu0 0
    %2213 = vmatpush1.bf16.msra.mxu0 0
    %2214 = vmatprep.subr.bf16.mxu0 0
    %2215 = vmatpush1.bf16.msra.mxu0 0
    %2216 = vmatprep.subr.bf16.mxu0 0
    %2217 = vmatpush1.bf16.msra.mxu0 0
    %2218 = vmatprep.subr.bf16.mxu0 0
    %2219 = vmatpush1.bf16.msra.mxu0 0
    %2220 = vmatprep.mubr.bf16.mxu0 0
    %2221 = vmatmul.mubr.bf16.gmra.mrb[0].mxu0 %v1995
    %v2222 = vpop.f32.mrb[0].mxu0
    %v2223 = vadd.f32 0.0, %v2222
    %v2224 = vpop.f32.mrb[0].mxu0
    %v2225 = vadd.f32 0.0, %v2224
    %v2226 = vpop.f32.mrb[0].mxu0
    %v2227 = vpop.f32.mrb[0].mxu0
    %2228 = vdwg.mxu0
    %2229 = vmatprep.subr.bf16.mxu0 %v2127
    %2230 = vmatpush1.bf16.msra.mxu0 %v2126
    %2231 = vmatprep.subr.bf16.mxu0 %v2131
    %2232 = vmatpush1.bf16.msra.mxu0 %v2130
    %2233 = vmatprep.subr.bf16.mxu0 %v2135
    %2234 = vmatpush1.bf16.msra.mxu0 %v2134
    %2235 = vmatprep.subr.bf16.mxu0 %v2139
    %2236 = vmatpush1.bf16.msra.mxu0 %v2138
    %2237 = vmatprep.subr.bf16.mxu0 %v2143
    %2238 = vmatpush1.bf16.msra.mxu0 %v2142
    %2239 = vmatprep.subr.bf16.mxu0 %v2147
    %2240 = vmatpush1.bf16.msra.mxu0 %v2146
    %2241 = vmatprep.subr.bf16.mxu0 %v2151
    %2242 = vmatpush1.bf16.msra.mxu0 %v2150
    %2243 = vmatprep.subr.bf16.mxu0 %v2155
    %2244 = vmatpush1.bf16.msra.mxu0 %v2154
    %2245 = vmatprep.subr.bf16.mxu0 0
    %2246 = vmatpush1.bf16.msra.mxu0 0
    %2247 = vmatprep.subr.bf16.mxu0 0
    %2248 = vmatpush1.bf16.msra.mxu0 0
    %2249 = vmatprep.subr.bf16.mxu0 0
    %2250 = vmatpush1.bf16.msra.mxu0 0
    %2251 = vmatprep.subr.bf16.mxu0 0
    %2252 = vmatpush1.bf16.msra.mxu0 0
    %2253 = vmatprep.subr.bf16.mxu0 0
    %2254 = vmatpush1.bf16.msra.mxu0 0
    %2255 = vmatprep.subr.bf16.mxu0 0
    %2256 = vmatpush1.bf16.msra.mxu0 0
    %2257 = vmatprep.subr.bf16.mxu0 0
    %2258 = vmatpush1.bf16.msra.mxu0 0
    %2259 = vmatprep.subr.bf16.mxu0 0
    %2260 = vmatpush1.bf16.msra.mxu0 0
    %2261 = vmatprep.mubr.bf16.mxu0 0
    %2262 = vmatmul.mubr.bf16.gmra.mrb[0].mxu0 %v1995
    %v2263 = vpop.f32.mrb[0].mxu0
    %v2264 = vadd.f32 0.0, %v2263
    %v2265 = vpop.f32.mrb[0].mxu0
    %v2266 = vadd.f32 0.0, %v2265
    %v2267 = vpop.f32.mrb[0].mxu0
    %v2268 = vpop.f32.mrb[0].mxu0
    %2269 = vdwg.mxu0
    %v2270 = vadd.f32 %v1991, %v2223
    %v2271 = vadd.f32 %v1992, %v2225
    %v2272 = vadd.f32 %v1993, %v2264
    %v2273 = vadd.f32 %v1994, %v2266
    %v2274 = vsub.f32 0.0, %v2270
    %v2275 = vmul.f32 %v2274, 1.442695
    %v2276 = vpow.pop %v2275
    %v2277 = vadd.f32 %v2276, 1.0
    %v2278 = vrcp.pop %v2277
    %v2279 = vsub.f32 0.0, %v2271
    %v2280 = vmul.f32 %v2279, 1.442695
    %v2281 = vpow.pop %v2280
    %v2282 = vadd.f32 %v2281, 1.0
    %v2283 = vrcp.pop %v2282
    %v2284 = vtanh.pop %v2272
    %v2285 = vsub.f32 0.0, %v2273
    %v2286 = vmul.f32 %v2285, 1.442695
    %v2287 = vpow.pop %v2286
    %v2288 = vadd.f32 %v2287, 1.0
    %v2289 = vrcp.pop %v2288
    %v2290 = vmul.f32 %v2283, %v1987
    %v2291 = vmul.f32 %v2278, %v2284
    %v2292 = vadd.f32 %v2290, %v2291
    %v2293 = vtanh.pop %v2292
    %v2294 = vmul.f32 %v2289, %v2293
    %2295 = vst [vmem:[#allocation2 + $0x28] sm:$0xff] %v2294
    %v2296 = vld [vmem:[#allocation3 + $0xc0] sm:$0xff]
    %v2297 = vld [vmem:[#allocation3 + $0xc8] sm:$0xff]
    %v2298 = vld [vmem:[#allocation3 + $0xd0] sm:$0xff]
    %v2299 = vld [vmem:[#allocation3 + $0xd8] sm:$0xff]
    %v2300 = vpack.c.bf16 %v2294, %v2294
    %v2301 = vld [vmem:[#allocation9] sm:$0xff]
    %v2302 = vld [vmem:[#allocation9 + $0x8] sm:$0xff]
    %v2303 = vld [vmem:[#allocation9 + $0x10] sm:$0xff]
    %v2304 = vld [vmem:[#allocation9 + $0x18] sm:$0xff]
    %v2305 = vld [vmem:[#allocation9 + $0x20] sm:$0xff]
    %v2306 = vld [vmem:[#allocation9 + $0x28] sm:$0xff]
    %v2307 = vld [vmem:[#allocation9 + $0x30] sm:$0xff]
    %v2308 = vld [vmem:[#allocation9 + $0x38] sm:$0xff]
    %v2309 = vld [vmem:[#allocation9 + $0x40] sm:$0xff]
    %v2310 = vld [vmem:[#allocation9 + $0x48] sm:$0xff]
    %v2311 = vld [vmem:[#allocation9 + $0x50] sm:$0xff]
    %v2312 = vld [vmem:[#allocation9 + $0x58] sm:$0xff]
    %v2313 = vld [vmem:[#allocation9 + $0x60] sm:$0xff]
    %v2314 = vld [vmem:[#allocation9 + $0x68] sm:$0xff]
    %v2315 = vld [vmem:[#allocation9 + $0x70] sm:$0xff]
    %v2316 = vld [vmem:[#allocation9 + $0x78] sm:$0xff]
    %v2317 = vld [vmem:[#allocation9 + $0x80] sm:$0xff]
    %v2318 = vld [vmem:[#allocation9 + $0x88] sm:$0xff]
    %v2319 = vld [vmem:[#allocation9 + $0x90] sm:$0xff]
    %v2320 = vld [vmem:[#allocation9 + $0x98] sm:$0xff]
    %v2321 = vld [vmem:[#allocation9 + $0xa0] sm:$0xff]
    %v2322 = vld [vmem:[#allocation9 + $0xa8] sm:$0xff]
    %v2323 = vld [vmem:[#allocation9 + $0xb0] sm:$0xff]
    %v2324 = vld [vmem:[#allocation9 + $0xb8] sm:$0xff]
    %v2325 = vld [vmem:[#allocation9 + $0xc0] sm:$0xff]
    %v2326 = vld [vmem:[#allocation9 + $0xc8] sm:$0xff]
    %v2327 = vld [vmem:[#allocation9 + $0xd0] sm:$0xff]
    %v2328 = vld [vmem:[#allocation9 + $0xd8] sm:$0xff]
    %v2329 = vld [vmem:[#allocation9 + $0xe0] sm:$0xff]
    %v2330 = vld [vmem:[#allocation9 + $0xe8] sm:$0xff]
    %v2331 = vld [vmem:[#allocation9 + $0xf0] sm:$0xff]
    %v2332 = vld [vmem:[#allocation9 + $0xf8] sm:$0xff]
    %v2365 = vunpack.c.l.b16 %v2301
    %v2366 = vunpack.c.h.b16 %v2301
    %v2367 = vunpack.c.l.b16 %v2302
    %v2368 = vunpack.c.h.b16 %v2302
    %v2369 = vunpack.c.l.b16 %v2303
    %v2370 = vunpack.c.h.b16 %v2303
    %v2371 = vunpack.c.l.b16 %v2304
    %v2372 = vunpack.c.h.b16 %v2304
    %v2373 = vunpack.c.l.b16 %v2305
    %v2374 = vunpack.c.h.b16 %v2305
    %v2375 = vunpack.c.l.b16 %v2306
    %v2376 = vunpack.c.h.b16 %v2306
    %v2377 = vunpack.c.l.b16 %v2307
    %v2378 = vunpack.c.h.b16 %v2307
    %v2379 = vunpack.c.l.b16 %v2308
    %v2380 = vunpack.c.h.b16 %v2308
    %v2381 = vunpack.c.l.b16 %v2309
    %v2382 = vunpack.c.h.b16 %v2309
    %v2383 = vunpack.c.l.b16 %v2310
    %v2384 = vunpack.c.h.b16 %v2310
    %v2385 = vunpack.c.l.b16 %v2311
    %v2386 = vunpack.c.h.b16 %v2311
    %v2387 = vunpack.c.l.b16 %v2312
    %v2388 = vunpack.c.h.b16 %v2312
    %v2389 = vunpack.c.l.b16 %v2313
    %v2390 = vunpack.c.h.b16 %v2313
    %v2391 = vunpack.c.l.b16 %v2314
    %v2392 = vunpack.c.h.b16 %v2314
    %v2393 = vunpack.c.l.b16 %v2315
    %v2394 = vunpack.c.h.b16 %v2315
    %v2395 = vunpack.c.l.b16 %v2316
    %v2396 = vunpack.c.h.b16 %v2316
    %v2397 = vunpack.c.l.b16 %v2317
    %v2398 = vunpack.c.h.b16 %v2317
    %v2399 = vunpack.c.l.b16 %v2318
    %v2400 = vunpack.c.h.b16 %v2318
    %v2401 = vunpack.c.l.b16 %v2319
    %v2402 = vunpack.c.h.b16 %v2319
    %v2403 = vunpack.c.l.b16 %v2320
    %v2404 = vunpack.c.h.b16 %v2320
    %v2405 = vunpack.c.l.b16 %v2321
    %v2406 = vunpack.c.h.b16 %v2321
    %v2407 = vunpack.c.l.b16 %v2322
    %v2408 = vunpack.c.h.b16 %v2322
    %v2409 = vunpack.c.l.b16 %v2323
    %v2410 = vunpack.c.h.b16 %v2323
    %v2411 = vunpack.c.l.b16 %v2324
    %v2412 = vunpack.c.h.b16 %v2324
    %v2413 = vunpack.c.l.b16 %v2325
    %v2414 = vunpack.c.h.b16 %v2325
    %v2415 = vunpack.c.l.b16 %v2326
    %v2416 = vunpack.c.h.b16 %v2326
    %v2417 = vunpack.c.l.b16 %v2327
    %v2418 = vunpack.c.h.b16 %v2327
    %v2419 = vunpack.c.l.b16 %v2328
    %v2420 = vunpack.c.h.b16 %v2328
    %v2421 = vunpack.c.l.b16 %v2329
    %v2422 = vunpack.c.h.b16 %v2329
    %v2423 = vunpack.c.l.b16 %v2330
    %v2424 = vunpack.c.h.b16 %v2330
    %v2425 = vunpack.c.l.b16 %v2331
    %v2426 = vunpack.c.h.b16 %v2331
    %v2427 = vunpack.c.l.b16 %v2332
    %v2428 = vunpack.c.h.b16 %v2332
    %v2429 = vpack.c.b16 %v2369, %v2365
    %v2430 = vpack.c.b16 %v2370, %v2366
    %v2431 = vpack.c.b16 %v2371, %v2367
    %v2432 = vpack.c.b16 %v2372, %v2368
    %v2433 = vpack.c.b16 %v2377, %v2373
    %v2434 = vpack.c.b16 %v2378, %v2374
    %v2435 = vpack.c.b16 %v2379, %v2375
    %v2436 = vpack.c.b16 %v2380, %v2376
    %v2437 = vpack.c.b16 %v2385, %v2381
    %v2438 = vpack.c.b16 %v2386, %v2382
    %v2439 = vpack.c.b16 %v2387, %v2383
    %v2440 = vpack.c.b16 %v2388, %v2384
    %v2441 = vpack.c.b16 %v2393, %v2389
    %v2442 = vpack.c.b16 %v2394, %v2390
    %v2443 = vpack.c.b16 %v2395, %v2391
    %v2444 = vpack.c.b16 %v2396, %v2392
    %v2445 = vpack.c.b16 %v2401, %v2397
    %v2446 = vpack.c.b16 %v2402, %v2398
    %v2447 = vpack.c.b16 %v2403, %v2399
    %v2448 = vpack.c.b16 %v2404, %v2400
    %v2449 = vpack.c.b16 %v2409, %v2405
    %v2450 = vpack.c.b16 %v2410, %v2406
    %v2451 = vpack.c.b16 %v2411, %v2407
    %v2452 = vpack.c.b16 %v2412, %v2408
    %v2453 = vpack.c.b16 %v2417, %v2413
    %v2454 = vpack.c.b16 %v2418, %v2414
    %v2455 = vpack.c.b16 %v2419, %v2415
    %v2456 = vpack.c.b16 %v2420, %v2416
    %v2457 = vpack.c.b16 %v2425, %v2421
    %v2458 = vpack.c.b16 %v2426, %v2422
    %v2459 = vpack.c.b16 %v2427, %v2423
    %v2460 = vpack.c.b16 %v2428, %v2424
    %2493 = vmatprep.subr.bf16.mxu0 %v2430
    %2494 = vmatpush1.bf16.msra.mxu0 %v2429
    %2495 = vmatprep.subr.bf16.mxu0 %v2434
    %2496 = vmatpush1.bf16.msra.mxu0 %v2433
    %2497 = vmatprep.subr.bf16.mxu0 %v2438
    %2498 = vmatpush1.bf16.msra.mxu0 %v2437
    %2499 = vmatprep.subr.bf16.mxu0 %v2442
    %2500 = vmatpush1.bf16.msra.mxu0 %v2441
    %2501 = vmatprep.subr.bf16.mxu0 %v2446
    %2502 = vmatpush1.bf16.msra.mxu0 %v2445
    %2503 = vmatprep.subr.bf16.mxu0 %v2450
    %2504 = vmatpush1.bf16.msra.mxu0 %v2449
    %2505 = vmatprep.subr.bf16.mxu0 %v2454
    %2506 = vmatpush1.bf16.msra.mxu0 %v2453
    %2507 = vmatprep.subr.bf16.mxu0 %v2458
    %2508 = vmatpush1.bf16.msra.mxu0 %v2457
    %2509 = vmatprep.subr.bf16.mxu0 0
    %2510 = vmatpush1.bf16.msra.mxu0 0
    %2511 = vmatprep.subr.bf16.mxu0 0
    %2512 = vmatpush1.bf16.msra.mxu0 0
    %2513 = vmatprep.subr.bf16.mxu0 0
    %2514 = vmatpush1.bf16.msra.mxu0 0
    %2515 = vmatprep.subr.bf16.mxu0 0
    %2516 = vmatpush1.bf16.msra.mxu0 0
    %2517 = vmatprep.subr.bf16.mxu0 0
    %2518 = vmatpush1.bf16.msra.mxu0 0
    %2519 = vmatprep.subr.bf16.mxu0 0
    %2520 = vmatpush1.bf16.msra.mxu0 0
    %2521 = vmatprep.subr.bf16.mxu0 0
    %2522 = vmatpush1.bf16.msra.mxu0 0
    %2523 = vmatprep.subr.bf16.mxu0 0
    %2524 = vmatpush1.bf16.msra.mxu0 0
    %2525 = vmatprep.mubr.bf16.mxu0 0
    %2526 = vmatmul.mubr.bf16.gmra.mrb[0].mxu0 %v2300
    %v2527 = vpop.f32.mrb[0].mxu0
    %v2528 = vadd.f32 0.0, %v2527
    %v2529 = vpop.f32.mrb[0].mxu0
    %v2530 = vadd.f32 0.0, %v2529
    %v2531 = vpop.f32.mrb[0].mxu0
    %v2532 = vpop.f32.mrb[0].mxu0
    %2533 = vdwg.mxu0
    %2534 = vmatprep.subr.bf16.mxu0 %v2432
    %2535 = vmatpush1.bf16.msra.mxu0 %v2431
    %2536 = vmatprep.subr.bf16.mxu0 %v2436
    %2537 = vmatpush1.bf16.msra.mxu0 %v2435
    %2538 = vmatprep.subr.bf16.mxu0 %v2440
    %2539 = vmatpush1.bf16.msra.mxu0 %v2439
    %2540 = vmatprep.subr.bf16.mxu0 %v2444
    %2541 = vmatpush1.bf16.msra.mxu0 %v2443
    %2542 = vmatprep.subr.bf16.mxu0 %v2448
    %2543 = vmatpush1.bf16.msra.mxu0 %v2447
    %2544 = vmatprep.subr.bf16.mxu0 %v2452
    %2545 = vmatpush1.bf16.msra.mxu0 %v2451
    %2546 = vmatprep.subr.bf16.mxu0 %v2456
    %2547 = vmatpush1.bf16.msra.mxu0 %v2455
    %2548 = vmatprep.subr.bf16.mxu0 %v2460
    %2549 = vmatpush1.bf16.msra.mxu0 %v2459
    %2550 = vmatprep.subr.bf16.mxu0 0
    %2551 = vmatpush1.bf16.msra.mxu0 0
    %2552 = vmatprep.subr.bf16.mxu0 0
    %2553 = vmatpush1.bf16.msra.mxu0 0
    %2554 = vmatprep.subr.bf16.mxu0 0
    %2555 = vmatpush1.bf16.msra.mxu0 0
    %2556 = vmatprep.subr.bf16.mxu0 0
    %2557 = vmatpush1.bf16.msra.mxu0 0
    %2558 = vmatprep.subr.bf16.mxu0 0
    %2559 = vmatpush1.bf16.msra.mxu0 0
    %2560 = vmatprep.subr.bf16.mxu0 0
    %2561 = vmatpush1.bf16.msra.mxu0 0
    %2562 = vmatprep.subr.bf16.mxu0 0
    %2563 = vmatpush1.bf16.msra.mxu0 0
    %2564 = vmatprep.subr.bf16.mxu0 0
    %2565 = vmatpush1.bf16.msra.mxu0 0
    %2566 = vmatprep.mubr.bf16.mxu0 0
    %2567 = vmatmul.mubr.bf16.gmra.mrb[0].mxu0 %v2300
    %v2568 = vpop.f32.mrb[0].mxu0
    %v2569 = vadd.f32 0.0, %v2568
    %v2570 = vpop.f32.mrb[0].mxu0
    %v2571 = vadd.f32 0.0, %v2570
    %v2572 = vpop.f32.mrb[0].mxu0
    %v2573 = vpop.f32.mrb[0].mxu0
    %2574 = vdwg.mxu0
    %v2575 = vadd.f32 %v2296, %v2528
    %v2576 = vadd.f32 %v2297, %v2530
    %v2577 = vadd.f32 %v2298, %v2569
    %v2578 = vadd.f32 %v2299, %v2571
    %v2579 = vsub.f32 0.0, %v2575
    %v2580 = vmul.f32 %v2579, 1.442695
    %v2581 = vpow.pop %v2580
    %v2582 = vadd.f32 %v2581, 1.0
    %v2583 = vrcp.pop %v2582
    %v2584 = vsub.f32 0.0, %v2576
    %v2585 = vmul.f32 %v2584, 1.442695
    %v2586 = vpow.pop %v2585
    %v2587 = vadd.f32 %v2586, 1.0
    %v2588 = vrcp.pop %v2587
    %v2589 = vtanh.pop %v2577
    %v2590 = vsub.f32 0.0, %v2578
    %v2591 = vmul.f32 %v2590, 1.442695
    %v2592 = vpow.pop %v2591
    %v2593 = vadd.f32 %v2592, 1.0
    %v2594 = vrcp.pop %v2593
    %v2595 = vmul.f32 %v2588, %v2292
    %v2596 = vmul.f32 %v2583, %v2589
    %v2597 = vadd.f32 %v2595, %v2596
    %v2598 = vtanh.pop %v2597
    %v2599 = vmul.f32 %v2594, %v2598
    %2600 = vst [vmem:[#allocation2 + $0x30] sm:$0xff] %v2599
    %v2601 = vld [vmem:[#allocation3 + $0xe0] sm:$0xff]
    %v2602 = vld [vmem:[#allocation3 + $0xe8] sm:$0xff]
    %v2603 = vld [vmem:[#allocation3 + $0xf0] sm:$0xff]
    %v2604 = vld [vmem:[#allocation3 + $0xf8] sm:$0xff]
    %v2605 = vpack.c.bf16 %v2599, %v2599
    %v2606 = vld [vmem:[#allocation9] sm:$0xff]
    %v2607 = vld [vmem:[#allocation9 + $0x8] sm:$0xff]
    %v2608 = vld [vmem:[#allocation9 + $0x10] sm:$0xff]
    %v2609 = vld [vmem:[#allocation9 + $0x18] sm:$0xff]
    %v2610 = vld [vmem:[#allocation9 + $0x20] sm:$0xff]
    %v2611 = vld [vmem:[#allocation9 + $0x28] sm:$0xff]
    %v2612 = vld [vmem:[#allocation9 + $0x30] sm:$0xff]
    %v2613 = vld [vmem:[#allocation9 + $0x38] sm:$0xff]
    %v2614 = vld [vmem:[#allocation9 + $0x40] sm:$0xff]
    %v2615 = vld [vmem:[#allocation9 + $0x48] sm:$0xff]
    %v2616 = vld [vmem:[#allocation9 + $0x50] sm:$0xff]
    %v2617 = vld [vmem:[#allocation9 + $0x58] sm:$0xff]
    %v2618 = vld [vmem:[#allocation9 + $0x60] sm:$0xff]
    %v2619 = vld [vmem:[#allocation9 + $0x68] sm:$0xff]
    %v2620 = vld [vmem:[#allocation9 + $0x70] sm:$0xff]
    %v2621 = vld [vmem:[#allocation9 + $0x78] sm:$0xff]
    %v2622 = vld [vmem:[#allocation9 + $0x80] sm:$0xff]
    %v2623 = vld [vmem:[#allocation9 + $0x88] sm:$0xff]
    %v2624 = vld [vmem:[#allocation9 + $0x90] sm:$0xff]
    %v2625 = vld [vmem:[#allocation9 + $0x98] sm:$0xff]
    %v2626 = vld [vmem:[#allocation9 + $0xa0] sm:$0xff]
    %v2627 = vld [vmem:[#allocation9 + $0xa8] sm:$0xff]
    %v2628 = vld [vmem:[#allocation9 + $0xb0] sm:$0xff]
    %v2629 = vld [vmem:[#allocation9 + $0xb8] sm:$0xff]
    %v2630 = vld [vmem:[#allocation9 + $0xc0] sm:$0xff]
    %v2631 = vld [vmem:[#allocation9 + $0xc8] sm:$0xff]
    %v2632 = vld [vmem:[#allocation9 + $0xd0] sm:$0xff]
    %v2633 = vld [vmem:[#allocation9 + $0xd8] sm:$0xff]
    %v2634 = vld [vmem:[#allocation9 + $0xe0] sm:$0xff]
    %v2635 = vld [vmem:[#allocation9 + $0xe8] sm:$0xff]
    %v2636 = vld [vmem:[#allocation9 + $0xf0] sm:$0xff]
    %v2637 = vld [vmem:[#allocation9 + $0xf8] sm:$0xff]
    %v2670 = vunpack.c.l.b16 %v2606
    %v2671 = vunpack.c.h.b16 %v2606
    %v2672 = vunpack.c.l.b16 %v2607
    %v2673 = vunpack.c.h.b16 %v2607
    %v2674 = vunpack.c.l.b16 %v2608
    %v2675 = vunpack.c.h.b16 %v2608
    %v2676 = vunpack.c.l.b16 %v2609
    %v2677 = vunpack.c.h.b16 %v2609
    %v2678 = vunpack.c.l.b16 %v2610
    %v2679 = vunpack.c.h.b16 %v2610
    %v2680 = vunpack.c.l.b16 %v2611
    %v2681 = vunpack.c.h.b16 %v2611
    %v2682 = vunpack.c.l.b16 %v2612
    %v2683 = vunpack.c.h.b16 %v2612
    %v2684 = vunpack.c.l.b16 %v2613
    %v2685 = vunpack.c.h.b16 %v2613
    %v2686 = vunpack.c.l.b16 %v2614
    %v2687 = vunpack.c.h.b16 %v2614
    %v2688 = vunpack.c.l.b16 %v2615
    %v2689 = vunpack.c.h.b16 %v2615
    %v2690 = vunpack.c.l.b16 %v2616
    %v2691 = vunpack.c.h.b16 %v2616
    %v2692 = vunpack.c.l.b16 %v2617
    %v2693 = vunpack.c.h.b16 %v2617
    %v2694 = vunpack.c.l.b16 %v2618
    %v2695 = vunpack.c.h.b16 %v2618
    %v2696 = vunpack.c.l.b16 %v2619
    %v2697 = vunpack.c.h.b16 %v2619
    %v2698 = vunpack.c.l.b16 %v2620
    %v2699 = vunpack.c.h.b16 %v2620
    %v2700 = vunpack.c.l.b16 %v2621
    %v2701 = vunpack.c.h.b16 %v2621
    %v2702 = vunpack.c.l.b16 %v2622
    %v2703 = vunpack.c.h.b16 %v2622
    %v2704 = vunpack.c.l.b16 %v2623
    %v2705 = vunpack.c.h.b16 %v2623
    %v2706 = vunpack.c.l.b16 %v2624
    %v2707 = vunpack.c.h.b16 %v2624
    %v2708 = vunpack.c.l.b16 %v2625
    %v2709 = vunpack.c.h.b16 %v2625
    %v2710 = vunpack.c.l.b16 %v2626
    %v2711 = vunpack.c.h.b16 %v2626
    %v2712 = vunpack.c.l.b16 %v2627
    %v2713 = vunpack.c.h.b16 %v2627
    %v2714 = vunpack.c.l.b16 %v2628
    %v2715 = vunpack.c.h.b16 %v2628
    %v2716 = vunpack.c.l.b16 %v2629
    %v2717 = vunpack.c.h.b16 %v2629
    %v2718 = vunpack.c.l.b16 %v2630
    %v2719 = vunpack.c.h.b16 %v2630
    %v2720 = vunpack.c.l.b16 %v2631
    %v2721 = vunpack.c.h.b16 %v2631
    %v2722 = vunpack.c.l.b16 %v2632
    %v2723 = vunpack.c.h.b16 %v2632
    %v2724 = vunpack.c.l.b16 %v2633
    %v2725 = vunpack.c.h.b16 %v2633
    %v2726 = vunpack.c.l.b16 %v2634
    %v2727 = vunpack.c.h.b16 %v2634
    %v2728 = vunpack.c.l.b16 %v2635
    %v2729 = vunpack.c.h.b16 %v2635
    %v2730 = vunpack.c.l.b16 %v2636
    %v2731 = vunpack.c.h.b16 %v2636
    %v2732 = vunpack.c.l.b16 %v2637
    %v2733 = vunpack.c.h.b16 %v2637
    %v2734 = vpack.c.b16 %v2674, %v2670
    %v2735 = vpack.c.b16 %v2675, %v2671
    %v2736 = vpack.c.b16 %v2676, %v2672
    %v2737 = vpack.c.b16 %v2677, %v2673
    %v2738 = vpack.c.b16 %v2682, %v2678
    %v2739 = vpack.c.b16 %v2683, %v2679
    %v2740 = vpack.c.b16 %v2684, %v2680
    %v2741 = vpack.c.b16 %v2685, %v2681
    %v2742 = vpack.c.b16 %v2690, %v2686
    %v2743 = vpack.c.b16 %v2691, %v2687
    %v2744 = vpack.c.b16 %v2692, %v2688
    %v2745 = vpack.c.b16 %v2693, %v2689
    %v2746 = vpack.c.b16 %v2698, %v2694
    %v2747 = vpack.c.b16 %v2699, %v2695
    %v2748 = vpack.c.b16 %v2700, %v2696
    %v2749 = vpack.c.b16 %v2701, %v2697
    %v2750 = vpack.c.b16 %v2706, %v2702
    %v2751 = vpack.c.b16 %v2707, %v2703
    %v2752 = vpack.c.b16 %v2708, %v2704
    %v2753 = vpack.c.b16 %v2709, %v2705
    %v2754 = vpack.c.b16 %v2714, %v2710
    %v2755 = vpack.c.b16 %v2715, %v2711
    %v2756 = vpack.c.b16 %v2716, %v2712
    %v2757 = vpack.c.b16 %v2717, %v2713
    %v2758 = vpack.c.b16 %v2722, %v2718
    %v2759 = vpack.c.b16 %v2723, %v2719
    %v2760 = vpack.c.b16 %v2724, %v2720
    %v2761 = vpack.c.b16 %v2725, %v2721
    %v2762 = vpack.c.b16 %v2730, %v2726
    %v2763 = vpack.c.b16 %v2731, %v2727
    %v2764 = vpack.c.b16 %v2732, %v2728
    %v2765 = vpack.c.b16 %v2733, %v2729
    %2798 = vmatprep.subr.bf16.mxu0 %v2735
    %2799 = vmatpush1.bf16.msra.mxu0 %v2734
    %2800 = vmatprep.subr.bf16.mxu0 %v2739
    %2801 = vmatpush1.bf16.msra.mxu0 %v2738
    %2802 = vmatprep.subr.bf16.mxu0 %v2743
    %2803 = vmatpush1.bf16.msra.mxu0 %v2742
    %2804 = vmatprep.subr.bf16.mxu0 %v2747
    %2805 = vmatpush1.bf16.msra.mxu0 %v2746
    %2806 = vmatprep.subr.bf16.mxu0 %v2751
    %2807 = vmatpush1.bf16.msra.mxu0 %v2750
    %2808 = vmatprep.subr.bf16.mxu0 %v2755
    %2809 = vmatpush1.bf16.msra.mxu0 %v2754
    %2810 = vmatprep.subr.bf16.mxu0 %v2759
    %2811 = vmatpush1.bf16.msra.mxu0 %v2758
    %2812 = vmatprep.subr.bf16.mxu0 %v2763
    %2813 = vmatpush1.bf16.msra.mxu0 %v2762
    %2814 = vmatprep.subr.bf16.mxu0 0
    %2815 = vmatpush1.bf16.msra.mxu0 0
    %2816 = vmatprep.subr.bf16.mxu0 0
    %2817 = vmatpush1.bf16.msra.mxu0 0
    %2818 = vmatprep.subr.bf16.mxu0 0
    %2819 = vmatpush1.bf16.msra.mxu0 0
    %2820 = vmatprep.subr.bf16.mxu0 0
    %2821 = vmatpush1.bf16.msra.mxu0 0
    %2822 = vmatprep.subr.bf16.mxu0 0
    %2823 = vmatpush1.bf16.msra.mxu0 0
    %2824 = vmatprep.subr.bf16.mxu0 0
    %2825 = vmatpush1.bf16.msra.mxu0 0
    %2826 = vmatprep.subr.bf16.mxu0 0
    %2827 = vmatpush1.bf16.msra.mxu0 0
    %2828 = vmatprep.subr.bf16.mxu0 0
    %2829 = vmatpush1.bf16.msra.mxu0 0
    %2830 = vmatprep.mubr.bf16.mxu0 0
    %2831 = vmatmul.mubr.bf16.gmra.mrb[0].mxu0 %v2605
    %v2832 = vpop.f32.mrb[0].mxu0
    %v2833 = vadd.f32 0.0, %v2832
    %v2834 = vpop.f32.mrb[0].mxu0
    %v2835 = vadd.f32 0.0, %v2834
    %v2836 = vpop.f32.mrb[0].mxu0
    %v2837 = vpop.f32.mrb[0].mxu0
    %2838 = vdwg.mxu0
    %2839 = vmatprep.subr.bf16.mxu0 %v2737
    %2840 = vmatpush1.bf16.msra.mxu0 %v2736
    %2841 = vmatprep.subr.bf16.mxu0 %v2741
    %2842 = vmatpush1.bf16.msra.mxu0 %v2740
    %2843 = vmatprep.subr.bf16.mxu0 %v2745
    %2844 = vmatpush1.bf16.msra.mxu0 %v2744
    %2845 = vmatprep.subr.bf16.mxu0 %v2749
    %2846 = vmatpush1.bf16.msra.mxu0 %v2748
    %2847 = vmatprep.subr.bf16.mxu0 %v2753
    %2848 = vmatpush1.bf16.msra.mxu0 %v2752
    %2849 = vmatprep.subr.bf16.mxu0 %v2757
    %2850 = vmatpush1.bf16.msra.mxu0 %v2756
    %2851 = vmatprep.subr.bf16.mxu0 %v2761
    %2852 = vmatpush1.bf16.msra.mxu0 %v2760
    %2853 = vmatprep.subr.bf16.mxu0 %v2765
    %2854 = vmatpush1.bf16.msra.mxu0 %v2764
    %2855 = vmatprep.subr.bf16.mxu0 0
    %2856 = vmatpush1.bf16.msra.mxu0 0
    %2857 = vmatprep.subr.bf16.mxu0 0
    %2858 = vmatpush1.bf16.msra.mxu0 0
    %2859 = vmatprep.subr.bf16.mxu0 0
    %2860 = vmatpush1.bf16.msra.mxu0 0
    %2861 = vmatprep.subr.bf16.mxu0 0
    %2862 = vmatpush1.bf16.msra.mxu0 0
    %2863 = vmatprep.subr.bf16.mxu0 0
    %2864 = vmatpush1.bf16.msra.mxu0 0
    %2865 = vmatprep.subr.bf16.mxu0 0
    %2866 = vmatpush1.bf16.msra.mxu0 0
    %2867 = vmatprep.subr.bf16.mxu0 0
    %2868 = vmatpush1.bf16.msra.mxu0 0
    %2869 = vmatprep.subr.bf16.mxu0 0
    %2870 = vmatpush1.bf16.msra.mxu0 0
    %2871 = vmatprep.mubr.bf16.mxu0 0
    %2872 = vmatmul.mubr.bf16.gmra.mrb[0].mxu0 %v2605
    %v2873 = vpop.f32.mrb[0].mxu0
    %v2874 = vadd.f32 0.0, %v2873
    %v2875 = vpop.f32.mrb[0].mxu0
    %v2876 = vadd.f32 0.0, %v2875
    %v2877 = vpop.f32.mrb[0].mxu0
    %v2878 = vpop.f32.mrb[0].mxu0
    %2879 = vdwg.mxu0
    %v2880 = vadd.f32 %v2601, %v2833
    %v2881 = vadd.f32 %v2602, %v2835
    %v2882 = vadd.f32 %v2603, %v2874
    %v2883 = vadd.f32 %v2604, %v2876
    %v2884 = vsub.f32 0.0, %v2880
    %v2885 = vmul.f32 %v2884, 1.442695
    %v2886 = vpow.pop %v2885
    %v2887 = vadd.f32 %v2886, 1.0
    %v2888 = vrcp.pop %v2887
    %v2889 = vsub.f32 0.0, %v2881
    %v2890 = vmul.f32 %v2889, 1.442695
    %v2891 = vpow.pop %v2890
    %v2892 = vadd.f32 %v2891, 1.0
    %v2893 = vrcp.pop %v2892
    %v2894 = vtanh.pop %v2882
    %v2895 = vsub.f32 0.0, %v2883
    %v2896 = vmul.f32 %v2895, 1.442695
    %v2897 = vpow.pop %v2896
    %v2898 = vadd.f32 %v2897, 1.0
    %v2899 = vrcp.pop %v2898
    %v2900 = vmul.f32 %v2893, %v2597
    %v2901 = vmul.f32 %v2888, %v2894
    %v2902 = vadd.f32 %v2900, %v2901
    %v2903 = vtanh.pop %v2902
    %v2904 = vmul.f32 %v2899, %v2903
    %2905 = vst [vmem:[#allocation2 + $0x38] sm:$0xff] %v2904
    %2906 = vst [vmem:[#allocation10] sm:$0xff] %v2904
    %2907 = vst [vmem:[#allocation11] sm:$0xff] %v2902
    %v2908 = vld [vmem:[#allocation2] sm:$0xff]
    %v2909 = vld [vmem:[#allocation2 + $0x8] sm:$0xff]
    %v2910 = vld [vmem:[#allocation2 + $0x10] sm:$0xff]
    %v2911 = vld [vmem:[#allocation2 + $0x18] sm:$0xff]
    %v2912 = vld [vmem:[#allocation2 + $0x20] sm:$0xff]
    %v2913 = vld [vmem:[#allocation2 + $0x28] sm:$0xff]
    %v2914 = vld [vmem:[#allocation2 + $0x30] sm:$0xff]
    %v2915 = vld [vmem:[#allocation2 + $0x38] sm:$0xff]
    %v2916 = vpack.c.bf16 %v2909, %v2908
    %v2917 = vpack.c.bf16 %v2911, %v2910
    %v2918 = vpack.c.bf16 %v2913, %v2912
    %v2919 = vpack.c.bf16 %v2915, %v2914
    %s2920 = scalar_lea.vmem [#allocation7], 256
    %v2921 = vld [vmem:[%s2920] sm:$0xff]
    %v2922 = vld [vmem:[%s2920 + $0x8] sm:$0xff]
    %v2923 = vld [vmem:[%s2920 + $0x10] sm:$0xff]
    %v2924 = vld [vmem:[%s2920 + $0x18] sm:$0xff]
    %v2925 = vld [vmem:[%s2920 + $0x20] sm:$0xff]
    %v2926 = vld [vmem:[%s2920 + $0x28] sm:$0xff]
    %v2927 = vld [vmem:[%s2920 + $0x30] sm:$0xff]
    %v2928 = vld [vmem:[%s2920 + $0x38] sm:$0xff]
    %v2929 = vld [vmem:[%s2920 + $0x40] sm:$0xff]
    %v2930 = vld [vmem:[%s2920 + $0x48] sm:$0xff]
    %v2931 = vld [vmem:[%s2920 + $0x50] sm:$0xff]
    %v2932 = vld [vmem:[%s2920 + $0x58] sm:$0xff]
    %v2933 = vld [vmem:[%s2920 + $0x60] sm:$0xff]
    %v2934 = vld [vmem:[%s2920 + $0x68] sm:$0xff]
    %v2935 = vld [vmem:[%s2920 + $0x70] sm:$0xff]
    %v2936 = vld [vmem:[%s2920 + $0x78] sm:$0xff]
    %v2937 = vld [vmem:[%s2920 + $0x80] sm:$0xff]
    %v2938 = vld [vmem:[%s2920 + $0x88] sm:$0xff]
    %v2939 = vld [vmem:[%s2920 + $0x90] sm:$0xff]
    %v2940 = vld [vmem:[%s2920 + $0x98] sm:$0xff]
    %v2941 = vld [vmem:[%s2920 + $0xa0] sm:$0xff]
    %v2942 = vld [vmem:[%s2920 + $0xa8] sm:$0xff]
    %v2943 = vld [vmem:[%s2920 + $0xb0] sm:$0xff]
    %v2944 = vld [vmem:[%s2920 + $0xb8] sm:$0xff]
    %v2945 = vld [vmem:[%s2920 + $0xc0] sm:$0xff]
    %v2946 = vld [vmem:[%s2920 + $0xc8] sm:$0xff]
    %v2947 = vld [vmem:[%s2920 + $0xd0] sm:$0xff]
    %v2948 = vld [vmem:[%s2920 + $0xd8] sm:$0xff]
    %v2949 = vld [vmem:[%s2920 + $0xe0] sm:$0xff]
    %v2950 = vld [vmem:[%s2920 + $0xe8] sm:$0xff]
    %v2951 = vld [vmem:[%s2920 + $0xf0] sm:$0xff]
    %v2952 = vld [vmem:[%s2920 + $0xf8] sm:$0xff]
    %s2953 = scalar_lea.vmem %s3, 4
    %v2954 = vld [vmem:[%s2953] sm:$0xf]
    %v2956 = vlaneseq
    %v2957 = vshrl.u32 %v2956, 7
    %v2958 = vsub.s32 0, %v2957
    %v2959 = vrot.slane %v2954, %v2958
    %v2960 = vlaneseq
    %v2961 = vshrl.u32 %v2960, 7
    %v2962 = vsub.s32 1, %v2961
    %v2963 = vrot.slane %v2954, %v2962
    %v2964 = vlaneseq
    %v2965 = vshrl.u32 %v2964, 7
    %v2966 = vsub.s32 2, %v2965
    %v2967 = vrot.slane %v2954, %v2966
    %v2968 = vlaneseq
    %v2969 = vshrl.u32 %v2968, 7
    %v2970 = vsub.s32 3, %v2969
    %v2971 = vrot.slane %v2954, %v2970
    %v3008 = vunpack.c.l.b16 %v2921
    %v3009 = vunpack.c.h.b16 %v2921
    %v3010 = vunpack.c.l.b16 %v2922
    %v3011 = vunpack.c.h.b16 %v2922
    %v3012 = vunpack.c.l.b16 %v2923
    %v3013 = vunpack.c.h.b16 %v2923
    %v3014 = vunpack.c.l.b16 %v2924
    %v3015 = vunpack.c.h.b16 %v2924
    %v3016 = vunpack.c.l.b16 %v2925
    %v3017 = vunpack.c.h.b16 %v2925
    %v3018 = vunpack.c.l.b16 %v2926
    %v3019 = vunpack.c.h.b16 %v2926
    %v3020 = vunpack.c.l.b16 %v2927
    %v3021 = vunpack.c.h.b16 %v2927
    %v3022 = vunpack.c.l.b16 %v2928
    %v3023 = vunpack.c.h.b16 %v2928
    %v3024 = vunpack.c.l.b16 %v2929
    %v3025 = vunpack.c.h.b16 %v2929
    %v3026 = vunpack.c.l.b16 %v2930
    %v3027 = vunpack.c.h.b16 %v2930
    %v3028 = vunpack.c.l.b16 %v2931
    %v3029 = vunpack.c.h.b16 %v2931
    %v3030 = vunpack.c.l.b16 %v2932
    %v3031 = vunpack.c.h.b16 %v2932
    %v3032 = vunpack.c.l.b16 %v2933
    %v3033 = vunpack.c.h.b16 %v2933
    %v3034 = vunpack.c.l.b16 %v2934
    %v3035 = vunpack.c.h.b16 %v2934
    %v3036 = vunpack.c.l.b16 %v2935
    %v3037 = vunpack.c.h.b16 %v2935
    %v3038 = vunpack.c.l.b16 %v2936
    %v3039 = vunpack.c.h.b16 %v2936
    %v3040 = vunpack.c.l.b16 %v2937
    %v3041 = vunpack.c.h.b16 %v2937
    %v3042 = vunpack.c.l.b16 %v2938
    %v3043 = vunpack.c.h.b16 %v2938
    %v3044 = vunpack.c.l.b16 %v2939
    %v3045 = vunpack.c.h.b16 %v2939
    %v3046 = vunpack.c.l.b16 %v2940
    %v3047 = vunpack.c.h.b16 %v2940
    %v3048 = vunpack.c.l.b16 %v2941
    %v3049 = vunpack.c.h.b16 %v2941
    %v3050 = vunpack.c.l.b16 %v2942
    %v3051 = vunpack.c.h.b16 %v2942
    %v3052 = vunpack.c.l.b16 %v2943
    %v3053 = vunpack.c.h.b16 %v2943
    %v3054 = vunpack.c.l.b16 %v2944
    %v3055 = vunpack.c.h.b16 %v2944
    %v3056 = vunpack.c.l.b16 %v2945
    %v3057 = vunpack.c.h.b16 %v2945
    %v3058 = vunpack.c.l.b16 %v2946
    %v3059 = vunpack.c.h.b16 %v2946
    %v3060 = vunpack.c.l.b16 %v2947
    %v3061 = vunpack.c.h.b16 %v2947
    %v3062 = vunpack.c.l.b16 %v2948
    %v3063 = vunpack.c.h.b16 %v2948
    %v3064 = vunpack.c.l.b16 %v2949
    %v3065 = vunpack.c.h.b16 %v2949
    %v3066 = vunpack.c.l.b16 %v2950
    %v3067 = vunpack.c.h.b16 %v2950
    %v3068 = vunpack.c.l.b16 %v2951
    %v3069 = vunpack.c.h.b16 %v2951
    %v3070 = vunpack.c.l.b16 %v2952
    %v3071 = vunpack.c.h.b16 %v2952
    %v3072 = vpack.c.b16 %v3012, %v3008
    %v3073 = vpack.c.b16 %v3013, %v3009
    %v3074 = vpack.c.b16 %v3014, %v3010
    %v3075 = vpack.c.b16 %v3015, %v3011
    %v3076 = vpack.c.b16 %v3020, %v3016
    %v3077 = vpack.c.b16 %v3021, %v3017
    %v3078 = vpack.c.b16 %v3022, %v3018
    %v3079 = vpack.c.b16 %v3023, %v3019
    %v3080 = vpack.c.b16 %v3028, %v3024
    %v3081 = vpack.c.b16 %v3029, %v3025
    %v3082 = vpack.c.b16 %v3030, %v3026
    %v3083 = vpack.c.b16 %v3031, %v3027
    %v3084 = vpack.c.b16 %v3036, %v3032
    %v3085 = vpack.c.b16 %v3037, %v3033
    %v3086 = vpack.c.b16 %v3038, %v3034
    %v3087 = vpack.c.b16 %v3039, %v3035
    %v3088 = vpack.c.b16 %v3044, %v3040
    %v3089 = vpack.c.b16 %v3045, %v3041
    %v3090 = vpack.c.b16 %v3046, %v3042
    %v3091 = vpack.c.b16 %v3047, %v3043
    %v3092 = vpack.c.b16 %v3052, %v3048
    %v3093 = vpack.c.b16 %v3053, %v3049
    %v3094 = vpack.c.b16 %v3054, %v3050
    %v3095 = vpack.c.b16 %v3055, %v3051
    %v3096 = vpack.c.b16 %v3060, %v3056
    %v3097 = vpack.c.b16 %v3061, %v3057
    %v3098 = vpack.c.b16 %v3062, %v3058
    %v3099 = vpack.c.b16 %v3063, %v3059
    %v3100 = vpack.c.b16 %v3068, %v3064
    %v3101 = vpack.c.b16 %v3069, %v3065
    %v3102 = vpack.c.b16 %v3070, %v3066
    %v3103 = vpack.c.b16 %v3071, %v3067
    %3136 = vmatprep.subr.bf16.mxu0 %v3073
    %3137 = vmatpush1.bf16.msra.mxu0 %v3072
    %3138 = vmatprep.subr.bf16.mxu0 %v3077
    %3139 = vmatpush1.bf16.msra.mxu0 %v3076
    %3140 = vmatprep.subr.bf16.mxu0 %v3081
    %3141 = vmatpush1.bf16.msra.mxu0 %v3080
    %3142 = vmatprep.subr.bf16.mxu0 %v3085
    %3143 = vmatpush1.bf16.msra.mxu0 %v3084
    %3144 = vmatprep.subr.bf16.mxu0 %v3089
    %3145 = vmatpush1.bf16.msra.mxu0 %v3088
    %3146 = vmatprep.subr.bf16.mxu0 %v3093
    %3147 = vmatpush1.bf16.msra.mxu0 %v3092
    %3148 = vmatprep.subr.bf16.mxu0 %v3097
    %3149 = vmatpush1.bf16.msra.mxu0 %v3096
    %3150 = vmatprep.subr.bf16.mxu0 %v3101
    %3151 = vmatpush1.bf16.msra.mxu0 %v3100
    %3152 = vmatprep.subr.bf16.mxu0 0
    %3153 = vmatpush1.bf16.msra.mxu0 0
    %3154 = vmatprep.subr.bf16.mxu0 0
    %3155 = vmatpush1.bf16.msra.mxu0 0
    %3156 = vmatprep.subr.bf16.mxu0 0
    %3157 = vmatpush1.bf16.msra.mxu0 0
    %3158 = vmatprep.subr.bf16.mxu0 0
    %3159 = vmatpush1.bf16.msra.mxu0 0
    %3160 = vmatprep.subr.bf16.mxu0 0
    %3161 = vmatpush1.bf16.msra.mxu0 0
    %3162 = vmatprep.subr.bf16.mxu0 0
    %3163 = vmatpush1.bf16.msra.mxu0 0
    %3164 = vmatprep.subr.bf16.mxu0 0
    %3165 = vmatpush1.bf16.msra.mxu0 0
    %3166 = vmatprep.subr.bf16.mxu0 0
    %3167 = vmatpush1.bf16.msra.mxu0 0
    %3168 = vmatprep.mubr.bf16.mxu0 0
    %3169 = vmatmul.mubr.bf16.gmra.mrb[0].mxu0 %v2916
    %v3170 = vpop.f32.mrb[0].mxu0
    %v3171 = vadd.f32 %v2959, %v3170
    %v3172 = vpop.f32.mrb[0].mxu0
    %v3173 = vadd.f32 %v2963, %v3172
    %v3174 = vpop.f32.mrb[0].mxu0
    %v3175 = vadd.f32 %v2959, %v3174
    %v3176 = vpop.f32.mrb[0].mxu0
    %v3177 = vadd.f32 %v2963, %v3176
    %3178 = vmatprep.mubr.bf16.mxu0 0
    %3179 = vmatmul.mubr.bf16.gmra.mrb[0].mxu0 %v2917
    %v3180 = vpop.f32.mrb[0].mxu0
    %v3181 = vadd.f32 %v2959, %v3180
    %v3182 = vpop.f32.mrb[0].mxu0
    %v3183 = vadd.f32 %v2963, %v3182
    %v3184 = vpop.f32.mrb[0].mxu0
    %v3185 = vadd.f32 %v2959, %v3184
    %v3186 = vpop.f32.mrb[0].mxu0
    %v3187 = vadd.f32 %v2963, %v3186
    %3188 = vmatprep.mubr.bf16.mxu0 0
    %3189 = vmatmul.mubr.bf16.gmra.mrb[0].mxu0 %v2918
    %v3190 = vpop.f32.mrb[0].mxu0
    %v3191 = vadd.f32 %v2959, %v3190
    %v3192 = vpop.f32.mrb[0].mxu0
    %v3193 = vadd.f32 %v2963, %v3192
    %v3194 = vpop.f32.mrb[0].mxu0
    %v3195 = vadd.f32 %v2959, %v3194
    %v3196 = vpop.f32.mrb[0].mxu0
    %v3197 = vadd.f32 %v2963, %v3196
    %3198 = vmatprep.mubr.bf16.mxu0 0
    %3199 = vmatmul.mubr.bf16.gmra.mrb[0].mxu0 %v2919
    %v3200 = vpop.f32.mrb[0].mxu0
    %v3201 = vadd.f32 %v2959, %v3200
    %v3202 = vpop.f32.mrb[0].mxu0
    %v3203 = vadd.f32 %v2963, %v3202
    %v3204 = vpop.f32.mrb[0].mxu0
    %v3205 = vadd.f32 %v2959, %v3204
    %v3206 = vpop.f32.mrb[0].mxu0
    %v3207 = vadd.f32 %v2963, %v3206
    %3208 = vdwg.mxu0
    %3209 = vmatprep.subr.bf16.mxu0 %v3075
    %3210 = vmatpush1.bf16.msra.mxu0 %v3074
    %3211 = vmatprep.subr.bf16.mxu0 %v3079
    %3212 = vmatpush1.bf16.msra.mxu0 %v3078
    %3213 = vmatprep.subr.bf16.mxu0 %v3083
    %3214 = vmatpush1.bf16.msra.mxu0 %v3082
    %3215 = vmatprep.subr.bf16.mxu0 %v3087
    %3216 = vmatpush1.bf16.msra.mxu0 %v3086
    %3217 = vmatprep.subr.bf16.mxu0 %v3091
    %3218 = vmatpush1.bf16.msra.mxu0 %v3090
    %3219 = vmatprep.subr.bf16.mxu0 %v3095
    %3220 = vmatpush1.bf16.msra.mxu0 %v3094
    %3221 = vmatprep.subr.bf16.mxu0 %v3099
    %3222 = vmatpush1.bf16.msra.mxu0 %v3098
    %3223 = vmatprep.subr.bf16.mxu0 %v3103
    %3224 = vmatpush1.bf16.msra.mxu0 %v3102
    %3225 = vmatprep.subr.bf16.mxu0 0
    %3226 = vmatpush1.bf16.msra.mxu0 0
    %3227 = vmatprep.subr.bf16.mxu0 0
    %3228 = vmatpush1.bf16.msra.mxu0 0
    %3229 = vmatprep.subr.bf16.mxu0 0
    %3230 = vmatpush1.bf16.msra.mxu0 0
    %3231 = vmatprep.subr.bf16.mxu0 0
    %3232 = vmatpush1.bf16.msra.mxu0 0
    %3233 = vmatprep.subr.bf16.mxu0 0
    %3234 = vmatpush1.bf16.msra.mxu0 0
    %3235 = vmatprep.subr.bf16.mxu0 0
    %3236 = vmatpush1.bf16.msra.mxu0 0
    %3237 = vmatprep.subr.bf16.mxu0 0
    %3238 = vmatpush1.bf16.msra.mxu0 0
    %3239 = vmatprep.subr.bf16.mxu0 0
    %3240 = vmatpush1.bf16.msra.mxu0 0
    %3241 = vmatprep.mubr.bf16.mxu0 0
    %3242 = vmatmul.mubr.bf16.gmra.mrb[0].mxu0 %v2916
    %v3243 = vpop.f32.mrb[0].mxu0
    %v3244 = vadd.f32 %v2967, %v3243
    %v3245 = vpop.f32.mrb[0].mxu0
    %v3246 = vadd.f32 %v2971, %v3245
    %v3247 = vpop.f32.mrb[0].mxu0
    %v3248 = vadd.f32 %v2967, %v3247
    %v3249 = vpop.f32.mrb[0].mxu0
    %v3250 = vadd.f32 %v2971, %v3249
    %3251 = vmatprep.mubr.bf16.mxu0 0
    %3252 = vmatmul.mubr.bf16.gmra.mrb[0].mxu0 %v2917
    %v3253 = vpop.f32.mrb[0].mxu0
    %v3254 = vadd.f32 %v2967, %v3253
    %v3255 = vpop.f32.mrb[0].mxu0
    %v3256 = vadd.f32 %v2971, %v3255
    %v3257 = vpop.f32.mrb[0].mxu0
    %v3258 = vadd.f32 %v2967, %v3257
    %v3259 = vpop.f32.mrb[0].mxu0
    %v3260 = vadd.f32 %v2971, %v3259
    %3261 = vmatprep.mubr.bf16.mxu0 0
    %3262 = vmatmul.mubr.bf16.gmra.mrb[0].mxu0 %v2918
    %v3263 = vpop.f32.mrb[0].mxu0
    %v3264 = vadd.f32 %v2967, %v3263
    %v3265 = vpop.f32.mrb[0].mxu0
    %v3266 = vadd.f32 %v2971, %v3265
    %v3267 = vpop.f32.mrb[0].mxu0
    %v3268 = vadd.f32 %v2967, %v3267
    %v3269 = vpop.f32.mrb[0].mxu0
    %v3270 = vadd.f32 %v2971, %v3269
    %3271 = vmatprep.mubr.bf16.mxu0 0
    %3272 = vmatmul.mubr.bf16.gmra.mrb[0].mxu0 %v2919
    %v3273 = vpop.f32.mrb[0].mxu0
    %v3274 = vadd.f32 %v2967, %v3273
    %v3275 = vpop.f32.mrb[0].mxu0
    %v3276 = vadd.f32 %v2971, %v3275
    %v3277 = vpop.f32.mrb[0].mxu0
    %v3278 = vadd.f32 %v2967, %v3277
    %v3279 = vpop.f32.mrb[0].mxu0
    %v3280 = vadd.f32 %v2971, %v3279
    %3281 = vdwg.mxu0
    %3282 = vst [vmem:[#allocation3] sm:$0xff] %v3171
    %3283 = vst [vmem:[#allocation3 + $0x8] sm:$0xff] %v3173
    %3284 = vst [vmem:[#allocation3 + $0x10] sm:$0xff] %v3244
    %3285 = vst [vmem:[#allocation3 + $0x18] sm:$0xff] %v3246
    %3286 = vst [vmem:[#allocation3 + $0x20] sm:$0xff] %v3175
    %3287 = vst [vmem:[#allocation3 + $0x28] sm:$0xff] %v3177
    %3288 = vst [vmem:[#allocation3 + $0x30] sm:$0xff] %v3248
    %3289 = vst [vmem:[#allocation3 + $0x38] sm:$0xff] %v3250
    %3290 = vst [vmem:[#allocation3 + $0x40] sm:$0xff] %v3181
    %3291 = vst [vmem:[#allocation3 + $0x48] sm:$0xff] %v3183
    %3292 = vst [vmem:[#allocation3 + $0x50] sm:$0xff] %v3254
    %3293 = vst [vmem:[#allocation3 + $0x58] sm:$0xff] %v3256
    %3294 = vst [vmem:[#allocation3 + $0x60] sm:$0xff] %v3185
    %3295 = vst [vmem:[#allocation3 + $0x68] sm:$0xff] %v3187
    %3296 = vst [vmem:[#allocation3 + $0x70] sm:$0xff] %v3258
    %3297 = vst [vmem:[#allocation3 + $0x78] sm:$0xff] %v3260
    %3298 = vst [vmem:[#allocation3 + $0x80] sm:$0xff] %v3191
    %3299 = vst [vmem:[#allocation3 + $0x88] sm:$0xff] %v3193
    %3300 = vst [vmem:[#allocation3 + $0x90] sm:$0xff] %v3264
    %3301 = vst [vmem:[#allocation3 + $0x98] sm:$0xff] %v3266
    %3302 = vst [vmem:[#allocation3 + $0xa0] sm:$0xff] %v3195
    %3303 = vst [vmem:[#allocation3 + $0xa8] sm:$0xff] %v3197
    %3304 = vst [vmem:[#allocation3 + $0xb0] sm:$0xff] %v3268
    %3305 = vst [vmem:[#allocation3 + $0xb8] sm:$0xff] %v3270
    %3306 = vst [vmem:[#allocation3 + $0xc0] sm:$0xff] %v3201
    %3307 = vst [vmem:[#allocation3 + $0xc8] sm:$0xff] %v3203
    %3308 = vst [vmem:[#allocation3 + $0xd0] sm:$0xff] %v3274
    %3309 = vst [vmem:[#allocation3 + $0xd8] sm:$0xff] %v3276
    %3310 = vst [vmem:[#allocation3 + $0xe0] sm:$0xff] %v3205
    %3311 = vst [vmem:[#allocation3 + $0xe8] sm:$0xff] %v3207
    %3312 = vst [vmem:[#allocation3 + $0xf0] sm:$0xff] %v3278
    %3313 = vst [vmem:[#allocation3 + $0xf8] sm:$0xff] %v3280
    %v3314 = vld [vmem:[#allocation3] sm:$0xff]
    %v3315 = vld [vmem:[#allocation3 + $0x8] sm:$0xff]
    %v3316 = vld [vmem:[#allocation3 + $0x10] sm:$0xff]
    %v3317 = vld [vmem:[#allocation3 + $0x18] sm:$0xff]
    %s3318 = scalar_lea.vmem [#allocation9], 256
    %v3319 = vld [vmem:[%s3318] sm:$0xff]
    %v3320 = vld [vmem:[%s3318 + $0x8] sm:$0xff]
    %v3321 = vld [vmem:[%s3318 + $0x10] sm:$0xff]
    %v3322 = vld [vmem:[%s3318 + $0x18] sm:$0xff]
    %v3323 = vld [vmem:[%s3318 + $0x20] sm:$0xff]
    %v3324 = vld [vmem:[%s3318 + $0x28] sm:$0xff]
    %v3325 = vld [vmem:[%s3318 + $0x30] sm:$0xff]
    %v3326 = vld [vmem:[%s3318 + $0x38] sm:$0xff]
    %v3327 = vld [vmem:[%s3318 + $0x40] sm:$0xff]
    %v3328 = vld [vmem:[%s3318 + $0x48] sm:$0xff]
    %v3329 = vld [vmem:[%s3318 + $0x50] sm:$0xff]
    %v3330 = vld [vmem:[%s3318 + $0x58] sm:$0xff]
    %v3331 = vld [vmem:[%s3318 + $0x60] sm:$0xff]
    %v3332 = vld [vmem:[%s3318 + $0x68] sm:$0xff]
    %v3333 = vld [vmem:[%s3318 + $0x70] sm:$0xff]
    %v3334 = vld [vmem:[%s3318 + $0x78] sm:$0xff]
    %v3335 = vld [vmem:[%s3318 + $0x80] sm:$0xff]
    %v3336 = vld [vmem:[%s3318 + $0x88] sm:$0xff]
    %v3337 = vld [vmem:[%s3318 + $0x90] sm:$0xff]
    %v3338 = vld [vmem:[%s3318 + $0x98] sm:$0xff]
    %v3339 = vld [vmem:[%s3318 + $0xa0] sm:$0xff]
    %v3340 = vld [vmem:[%s3318 + $0xa8] sm:$0xff]
    %v3341 = vld [vmem:[%s3318 + $0xb0] sm:$0xff]
    %v3342 = vld [vmem:[%s3318 + $0xb8] sm:$0xff]
    %v3343 = vld [vmem:[%s3318 + $0xc0] sm:$0xff]
    %v3344 = vld [vmem:[%s3318 + $0xc8] sm:$0xff]
    %v3345 = vld [vmem:[%s3318 + $0xd0] sm:$0xff]
    %v3346 = vld [vmem:[%s3318 + $0xd8] sm:$0xff]
    %v3347 = vld [vmem:[%s3318 + $0xe0] sm:$0xff]
    %v3348 = vld [vmem:[%s3318 + $0xe8] sm:$0xff]
    %v3349 = vld [vmem:[%s3318 + $0xf0] sm:$0xff]
    %v3350 = vld [vmem:[%s3318 + $0xf8] sm:$0xff]
    %v3383 = vunpack.c.l.b16 %v3319
    %v3384 = vunpack.c.h.b16 %v3319
    %v3385 = vunpack.c.l.b16 %v3320
    %v3386 = vunpack.c.h.b16 %v3320
    %v3387 = vunpack.c.l.b16 %v3321
    %v3388 = vunpack.c.h.b16 %v3321
    %v3389 = vunpack.c.l.b16 %v3322
    %v3390 = vunpack.c.h.b16 %v3322
    %v3391 = vunpack.c.l.b16 %v3323
    %v3392 = vunpack.c.h.b16 %v3323
    %v3393 = vunpack.c.l.b16 %v3324
    %v3394 = vunpack.c.h.b16 %v3324
    %v3395 = vunpack.c.l.b16 %v3325
    %v3396 = vunpack.c.h.b16 %v3325
    %v3397 = vunpack.c.l.b16 %v3326
    %v3398 = vunpack.c.h.b16 %v3326
    %v3399 = vunpack.c.l.b16 %v3327
    %v3400 = vunpack.c.h.b16 %v3327
    %v3401 = vunpack.c.l.b16 %v3328
    %v3402 = vunpack.c.h.b16 %v3328
    %v3403 = vunpack.c.l.b16 %v3329
    %v3404 = vunpack.c.h.b16 %v3329
    %v3405 = vunpack.c.l.b16 %v3330
    %v3406 = vunpack.c.h.b16 %v3330
    %v3407 = vunpack.c.l.b16 %v3331
    %v3408 = vunpack.c.h.b16 %v3331
    %v3409 = vunpack.c.l.b16 %v3332
    %v3410 = vunpack.c.h.b16 %v3332
    %v3411 = vunpack.c.l.b16 %v3333
    %v3412 = vunpack.c.h.b16 %v3333
    %v3413 = vunpack.c.l.b16 %v3334
    %v3414 = vunpack.c.h.b16 %v3334
    %v3415 = vunpack.c.l.b16 %v3335
    %v3416 = vunpack.c.h.b16 %v3335
    %v3417 = vunpack.c.l.b16 %v3336
    %v3418 = vunpack.c.h.b16 %v3336
    %v3419 = vunpack.c.l.b16 %v3337
    %v3420 = vunpack.c.h.b16 %v3337
    %v3421 = vunpack.c.l.b16 %v3338
    %v3422 = vunpack.c.h.b16 %v3338
    %v3423 = vunpack.c.l.b16 %v3339
    %v3424 = vunpack.c.h.b16 %v3339
    %v3425 = vunpack.c.l.b16 %v3340
    %v3426 = vunpack.c.h.b16 %v3340
    %v3427 = vunpack.c.l.b16 %v3341
    %v3428 = vunpack.c.h.b16 %v3341
    %v3429 = vunpack.c.l.b16 %v3342
    %v3430 = vunpack.c.h.b16 %v3342
    %v3431 = vunpack.c.l.b16 %v3343
    %v3432 = vunpack.c.h.b16 %v3343
    %v3433 = vunpack.c.l.b16 %v3344
    %v3434 = vunpack.c.h.b16 %v3344
    %v3435 = vunpack.c.l.b16 %v3345
    %v3436 = vunpack.c.h.b16 %v3345
    %v3437 = vunpack.c.l.b16 %v3346
    %v3438 = vunpack.c.h.b16 %v3346
    %v3439 = vunpack.c.l.b16 %v3347
    %v3440 = vunpack.c.h.b16 %v3347
    %v3441 = vunpack.c.l.b16 %v3348
    %v3442 = vunpack.c.h.b16 %v3348
    %v3443 = vunpack.c.l.b16 %v3349
    %v3444 = vunpack.c.h.b16 %v3349
    %v3445 = vunpack.c.l.b16 %v3350
    %v3446 = vunpack.c.h.b16 %v3350
    %v3447 = vpack.c.b16 %v3387, %v3383
    %v3448 = vpack.c.b16 %v3388, %v3384
    %v3449 = vpack.c.b16 %v3389, %v3385
    %v3450 = vpack.c.b16 %v3390, %v3386
    %v3451 = vpack.c.b16 %v3395, %v3391
    %v3452 = vpack.c.b16 %v3396, %v3392
    %v3453 = vpack.c.b16 %v3397, %v3393
    %v3454 = vpack.c.b16 %v3398, %v3394
    %v3455 = vpack.c.b16 %v3403, %v3399
    %v3456 = vpack.c.b16 %v3404, %v3400
    %v3457 = vpack.c.b16 %v3405, %v3401
    %v3458 = vpack.c.b16 %v3406, %v3402
    %v3459 = vpack.c.b16 %v3411, %v3407
    %v3460 = vpack.c.b16 %v3412, %v3408
    %v3461 = vpack.c.b16 %v3413, %v3409
    %v3462 = vpack.c.b16 %v3414, %v3410
    %v3463 = vpack.c.b16 %v3419, %v3415
    %v3464 = vpack.c.b16 %v3420, %v3416
    %v3465 = vpack.c.b16 %v3421, %v3417
    %v3466 = vpack.c.b16 %v3422, %v3418
    %v3467 = vpack.c.b16 %v3427, %v3423
    %v3468 = vpack.c.b16 %v3428, %v3424
    %v3469 = vpack.c.b16 %v3429, %v3425
    %v3470 = vpack.c.b16 %v3430, %v3426
    %v3471 = vpack.c.b16 %v3435, %v3431
    %v3472 = vpack.c.b16 %v3436, %v3432
    %v3473 = vpack.c.b16 %v3437, %v3433
    %v3474 = vpack.c.b16 %v3438, %v3434
    %v3475 = vpack.c.b16 %v3443, %v3439
    %v3476 = vpack.c.b16 %v3444, %v3440
    %v3477 = vpack.c.b16 %v3445, %v3441
    %v3478 = vpack.c.b16 %v3446, %v3442
    %3511 = vmatprep.subr.bf16.mxu0 %v3448
    %3512 = vmatpush1.bf16.msra.mxu0 %v3447
    %3513 = vmatprep.subr.bf16.mxu0 %v3452
    %3514 = vmatpush1.bf16.msra.mxu0 %v3451
    %3515 = vmatprep.subr.bf16.mxu0 %v3456
    %3516 = vmatpush1.bf16.msra.mxu0 %v3455
    %3517 = vmatprep.subr.bf16.mxu0 %v3460
    %3518 = vmatpush1.bf16.msra.mxu0 %v3459
    %3519 = vmatprep.subr.bf16.mxu0 %v3464
    %3520 = vmatpush1.bf16.msra.mxu0 %v3463
    %3521 = vmatprep.subr.bf16.mxu0 %v3468
    %3522 = vmatpush1.bf16.msra.mxu0 %v3467
    %3523 = vmatprep.subr.bf16.mxu0 %v3472
    %3524 = vmatpush1.bf16.msra.mxu0 %v3471
    %3525 = vmatprep.subr.bf16.mxu0 %v3476
    %3526 = vmatpush1.bf16.msra.mxu0 %v3475
    %3527 = vmatprep.subr.bf16.mxu0 0
    %3528 = vmatpush1.bf16.msra.mxu0 0
    %3529 = vmatprep.subr.bf16.mxu0 0
    %3530 = vmatpush1.bf16.msra.mxu0 0
    %3531 = vmatprep.subr.bf16.mxu0 0
    %3532 = vmatpush1.bf16.msra.mxu0 0
    %3533 = vmatprep.subr.bf16.mxu0 0
    %3534 = vmatpush1.bf16.msra.mxu0 0
    %3535 = vmatprep.subr.bf16.mxu0 0
    %3536 = vmatpush1.bf16.msra.mxu0 0
    %3537 = vmatprep.subr.bf16.mxu0 0
    %3538 = vmatpush1.bf16.msra.mxu0 0
    %3539 = vmatprep.subr.bf16.mxu0 0
    %3540 = vmatpush1.bf16.msra.mxu0 0
    %3541 = vmatprep.subr.bf16.mxu0 0
    %3542 = vmatpush1.bf16.msra.mxu0 0
    %3543 = vmatprep.mubr.bf16.mxu0 0
    %3544 = vmatmul.mubr.bf16.gmra.mrb[0].mxu0 0
    %v3545 = vpop.f32.mrb[0].mxu0
    %v3546 = vadd.f32 0.0, %v3545
    %v3547 = vpop.f32.mrb[0].mxu0
    %v3548 = vadd.f32 0.0, %v3547
    %v3549 = vpop.f32.mrb[0].mxu0
    %v3550 = vpop.f32.mrb[0].mxu0
    %3551 = vdwg.mxu0
    %3552 = vmatprep.subr.bf16.mxu0 %v3450
    %3553 = vmatpush1.bf16.msra.mxu0 %v3449
    %3554 = vmatprep.subr.bf16.mxu0 %v3454
    %3555 = vmatpush1.bf16.msra.mxu0 %v3453
    %3556 = vmatprep.subr.bf16.mxu0 %v3458
    %3557 = vmatpush1.bf16.msra.mxu0 %v3457
    %3558 = vmatprep.subr.bf16.mxu0 %v3462
    %3559 = vmatpush1.bf16.msra.mxu0 %v3461
    %3560 = vmatprep.subr.bf16.mxu0 %v3466
    %3561 = vmatpush1.bf16.msra.mxu0 %v3465
    %3562 = vmatprep.subr.bf16.mxu0 %v3470
    %3563 = vmatpush1.bf16.msra.mxu0 %v3469
    %3564 = vmatprep.subr.bf16.mxu0 %v3474
    %3565 = vmatpush1.bf16.msra.mxu0 %v3473
    %3566 = vmatprep.subr.bf16.mxu0 %v3478
    %3567 = vmatpush1.bf16.msra.mxu0 %v3477
    %3568 = vmatprep.subr.bf16.mxu0 0
    %3569 = vmatpush1.bf16.msra.mxu0 0
    %3570 = vmatprep.subr.bf16.mxu0 0
    %3571 = vmatpush1.bf16.msra.mxu0 0
    %3572 = vmatprep.subr.bf16.mxu0 0
    %3573 = vmatpush1.bf16.msra.mxu0 0
    %3574 = vmatprep.subr.bf16.mxu0 0
    %3575 = vmatpush1.bf16.msra.mxu0 0
    %3576 = vmatprep.subr.bf16.mxu0 0
    %3577 = vmatpush1.bf16.msra.mxu0 0
    %3578 = vmatprep.subr.bf16.mxu0 0
    %3579 = vmatpush1.bf16.msra.mxu0 0
    %3580 = vmatprep.subr.bf16.mxu0 0
    %3581 = vmatpush1.bf16.msra.mxu0 0
    %3582 = vmatprep.subr.bf16.mxu0 0
    %3583 = vmatpush1.bf16.msra.mxu0 0
    %3584 = vmatprep.mubr.bf16.mxu0 0
    %3585 = vmatmul.mubr.bf16.gmra.mrb[0].mxu0 0
    %v3586 = vpop.f32.mrb[0].mxu0
    %v3587 = vadd.f32 0.0, %v3586
    %v3588 = vpop.f32.mrb[0].mxu0
    %v3589 = vadd.f32 0.0, %v3588
    %v3590 = vpop.f32.mrb[0].mxu0
    %v3591 = vpop.f32.mrb[0].mxu0
    %3592 = vdwg.mxu0
    %v3593 = vadd.f32 %v3314, %v3546
    %v3594 = vadd.f32 %v3315, %v3548
    %v3595 = vadd.f32 %v3316, %v3587
    %v3596 = vadd.f32 %v3317, %v3589
    %v3597 = vsub.f32 0.0, %v3593
    %v3598 = vmul.f32 %v3597, 1.442695
    %v3599 = vpow.pop %v3598
    %v3600 = vadd.f32 %v3599, 1.0
    %v3601 = vrcp.pop %v3600
    %v3602 = vsub.f32 0.0, %v3594
    %v3603 = vmul.f32 %v3602, 1.442695
    %v3604 = vpow.pop %v3603
    %v3605 = vadd.f32 %v3604, 1.0
    %v3606 = vrcp.pop %v3605
    %v3607 = vtanh.pop %v3595
    %v3608 = vsub.f32 0.0, %v3596
    %v3609 = vmul.f32 %v3608, 1.442695
    %v3610 = vpow.pop %v3609
    %v3611 = vadd.f32 %v3610, 1.0
    %v3612 = vrcp.pop %v3611
    %v3613 = vmul.f32 %v3606, 0.0
    %v3614 = vmul.f32 %v3601, %v3607
    %v3615 = vadd.f32 %v3613, %v3614
    %v3616 = vtanh.pop %v3615
    %v3617 = vmul.f32 %v3612, %v3616
    %v3618 = vld [vmem:[#allocation3 + $0x20] sm:$0xff]
    %v3619 = vld [vmem:[#allocation3 + $0x28] sm:$0xff]
    %v3620 = vld [vmem:[#allocation3 + $0x30] sm:$0xff]
    %v3621 = vld [vmem:[#allocation3 + $0x38] sm:$0xff]
    %v3622 = vpack.c.bf16 %v3617, %v3617
    %3623 = vmatprep.subr.bf16.mxu0 %v3448
    %3624 = vmatpush1.bf16.msra.mxu0 %v3447
    %3625 = vmatprep.subr.bf16.mxu0 %v3452
    %3626 = vmatpush1.bf16.msra.mxu0 %v3451
    %3627 = vmatprep.subr.bf16.mxu0 %v3456
    %3628 = vmatpush1.bf16.msra.mxu0 %v3455
    %3629 = vmatprep.subr.bf16.mxu0 %v3460
    %3630 = vmatpush1.bf16.msra.mxu0 %v3459
    %3631 = vmatprep.subr.bf16.mxu0 %v3464
    %3632 = vmatpush1.bf16.msra.mxu0 %v3463
    %3633 = vmatprep.subr.bf16.mxu0 %v3468
    %3634 = vmatpush1.bf16.msra.mxu0 %v3467
    %3635 = vmatprep.subr.bf16.mxu0 %v3472
    %3636 = vmatpush1.bf16.msra.mxu0 %v3471
    %3637 = vmatprep.subr.bf16.mxu0 %v3476
    %3638 = vmatpush1.bf16.msra.mxu0 %v3475
    %3639 = vmatprep.subr.bf16.mxu0 0
    %3640 = vmatpush1.bf16.msra.mxu0 0
    %3641 = vmatprep.subr.bf16.mxu0 0
    %3642 = vmatpush1.bf16.msra.mxu0 0
    %3643 = vmatprep.subr.bf16.mxu0 0
    %3644 = vmatpush1.bf16.msra.mxu0 0
    %3645 = vmatprep.subr.bf16.mxu0 0
    %3646 = vmatpush1.bf16.msra.mxu0 0
    %3647 = vmatprep.subr.bf16.mxu0 0
    %3648 = vmatpush1.bf16.msra.mxu0 0
    %3649 = vmatprep.subr.bf16.mxu0 0
    %3650 = vmatpush1.bf16.msra.mxu0 0
    %3651 = vmatprep.subr.bf16.mxu0 0
    %3652 = vmatpush1.bf16.msra.mxu0 0
    %3653 = vmatprep.subr.bf16.mxu0 0
    %3654 = vmatpush1.bf16.msra.mxu0 0
    %3655 = vmatprep.mubr.bf16.mxu0 0
    %3656 = vmatmul.mubr.bf16.gmra.mrb[0].mxu0 %v3622
    %v3657 = vpop.f32.mrb[0].mxu0
    %v3658 = vadd.f32 0.0, %v3657
    %v3659 = vpop.f32.mrb[0].mxu0
    %v3660 = vadd.f32 0.0, %v3659
    %v3661 = vpop.f32.mrb[0].mxu0
    %v3662 = vpop.f32.mrb[0].mxu0
    %3663 = vdwg.mxu0
    %3664 = vmatprep.subr.bf16.mxu0 %v3450
    %3665 = vmatpush1.bf16.msra.mxu0 %v3449
    %3666 = vmatprep.subr.bf16.mxu0 %v3454
    %3667 = vmatpush1.bf16.msra.mxu0 %v3453
    %3668 = vmatprep.subr.bf16.mxu0 %v3458
    %3669 = vmatpush1.bf16.msra.mxu0 %v3457
    %3670 = vmatprep.subr.bf16.mxu0 %v3462
    %3671 = vmatpush1.bf16.msra.mxu0 %v3461
    %3672 = vmatprep.subr.bf16.mxu0 %v3466
    %3673 = vmatpush1.bf16.msra.mxu0 %v3465
    %3674 = vmatprep.subr.bf16.mxu0 %v3470
    %3675 = vmatpush1.bf16.msra.mxu0 %v3469
    %3676 = vmatprep.subr.bf16.mxu0 %v3474
    %3677 = vmatpush1.bf16.msra.mxu0 %v3473
    %3678 = vmatprep.subr.bf16.mxu0 %v3478
    %3679 = vmatpush1.bf16.msra.mxu0 %v3477
    %3680 = vmatprep.subr.bf16.mxu0 0
    %3681 = vmatpush1.bf16.msra.mxu0 0
    %3682 = vmatprep.subr.bf16.mxu0 0
    %3683 = vmatpush1.bf16.msra.mxu0 0
    %3684 = vmatprep.subr.bf16.mxu0 0
    %3685 = vmatpush1.bf16.msra.mxu0 0
    %3686 = vmatprep.subr.bf16.mxu0 0
    %3687 = vmatpush1.bf16.msra.mxu0 0
    %3688 = vmatprep.subr.bf16.mxu0 0
    %3689 = vmatpush1.bf16.msra.mxu0 0
    %3690 = vmatprep.subr.bf16.mxu0 0
    %3691 = vmatpush1.bf16.msra.mxu0 0
    %3692 = vmatprep.subr.bf16.mxu0 0
    %3693 = vmatpush1.bf16.msra.mxu0 0
    %3694 = vmatprep.subr.bf16.mxu0 0
    %3695 = vmatpush1.bf16.msra.mxu0 0
    %3696 = vmatprep.mubr.bf16.mxu0 0
    %3697 = vmatmul.mubr.bf16.gmra.mrb[0].mxu0 %v3622
    %v3698 = vpop.f32.mrb[0].mxu0
    %v3699 = vadd.f32 0.0, %v3698
    %v3700 = vpop.f32.mrb[0].mxu0
    %v3701 = vadd.f32 0.0, %v3700
    %v3702 = vpop.f32.mrb[0].mxu0
    %v3703 = vpop.f32.mrb[0].mxu0
    %3704 = vdwg.mxu0
    %v3705 = vadd.f32 %v3618, %v3658
    %v3706 = vadd.f32 %v3619, %v3660
    %v3707 = vadd.f32 %v3620, %v3699
    %v3708 = vadd.f32 %v3621, %v3701
    %v3709 = vsub.f32 0.0, %v3705
    %v3710 = vmul.f32 %v3709, 1.442695
    %v3711 = vpow.pop %v3710
    %v3712 = vadd.f32 %v3711, 1.0
    %v3713 = vrcp.pop %v3712
    %v3714 = vsub.f32 0.0, %v3706
    %v3715 = vmul.f32 %v3714, 1.442695
    %v3716 = vpow.pop %v3715
    %v3717 = vadd.f32 %v3716, 1.0
    %v3718 = vrcp.pop %v3717
    %v3719 = vtanh.pop %v3707
    %v3720 = vsub.f32 0.0, %v3708
    %v3721 = vmul.f32 %v3720, 1.442695
    %v3722 = vpow.pop %v3721
    %v3723 = vadd.f32 %v3722, 1.0
    %v3724 = vrcp.pop %v3723
    %v3725 = vmul.f32 %v3718, %v3615
    %v3726 = vmul.f32 %v3713, %v3719
    %v3727 = vadd.f32 %v3725, %v3726
    %v3728 = vtanh.pop %v3727
    %v3729 = vmul.f32 %v3724, %v3728
    %v3730 = vld [vmem:[#allocation3 + $0x40] sm:$0xff]
    %v3731 = vld [vmem:[#allocation3 + $0x48] sm:$0xff]
    %v3732 = vld [vmem:[#allocation3 + $0x50] sm:$0xff]
    %v3733 = vld [vmem:[#allocation3 + $0x58] sm:$0xff]
    %v3734 = vpack.c.bf16 %v3729, %v3729
    %3735 = vmatprep.subr.bf16.mxu0 %v3448
    %3736 = vmatpush1.bf16.msra.mxu0 %v3447
    %3737 = vmatprep.subr.bf16.mxu0 %v3452
    %3738 = vmatpush1.bf16.msra.mxu0 %v3451
    %3739 = vmatprep.subr.bf16.mxu0 %v3456
    %3740 = vmatpush1.bf16.msra.mxu0 %v3455
    %3741 = vmatprep.subr.bf16.mxu0 %v3460
    %3742 = vmatpush1.bf16.msra.mxu0 %v3459
    %3743 = vmatprep.subr.bf16.mxu0 %v3464
    %3744 = vmatpush1.bf16.msra.mxu0 %v3463
    %3745 = vmatprep.subr.bf16.mxu0 %v3468
    %3746 = vmatpush1.bf16.msra.mxu0 %v3467
    %3747 = vmatprep.subr.bf16.mxu0 %v3472
    %3748 = vmatpush1.bf16.msra.mxu0 %v3471
    %3749 = vmatprep.subr.bf16.mxu0 %v3476
    %3750 = vmatpush1.bf16.msra.mxu0 %v3475
    %3751 = vmatprep.subr.bf16.mxu0 0
    %3752 = vmatpush1.bf16.msra.mxu0 0
    %3753 = vmatprep.subr.bf16.mxu0 0
    %3754 = vmatpush1.bf16.msra.mxu0 0
    %3755 = vmatprep.subr.bf16.mxu0 0
    %3756 = vmatpush1.bf16.msra.mxu0 0
    %3757 = vmatprep.subr.bf16.mxu0 0
    %3758 = vmatpush1.bf16.msra.mxu0 0
    %3759 = vmatprep.subr.bf16.mxu0 0
    %3760 = vmatpush1.bf16.msra.mxu0 0
    %3761 = vmatprep.subr.bf16.mxu0 0
    %3762 = vmatpush1.bf16.msra.mxu0 0
    %3763 = vmatprep.subr.bf16.mxu0 0
    %3764 = vmatpush1.bf16.msra.mxu0 0
    %3765 = vmatprep.subr.bf16.mxu0 0
    %3766 = vmatpush1.bf16.msra.mxu0 0
    %3767 = vmatprep.mubr.bf16.mxu0 0
    %3768 = vmatmul.mubr.bf16.gmra.mrb[0].mxu0 %v3734
    %v3769 = vpop.f32.mrb[0].mxu0
    %v3770 = vadd.f32 0.0, %v3769
    %v3771 = vpop.f32.mrb[0].mxu0
    %v3772 = vadd.f32 0.0, %v3771
    %v3773 = vpop.f32.mrb[0].mxu0
    %v3774 = vpop.f32.mrb[0].mxu0
    %3775 = vdwg.mxu0
    %3776 = vmatprep.subr.bf16.mxu0 %v3450
    %3777 = vmatpush1.bf16.msra.mxu0 %v3449
    %3778 = vmatprep.subr.bf16.mxu0 %v3454
    %3779 = vmatpush1.bf16.msra.mxu0 %v3453
    %3780 = vmatprep.subr.bf16.mxu0 %v3458
    %3781 = vmatpush1.bf16.msra.mxu0 %v3457
    %3782 = vmatprep.subr.bf16.mxu0 %v3462
    %3783 = vmatpush1.bf16.msra.mxu0 %v3461
    %3784 = vmatprep.subr.bf16.mxu0 %v3466
    %3785 = vmatpush1.bf16.msra.mxu0 %v3465
    %3786 = vmatprep.subr.bf16.mxu0 %v3470
    %3787 = vmatpush1.bf16.msra.mxu0 %v3469
    %3788 = vmatprep.subr.bf16.mxu0 %v3474
    %3789 = vmatpush1.bf16.msra.mxu0 %v3473
    %3790 = vmatprep.subr.bf16.mxu0 %v3478
    %3791 = vmatpush1.bf16.msra.mxu0 %v3477
    %3792 = vmatprep.subr.bf16.mxu0 0
    %3793 = vmatpush1.bf16.msra.mxu0 0
    %3794 = vmatprep.subr.bf16.mxu0 0
    %3795 = vmatpush1.bf16.msra.mxu0 0
    %3796 = vmatprep.subr.bf16.mxu0 0
    %3797 = vmatpush1.bf16.msra.mxu0 0
    %3798 = vmatprep.subr.bf16.mxu0 0
    %3799 = vmatpush1.bf16.msra.mxu0 0
    %3800 = vmatprep.subr.bf16.mxu0 0
    %3801 = vmatpush1.bf16.msra.mxu0 0
    %3802 = vmatprep.subr.bf16.mxu0 0
    %3803 = vmatpush1.bf16.msra.mxu0 0
    %3804 = vmatprep.subr.bf16.mxu0 0
    %3805 = vmatpush1.bf16.msra.mxu0 0
    %3806 = vmatprep.subr.bf16.mxu0 0
    %3807 = vmatpush1.bf16.msra.mxu0 0
    %3808 = vmatprep.mubr.bf16.mxu0 0
    %3809 = vmatmul.mubr.bf16.gmra.mrb[0].mxu0 %v3734
    %v3810 = vpop.f32.mrb[0].mxu0
    %v3811 = vadd.f32 0.0, %v3810
    %v3812 = vpop.f32.mrb[0].mxu0
    %v3813 = vadd.f32 0.0, %v3812
    %v3814 = vpop.f32.mrb[0].mxu0
    %v3815 = vpop.f32.mrb[0].mxu0
    %3816 = vdwg.mxu0
    %v3817 = vadd.f32 %v3730, %v3770
    %v3818 = vadd.f32 %v3731, %v3772
    %v3819 = vadd.f32 %v3732, %v3811
    %v3820 = vadd.f32 %v3733, %v3813
    %v3821 = vsub.f32 0.0, %v3817
    %v3822 = vmul.f32 %v3821, 1.442695
    %v3823 = vpow.pop %v3822
    %v3824 = vadd.f32 %v3823, 1.0
    %v3825 = vrcp.pop %v3824
    %v3826 = vsub.f32 0.0, %v3818
    %v3827 = vmul.f32 %v3826, 1.442695
    %v3828 = vpow.pop %v3827
    %v3829 = vadd.f32 %v3828, 1.0
    %v3830 = vrcp.pop %v3829
    %v3831 = vtanh.pop %v3819
    %v3832 = vsub.f32 0.0, %v3820
    %v3833 = vmul.f32 %v3832, 1.442695
    %v3834 = vpow.pop %v3833
    %v3835 = vadd.f32 %v3834, 1.0
    %v3836 = vrcp.pop %v3835
    %v3837 = vmul.f32 %v3830, %v3727
    %v3838 = vmul.f32 %v3825, %v3831
    %v3839 = vadd.f32 %v3837, %v3838
    %v3840 = vtanh.pop %v3839
    %v3841 = vmul.f32 %v3836, %v3840
    %v3842 = vld [vmem:[#allocation3 + $0x60] sm:$0xff]
    %v3843 = vld [vmem:[#allocation3 + $0x68] sm:$0xff]
    %v3844 = vld [vmem:[#allocation3 + $0x70] sm:$0xff]
    %v3845 = vld [vmem:[#allocation3 + $0x78] sm:$0xff]
    %v3846 = vpack.c.bf16 %v3841, %v3841
    %3847 = vmatprep.subr.bf16.mxu0 %v3448
    %3848 = vmatpush1.bf16.msra.mxu0 %v3447
    %3849 = vmatprep.subr.bf16.mxu0 %v3452
    %3850 = vmatpush1.bf16.msra.mxu0 %v3451
    %3851 = vmatprep.subr.bf16.mxu0 %v3456
    %3852 = vmatpush1.bf16.msra.mxu0 %v3455
    %3853 = vmatprep.subr.bf16.mxu0 %v3460
    %3854 = vmatpush1.bf16.msra.mxu0 %v3459
    %3855 = vmatprep.subr.bf16.mxu0 %v3464
    %3856 = vmatpush1.bf16.msra.mxu0 %v3463
    %3857 = vmatprep.subr.bf16.mxu0 %v3468
    %3858 = vmatpush1.bf16.msra.mxu0 %v3467
    %3859 = vmatprep.subr.bf16.mxu0 %v3472
    %3860 = vmatpush1.bf16.msra.mxu0 %v3471
    %3861 = vmatprep.subr.bf16.mxu0 %v3476
    %3862 = vmatpush1.bf16.msra.mxu0 %v3475
    %3863 = vmatprep.subr.bf16.mxu0 0
    %3864 = vmatpush1.bf16.msra.mxu0 0
    %3865 = vmatprep.subr.bf16.mxu0 0
    %3866 = vmatpush1.bf16.msra.mxu0 0
    %3867 = vmatprep.subr.bf16.mxu0 0
    %3868 = vmatpush1.bf16.msra.mxu0 0
    %3869 = vmatprep.subr.bf16.mxu0 0
    %3870 = vmatpush1.bf16.msra.mxu0 0
    %3871 = vmatprep.subr.bf16.mxu0 0
    %3872 = vmatpush1.bf16.msra.mxu0 0
    %3873 = vmatprep.subr.bf16.mxu0 0
    %3874 = vmatpush1.bf16.msra.mxu0 0
    %3875 = vmatprep.subr.bf16.mxu0 0
    %3876 = vmatpush1.bf16.msra.mxu0 0
    %3877 = vmatprep.subr.bf16.mxu0 0
    %3878 = vmatpush1.bf16.msra.mxu0 0
    %3879 = vmatprep.mubr.bf16.mxu0 0
    %3880 = vmatmul.mubr.bf16.gmra.mrb[0].mxu0 %v3846
    %v3881 = vpop.f32.mrb[0].mxu0
    %v3882 = vadd.f32 0.0, %v3881
    %v3883 = vpop.f32.mrb[0].mxu0
    %v3884 = vadd.f32 0.0, %v3883
    %v3885 = vpop.f32.mrb[0].mxu0
    %v3886 = vpop.f32.mrb[0].mxu0
    %3887 = vdwg.mxu0
    %3888 = vmatprep.subr.bf16.mxu0 %v3450
    %3889 = vmatpush1.bf16.msra.mxu0 %v3449
    %3890 = vmatprep.subr.bf16.mxu0 %v3454
    %3891 = vmatpush1.bf16.msra.mxu0 %v3453
    %3892 = vmatprep.subr.bf16.mxu0 %v3458
    %3893 = vmatpush1.bf16.msra.mxu0 %v3457
    %3894 = vmatprep.subr.bf16.mxu0 %v3462
    %3895 = vmatpush1.bf16.msra.mxu0 %v3461
    %3896 = vmatprep.subr.bf16.mxu0 %v3466
    %3897 = vmatpush1.bf16.msra.mxu0 %v3465
    %3898 = vmatprep.subr.bf16.mxu0 %v3470
    %3899 = vmatpush1.bf16.msra.mxu0 %v3469
    %3900 = vmatprep.subr.bf16.mxu0 %v3474
    %3901 = vmatpush1.bf16.msra.mxu0 %v3473
    %3902 = vmatprep.subr.bf16.mxu0 %v3478
    %3903 = vmatpush1.bf16.msra.mxu0 %v3477
    %3904 = vmatprep.subr.bf16.mxu0 0
    %3905 = vmatpush1.bf16.msra.mxu0 0
    %3906 = vmatprep.subr.bf16.mxu0 0
    %3907 = vmatpush1.bf16.msra.mxu0 0
    %3908 = vmatprep.subr.bf16.mxu0 0
    %3909 = vmatpush1.bf16.msra.mxu0 0
    %3910 = vmatprep.subr.bf16.mxu0 0
    %3911 = vmatpush1.bf16.msra.mxu0 0
    %3912 = vmatprep.subr.bf16.mxu0 0
    %3913 = vmatpush1.bf16.msra.mxu0 0
    %3914 = vmatprep.subr.bf16.mxu0 0
    %3915 = vmatpush1.bf16.msra.mxu0 0
    %3916 = vmatprep.subr.bf16.mxu0 0
    %3917 = vmatpush1.bf16.msra.mxu0 0
    %3918 = vmatprep.subr.bf16.mxu0 0
    %3919 = vmatpush1.bf16.msra.mxu0 0
    %3920 = vmatprep.mubr.bf16.mxu0 0
    %3921 = vmatmul.mubr.bf16.gmra.mrb[0].mxu0 %v3846
    %v3922 = vpop.f32.mrb[0].mxu0
    %v3923 = vadd.f32 0.0, %v3922
    %v3924 = vpop.f32.mrb[0].mxu0
    %v3925 = vadd.f32 0.0, %v3924
    %v3926 = vpop.f32.mrb[0].mxu0
    %v3927 = vpop.f32.mrb[0].mxu0
    %3928 = vdwg.mxu0
    %v3929 = vadd.f32 %v3842, %v3882
    %v3930 = vadd.f32 %v3843, %v3884
    %v3931 = vadd.f32 %v3844, %v3923
    %v3932 = vadd.f32 %v3845, %v3925
    %v3933 = vsub.f32 0.0, %v3929
    %v3934 = vmul.f32 %v3933, 1.442695
    %v3935 = vpow.pop %v3934
    %v3936 = vadd.f32 %v3935, 1.0
    %v3937 = vrcp.pop %v3936
    %v3938 = vsub.f32 0.0, %v3930
    %v3939 = vmul.f32 %v3938, 1.442695
    %v3940 = vpow.pop %v3939
    %v3941 = vadd.f32 %v3940, 1.0
    %v3942 = vrcp.pop %v3941
    %v3943 = vtanh.pop %v3931
    %v3944 = vsub.f32 0.0, %v3932
    %v3945 = vmul.f32 %v3944, 1.442695
    %v3946 = vpow.pop %v3945
    %v3947 = vadd.f32 %v3946, 1.0
    %v3948 = vrcp.pop %v3947
    %v3949 = vmul.f32 %v3942, %v3839
    %v3950 = vmul.f32 %v3937, %v3943
    %v3951 = vadd.f32 %v3949, %v3950
    %v3952 = vtanh.pop %v3951
    %v3953 = vmul.f32 %v3948, %v3952
    %v3954 = vld [vmem:[#allocation3 + $0x80] sm:$0xff]
    %v3955 = vld [vmem:[#allocation3 + $0x88] sm:$0xff]
    %v3956 = vld [vmem:[#allocation3 + $0x90] sm:$0xff]
    %v3957 = vld [vmem:[#allocation3 + $0x98] sm:$0xff]
    %v3958 = vpack.c.bf16 %v3953, %v3953
    %3959 = vmatprep.subr.bf16.mxu0 %v3448
    %3960 = vmatpush1.bf16.msra.mxu0 %v3447
    %3961 = vmatprep.subr.bf16.mxu0 %v3452
    %3962 = vmatpush1.bf16.msra.mxu0 %v3451
    %3963 = vmatprep.subr.bf16.mxu0 %v3456
    %3964 = vmatpush1.bf16.msra.mxu0 %v3455
    %3965 = vmatprep.subr.bf16.mxu0 %v3460
    %3966 = vmatpush1.bf16.msra.mxu0 %v3459
    %3967 = vmatprep.subr.bf16.mxu0 %v3464
    %3968 = vmatpush1.bf16.msra.mxu0 %v3463
    %3969 = vmatprep.subr.bf16.mxu0 %v3468
    %3970 = vmatpush1.bf16.msra.mxu0 %v3467
    %3971 = vmatprep.subr.bf16.mxu0 %v3472
    %3972 = vmatpush1.bf16.msra.mxu0 %v3471
    %3973 = vmatprep.subr.bf16.mxu0 %v3476
    %3974 = vmatpush1.bf16.msra.mxu0 %v3475
    %3975 = vmatprep.subr.bf16.mxu0 0
    %3976 = vmatpush1.bf16.msra.mxu0 0
    %3977 = vmatprep.subr.bf16.mxu0 0
    %3978 = vmatpush1.bf16.msra.mxu0 0
    %3979 = vmatprep.subr.bf16.mxu0 0
    %3980 = vmatpush1.bf16.msra.mxu0 0
    %3981 = vmatprep.subr.bf16.mxu0 0
    %3982 = vmatpush1.bf16.msra.mxu0 0
    %3983 = vmatprep.subr.bf16.mxu0 0
    %3984 = vmatpush1.bf16.msra.mxu0 0
    %3985 = vmatprep.subr.bf16.mxu0 0
    %3986 = vmatpush1.bf16.msra.mxu0 0
    %3987 = vmatprep.subr.bf16.mxu0 0
    %3988 = vmatpush1.bf16.msra.mxu0 0
    %3989 = vmatprep.subr.bf16.mxu0 0
    %3990 = vmatpush1.bf16.msra.mxu0 0
    %3991 = vmatprep.mubr.bf16.mxu0 0
    %3992 = vmatmul.mubr.bf16.gmra.mrb[0].mxu0 %v3958
    %v3993 = vpop.f32.mrb[0].mxu0
    %v3994 = vadd.f32 0.0, %v3993
    %v3995 = vpop.f32.mrb[0].mxu0
    %v3996 = vadd.f32 0.0, %v3995
    %v3997 = vpop.f32.mrb[0].mxu0
    %v3998 = vpop.f32.mrb[0].mxu0
    %3999 = vdwg.mxu0
    %4000 = vmatprep.subr.bf16.mxu0 %v3450
    %4001 = vmatpush1.bf16.msra.mxu0 %v3449
    %4002 = vmatprep.subr.bf16.mxu0 %v3454
    %4003 = vmatpush1.bf16.msra.mxu0 %v3453
    %4004 = vmatprep.subr.bf16.mxu0 %v3458
    %4005 = vmatpush1.bf16.msra.mxu0 %v3457
    %4006 = vmatprep.subr.bf16.mxu0 %v3462
    %4007 = vmatpush1.bf16.msra.mxu0 %v3461
    %4008 = vmatprep.subr.bf16.mxu0 %v3466
    %4009 = vmatpush1.bf16.msra.mxu0 %v3465
    %4010 = vmatprep.subr.bf16.mxu0 %v3470
    %4011 = vmatpush1.bf16.msra.mxu0 %v3469
    %4012 = vmatprep.subr.bf16.mxu0 %v3474
    %4013 = vmatpush1.bf16.msra.mxu0 %v3473
    %4014 = vmatprep.subr.bf16.mxu0 %v3478
    %4015 = vmatpush1.bf16.msra.mxu0 %v3477
    %4016 = vmatprep.subr.bf16.mxu0 0
    %4017 = vmatpush1.bf16.msra.mxu0 0
    %4018 = vmatprep.subr.bf16.mxu0 0
    %4019 = vmatpush1.bf16.msra.mxu0 0
    %4020 = vmatprep.subr.bf16.mxu0 0
    %4021 = vmatpush1.bf16.msra.mxu0 0
    %4022 = vmatprep.subr.bf16.mxu0 0
    %4023 = vmatpush1.bf16.msra.mxu0 0
    %4024 = vmatprep.subr.bf16.mxu0 0
    %4025 = vmatpush1.bf16.msra.mxu0 0
    %4026 = vmatprep.subr.bf16.mxu0 0
    %4027 = vmatpush1.bf16.msra.mxu0 0
    %4028 = vmatprep.subr.bf16.mxu0 0
    %4029 = vmatpush1.bf16.msra.mxu0 0
    %4030 = vmatprep.subr.bf16.mxu0 0
    %4031 = vmatpush1.bf16.msra.mxu0 0
    %4032 = vmatprep.mubr.bf16.mxu0 0
    %4033 = vmatmul.mubr.bf16.gmra.mrb[0].mxu0 %v3958
    %v4034 = vpop.f32.mrb[0].mxu0
    %v4035 = vadd.f32 0.0, %v4034
    %v4036 = vpop.f32.mrb[0].mxu0
    %v4037 = vadd.f32 0.0, %v4036
    %v4038 = vpop.f32.mrb[0].mxu0
    %v4039 = vpop.f32.mrb[0].mxu0
    %4040 = vdwg.mxu0
    %v4041 = vadd.f32 %v3954, %v3994
    %v4042 = vadd.f32 %v3955, %v3996
    %v4043 = vadd.f32 %v3956, %v4035
    %v4044 = vadd.f32 %v3957, %v4037
    %v4045 = vsub.f32 0.0, %v4041
    %v4046 = vmul.f32 %v4045, 1.442695
    %v4047 = vpow.pop %v4046
    %v4048 = vadd.f32 %v4047, 1.0
    %v4049 = vrcp.pop %v4048
    %v4050 = vsub.f32 0.0, %v4042
    %v4051 = vmul.f32 %v4050, 1.442695
    %v4052 = vpow.pop %v4051
    %v4053 = vadd.f32 %v4052, 1.0
    %v4054 = vrcp.pop %v4053
    %v4055 = vtanh.pop %v4043
    %v4056 = vsub.f32 0.0, %v4044
    %v4057 = vmul.f32 %v4056, 1.442695
    %v4058 = vpow.pop %v4057
    %v4059 = vadd.f32 %v4058, 1.0
    %v4060 = vrcp.pop %v4059
    %v4061 = vmul.f32 %v4054, %v3951
    %v4062 = vmul.f32 %v4049, %v4055
    %v4063 = vadd.f32 %v4061, %v4062
    %v4064 = vtanh.pop %v4063
    %v4065 = vmul.f32 %v4060, %v4064
    %v4066 = vld [vmem:[#allocation3 + $0xa0] sm:$0xff]
    %v4067 = vld [vmem:[#allocation3 + $0xa8] sm:$0xff]
    %v4068 = vld [vmem:[#allocation3 + $0xb0] sm:$0xff]
    %v4069 = vld [vmem:[#allocation3 + $0xb8] sm:$0xff]
    %v4070 = vpack.c.bf16 %v4065, %v4065
    %4071 = vmatprep.subr.bf16.mxu0 %v3448
    %4072 = vmatpush1.bf16.msra.mxu0 %v3447
    %4073 = vmatprep.subr.bf16.mxu0 %v3452
    %4074 = vmatpush1.bf16.msra.mxu0 %v3451
    %4075 = vmatprep.subr.bf16.mxu0 %v3456
    %4076 = vmatpush1.bf16.msra.mxu0 %v3455
    %4077 = vmatprep.subr.bf16.mxu0 %v3460
    %4078 = vmatpush1.bf16.msra.mxu0 %v3459
    %4079 = vmatprep.subr.bf16.mxu0 %v3464
    %4080 = vmatpush1.bf16.msra.mxu0 %v3463
    %4081 = vmatprep.subr.bf16.mxu0 %v3468
    %4082 = vmatpush1.bf16.msra.mxu0 %v3467
    %4083 = vmatprep.subr.bf16.mxu0 %v3472
    %4084 = vmatpush1.bf16.msra.mxu0 %v3471
    %4085 = vmatprep.subr.bf16.mxu0 %v3476
    %4086 = vmatpush1.bf16.msra.mxu0 %v3475
    %4087 = vmatprep.subr.bf16.mxu0 0
    %4088 = vmatpush1.bf16.msra.mxu0 0
    %4089 = vmatprep.subr.bf16.mxu0 0
    %4090 = vmatpush1.bf16.msra.mxu0 0
    %4091 = vmatprep.subr.bf16.mxu0 0
    %4092 = vmatpush1.bf16.msra.mxu0 0
    %4093 = vmatprep.subr.bf16.mxu0 0
    %4094 = vmatpush1.bf16.msra.mxu0 0
    %4095 = vmatprep.subr.bf16.mxu0 0
    %4096 = vmatpush1.bf16.msra.mxu0 0
    %4097 = vmatprep.subr.bf16.mxu0 0
    %4098 = vmatpush1.bf16.msra.mxu0 0
    %4099 = vmatprep.subr.bf16.mxu0 0
    %4100 = vmatpush1.bf16.msra.mxu0 0
    %4101 = vmatprep.subr.bf16.mxu0 0
    %4102 = vmatpush1.bf16.msra.mxu0 0
    %4103 = vmatprep.mubr.bf16.mxu0 0
    %4104 = vmatmul.mubr.bf16.gmra.mrb[0].mxu0 %v4070
    %v4105 = vpop.f32.mrb[0].mxu0
    %v4106 = vadd.f32 0.0, %v4105
    %v4107 = vpop.f32.mrb[0].mxu0
    %v4108 = vadd.f32 0.0, %v4107
    %v4109 = vpop.f32.mrb[0].mxu0
    %v4110 = vpop.f32.mrb[0].mxu0
    %4111 = vdwg.mxu0
    %4112 = vmatprep.subr.bf16.mxu0 %v3450
    %4113 = vmatpush1.bf16.msra.mxu0 %v3449
    %4114 = vmatprep.subr.bf16.mxu0 %v3454
    %4115 = vmatpush1.bf16.msra.mxu0 %v3453
    %4116 = vmatprep.subr.bf16.mxu0 %v3458
    %4117 = vmatpush1.bf16.msra.mxu0 %v3457
    %4118 = vmatprep.subr.bf16.mxu0 %v3462
    %4119 = vmatpush1.bf16.msra.mxu0 %v3461
    %4120 = vmatprep.subr.bf16.mxu0 %v3466
    %4121 = vmatpush1.bf16.msra.mxu0 %v3465
    %4122 = vmatprep.subr.bf16.mxu0 %v3470
    %4123 = vmatpush1.bf16.msra.mxu0 %v3469
    %4124 = vmatprep.subr.bf16.mxu0 %v3474
    %4125 = vmatpush1.bf16.msra.mxu0 %v3473
    %4126 = vmatprep.subr.bf16.mxu0 %v3478
    %4127 = vmatpush1.bf16.msra.mxu0 %v3477
    %4128 = vmatprep.subr.bf16.mxu0 0
    %4129 = vmatpush1.bf16.msra.mxu0 0
    %4130 = vmatprep.subr.bf16.mxu0 0
    %4131 = vmatpush1.bf16.msra.mxu0 0
    %4132 = vmatprep.subr.bf16.mxu0 0
    %4133 = vmatpush1.bf16.msra.mxu0 0
    %4134 = vmatprep.subr.bf16.mxu0 0
    %4135 = vmatpush1.bf16.msra.mxu0 0
    %4136 = vmatprep.subr.bf16.mxu0 0
    %4137 = vmatpush1.bf16.msra.mxu0 0
    %4138 = vmatprep.subr.bf16.mxu0 0
    %4139 = vmatpush1.bf16.msra.mxu0 0
    %4140 = vmatprep.subr.bf16.mxu0 0
    %4141 = vmatpush1.bf16.msra.mxu0 0
    %4142 = vmatprep.subr.bf16.mxu0 0
    %4143 = vmatpush1.bf16.msra.mxu0 0
    %4144 = vmatprep.mubr.bf16.mxu0 0
    %4145 = vmatmul.mubr.bf16.gmra.mrb[0].mxu0 %v4070
    %v4146 = vpop.f32.mrb[0].mxu0
    %v4147 = vadd.f32 0.0, %v4146
    %v4148 = vpop.f32.mrb[0].mxu0
    %v4149 = vadd.f32 0.0, %v4148
    %v4150 = vpop.f32.mrb[0].mxu0
    %v4151 = vpop.f32.mrb[0].mxu0
    %4152 = vdwg.mxu0
    %v4153 = vadd.f32 %v4066, %v4106
    %v4154 = vadd.f32 %v4067, %v4108
    %v4155 = vadd.f32 %v4068, %v4147
    %v4156 = vadd.f32 %v4069, %v4149
    %v4157 = vsub.f32 0.0, %v4153
    %v4158 = vmul.f32 %v4157, 1.442695
    %v4159 = vpow.pop %v4158
    %v4160 = vadd.f32 %v4159, 1.0
    %v4161 = vrcp.pop %v4160
    %v4162 = vsub.f32 0.0, %v4154
    %v4163 = vmul.f32 %v4162, 1.442695
    %v4164 = vpow.pop %v4163
    %v4165 = vadd.f32 %v4164, 1.0
    %v4166 = vrcp.pop %v4165
    %v4167 = vtanh.pop %v4155
    %v4168 = vsub.f32 0.0, %v4156
    %v4169 = vmul.f32 %v4168, 1.442695
    %v4170 = vpow.pop %v4169
    %v4171 = vadd.f32 %v4170, 1.0
    %v4172 = vrcp.pop %v4171
    %v4173 = vmul.f32 %v4166, %v4063
    %v4174 = vmul.f32 %v4161, %v4167
    %v4175 = vadd.f32 %v4173, %v4174
    %v4176 = vtanh.pop %v4175
    %v4177 = vmul.f32 %v4172, %v4176
    %v4178 = vld [vmem:[#allocation3 + $0xc0] sm:$0xff]
    %v4179 = vld [vmem:[#allocation3 + $0xc8] sm:$0xff]
    %v4180 = vld [vmem:[#allocation3 + $0xd0] sm:$0xff]
    %v4181 = vld [vmem:[#allocation3 + $0xd8] sm:$0xff]
    %v4182 = vpack.c.bf16 %v4177, %v4177
    %4183 = vmatprep.subr.bf16.mxu0 %v3448
    %4184 = vmatpush1.bf16.msra.mxu0 %v3447
    %4185 = vmatprep.subr.bf16.mxu0 %v3452
    %4186 = vmatpush1.bf16.msra.mxu0 %v3451
    %4187 = vmatprep.subr.bf16.mxu0 %v3456
    %4188 = vmatpush1.bf16.msra.mxu0 %v3455
    %4189 = vmatprep.subr.bf16.mxu0 %v3460
    %4190 = vmatpush1.bf16.msra.mxu0 %v3459
    %4191 = vmatprep.subr.bf16.mxu0 %v3464
    %4192 = vmatpush1.bf16.msra.mxu0 %v3463
    %4193 = vmatprep.subr.bf16.mxu0 %v3468
    %4194 = vmatpush1.bf16.msra.mxu0 %v3467
    %4195 = vmatprep.subr.bf16.mxu0 %v3472
    %4196 = vmatpush1.bf16.msra.mxu0 %v3471
    %4197 = vmatprep.subr.bf16.mxu0 %v3476
    %4198 = vmatpush1.bf16.msra.mxu0 %v3475
    %4199 = vmatprep.subr.bf16.mxu0 0
    %4200 = vmatpush1.bf16.msra.mxu0 0
    %4201 = vmatprep.subr.bf16.mxu0 0
    %4202 = vmatpush1.bf16.msra.mxu0 0
    %4203 = vmatprep.subr.bf16.mxu0 0
    %4204 = vmatpush1.bf16.msra.mxu0 0
    %4205 = vmatprep.subr.bf16.mxu0 0
    %4206 = vmatpush1.bf16.msra.mxu0 0
    %4207 = vmatprep.subr.bf16.mxu0 0
    %4208 = vmatpush1.bf16.msra.mxu0 0
    %4209 = vmatprep.subr.bf16.mxu0 0
    %4210 = vmatpush1.bf16.msra.mxu0 0
    %4211 = vmatprep.subr.bf16.mxu0 0
    %4212 = vmatpush1.bf16.msra.mxu0 0
    %4213 = vmatprep.subr.bf16.mxu0 0
    %4214 = vmatpush1.bf16.msra.mxu0 0
    %4215 = vmatprep.mubr.bf16.mxu0 0
    %4216 = vmatmul.mubr.bf16.gmra.mrb[0].mxu0 %v4182
    %v4217 = vpop.f32.mrb[0].mxu0
    %v4218 = vadd.f32 0.0, %v4217
    %v4219 = vpop.f32.mrb[0].mxu0
    %v4220 = vadd.f32 0.0, %v4219
    %v4221 = vpop.f32.mrb[0].mxu0
    %v4222 = vpop.f32.mrb[0].mxu0
    %4223 = vdwg.mxu0
    %4224 = vmatprep.subr.bf16.mxu0 %v3450
    %4225 = vmatpush1.bf16.msra.mxu0 %v3449
    %4226 = vmatprep.subr.bf16.mxu0 %v3454
    %4227 = vmatpush1.bf16.msra.mxu0 %v3453
    %4228 = vmatprep.subr.bf16.mxu0 %v3458
    %4229 = vmatpush1.bf16.msra.mxu0 %v3457
    %4230 = vmatprep.subr.bf16.mxu0 %v3462
    %4231 = vmatpush1.bf16.msra.mxu0 %v3461
    %4232 = vmatprep.subr.bf16.mxu0 %v3466
    %4233 = vmatpush1.bf16.msra.mxu0 %v3465
    %4234 = vmatprep.subr.bf16.mxu0 %v3470
    %4235 = vmatpush1.bf16.msra.mxu0 %v3469
    %4236 = vmatprep.subr.bf16.mxu0 %v3474
    %4237 = vmatpush1.bf16.msra.mxu0 %v3473
    %4238 = vmatprep.subr.bf16.mxu0 %v3478
    %4239 = vmatpush1.bf16.msra.mxu0 %v3477
    %4240 = vmatprep.subr.bf16.mxu0 0
    %4241 = vmatpush1.bf16.msra.mxu0 0
    %4242 = vmatprep.subr.bf16.mxu0 0
    %4243 = vmatpush1.bf16.msra.mxu0 0
    %4244 = vmatprep.subr.bf16.mxu0 0
    %4245 = vmatpush1.bf16.msra.mxu0 0
    %4246 = vmatprep.subr.bf16.mxu0 0
    %4247 = vmatpush1.bf16.msra.mxu0 0
    %4248 = vmatprep.subr.bf16.mxu0 0
    %4249 = vmatpush1.bf16.msra.mxu0 0
    %4250 = vmatprep.subr.bf16.mxu0 0
    %4251 = vmatpush1.bf16.msra.mxu0 0
    %4252 = vmatprep.subr.bf16.mxu0 0
    %4253 = vmatpush1.bf16.msra.mxu0 0
    %4254 = vmatprep.subr.bf16.mxu0 0
    %4255 = vmatpush1.bf16.msra.mxu0 0
    %4256 = vmatprep.mubr.bf16.mxu0 0
    %4257 = vmatmul.mubr.bf16.gmra.mrb[0].mxu0 %v4182
    %v4258 = vpop.f32.mrb[0].mxu0
    %v4259 = vadd.f32 0.0, %v4258
    %v4260 = vpop.f32.mrb[0].mxu0
    %v4261 = vadd.f32 0.0, %v4260
    %v4262 = vpop.f32.mrb[0].mxu0
    %v4263 = vpop.f32.mrb[0].mxu0
    %4264 = vdwg.mxu0
    %v4265 = vadd.f32 %v4178, %v4218
    %v4266 = vadd.f32 %v4179, %v4220
    %v4267 = vadd.f32 %v4180, %v4259
    %v4268 = vadd.f32 %v4181, %v4261
    %v4269 = vsub.f32 0.0, %v4265
    %v4270 = vmul.f32 %v4269, 1.442695
    %v4271 = vpow.pop %v4270
    %v4272 = vadd.f32 %v4271, 1.0
    %v4273 = vrcp.pop %v4272
    %v4274 = vsub.f32 0.0, %v4266
    %v4275 = vmul.f32 %v4274, 1.442695
    %v4276 = vpow.pop %v4275
    %v4277 = vadd.f32 %v4276, 1.0
    %v4278 = vrcp.pop %v4277
    %v4279 = vtanh.pop %v4267
    %v4280 = vsub.f32 0.0, %v4268
    %v4281 = vmul.f32 %v4280, 1.442695
    %v4282 = vpow.pop %v4281
    %v4283 = vadd.f32 %v4282, 1.0
    %v4284 = vrcp.pop %v4283
    %v4285 = vmul.f32 %v4278, %v4175
    %v4286 = vmul.f32 %v4273, %v4279
    %v4287 = vadd.f32 %v4285, %v4286
    %v4288 = vtanh.pop %v4287
    %v4289 = vmul.f32 %v4284, %v4288
    %v4290 = vld [vmem:[#allocation3 + $0xe0] sm:$0xff]
    %v4291 = vld [vmem:[#allocation3 + $0xe8] sm:$0xff]
    %v4292 = vld [vmem:[#allocation3 + $0xf0] sm:$0xff]
    %v4293 = vld [vmem:[#allocation3 + $0xf8] sm:$0xff]
    %v4294 = vpack.c.bf16 %v4289, %v4289
    %4295 = vmatprep.subr.bf16.mxu0 %v3448
    %4296 = vmatpush1.bf16.msra.mxu0 %v3447
    %4297 = vmatprep.subr.bf16.mxu0 %v3452
    %4298 = vmatpush1.bf16.msra.mxu0 %v3451
    %4299 = vmatprep.subr.bf16.mxu0 %v3456
    %4300 = vmatpush1.bf16.msra.mxu0 %v3455
    %4301 = vmatprep.subr.bf16.mxu0 %v3460
    %4302 = vmatpush1.bf16.msra.mxu0 %v3459
    %4303 = vmatprep.subr.bf16.mxu0 %v3464
    %4304 = vmatpush1.bf16.msra.mxu0 %v3463
    %4305 = vmatprep.subr.bf16.mxu0 %v3468
    %4306 = vmatpush1.bf16.msra.mxu0 %v3467
    %4307 = vmatprep.subr.bf16.mxu0 %v3472
    %4308 = vmatpush1.bf16.msra.mxu0 %v3471
    %4309 = vmatprep.subr.bf16.mxu0 %v3476
    %4310 = vmatpush1.bf16.msra.mxu0 %v3475
    %4311 = vmatprep.subr.bf16.mxu0 0
    %4312 = vmatpush1.bf16.msra.mxu0 0
    %4313 = vmatprep.subr.bf16.mxu0 0
    %4314 = vmatpush1.bf16.msra.mxu0 0
    %4315 = vmatprep.subr.bf16.mxu0 0
    %4316 = vmatpush1.bf16.msra.mxu0 0
    %4317 = vmatprep.subr.bf16.mxu0 0
    %4318 = vmatpush1.bf16.msra.mxu0 0
    %4319 = vmatprep.subr.bf16.mxu0 0
    %4320 = vmatpush1.bf16.msra.mxu0 0
    %4321 = vmatprep.subr.bf16.mxu0 0
    %4322 = vmatpush1.bf16.msra.mxu0 0
    %4323 = vmatprep.subr.bf16.mxu0 0
    %4324 = vmatpush1.bf16.msra.mxu0 0
    %4325 = vmatprep.subr.bf16.mxu0 0
    %4326 = vmatpush1.bf16.msra.mxu0 0
    %4327 = vmatprep.mubr.bf16.mxu0 0
    %4328 = vmatmul.mubr.bf16.gmra.mrb[0].mxu0 %v4294
    %v4329 = vpop.f32.mrb[0].mxu0
    %v4330 = vadd.f32 0.0, %v4329
    %v4331 = vpop.f32.mrb[0].mxu0
    %v4332 = vadd.f32 0.0, %v4331
    %v4333 = vpop.f32.mrb[0].mxu0
    %v4334 = vpop.f32.mrb[0].mxu0
    %4335 = vdwg.mxu0
    %4336 = vmatprep.subr.bf16.mxu0 %v3450
    %4337 = vmatpush1.bf16.msra.mxu0 %v3449
    %4338 = vmatprep.subr.bf16.mxu0 %v3454
    %4339 = vmatpush1.bf16.msra.mxu0 %v3453
    %4340 = vmatprep.subr.bf16.mxu0 %v3458
    %4341 = vmatpush1.bf16.msra.mxu0 %v3457
    %4342 = vmatprep.subr.bf16.mxu0 %v3462
    %4343 = vmatpush1.bf16.msra.mxu0 %v3461
    %4344 = vmatprep.subr.bf16.mxu0 %v3466
    %4345 = vmatpush1.bf16.msra.mxu0 %v3465
    %4346 = vmatprep.subr.bf16.mxu0 %v3470
    %4347 = vmatpush1.bf16.msra.mxu0 %v3469
    %4348 = vmatprep.subr.bf16.mxu0 %v3474
    %4349 = vmatpush1.bf16.msra.mxu0 %v3473
    %4350 = vmatprep.subr.bf16.mxu0 %v3478
    %4351 = vmatpush1.bf16.msra.mxu0 %v3477
    %4352 = vmatprep.subr.bf16.mxu0 0
    %4353 = vmatpush1.bf16.msra.mxu0 0
    %4354 = vmatprep.subr.bf16.mxu0 0
    %4355 = vmatpush1.bf16.msra.mxu0 0
    %4356 = vmatprep.subr.bf16.mxu0 0
    %4357 = vmatpush1.bf16.msra.mxu0 0
    %4358 = vmatprep.subr.bf16.mxu0 0
    %4359 = vmatpush1.bf16.msra.mxu0 0
    %4360 = vmatprep.subr.bf16.mxu0 0
    %4361 = vmatpush1.bf16.msra.mxu0 0
    %4362 = vmatprep.subr.bf16.mxu0 0
    %4363 = vmatpush1.bf16.msra.mxu0 0
    %4364 = vmatprep.subr.bf16.mxu0 0
    %4365 = vmatpush1.bf16.msra.mxu0 0
    %4366 = vmatprep.subr.bf16.mxu0 0
    %4367 = vmatpush1.bf16.msra.mxu0 0
    %4368 = vmatprep.mubr.bf16.mxu0 0
    %4369 = vmatmul.mubr.bf16.gmra.mrb[0].mxu0 %v4294
    %v4370 = vpop.f32.mrb[0].mxu0
    %v4371 = vadd.f32 0.0, %v4370
    %v4372 = vpop.f32.mrb[0].mxu0
    %v4373 = vadd.f32 0.0, %v4372
    %v4374 = vpop.f32.mrb[0].mxu0
    %v4375 = vpop.f32.mrb[0].mxu0
    %4376 = vdwg.mxu0
    %v4377 = vadd.f32 %v4290, %v4330
    %v4378 = vadd.f32 %v4291, %v4332
    %v4379 = vadd.f32 %v4292, %v4371
    %v4380 = vadd.f32 %v4293, %v4373
    %v4381 = vsub.f32 0.0, %v4377
    %v4382 = vmul.f32 %v4381, 1.442695
    %v4383 = vpow.pop %v4382
    %v4384 = vadd.f32 %v4383, 1.0
    %v4385 = vrcp.pop %v4384
    %v4386 = vsub.f32 0.0, %v4378
    %v4387 = vmul.f32 %v4386, 1.442695
    %v4388 = vpow.pop %v4387
    %v4389 = vadd.f32 %v4388, 1.0
    %v4390 = vrcp.pop %v4389
    %v4391 = vtanh.pop %v4379
    %v4392 = vsub.f32 0.0, %v4380
    %v4393 = vmul.f32 %v4392, 1.442695
    %v4394 = vpow.pop %v4393
    %v4395 = vadd.f32 %v4394, 1.0
    %v4396 = vrcp.pop %v4395
    %v4397 = vmul.f32 %v4390, %v4287
    %v4398 = vmul.f32 %v4385, %v4391
    %v4399 = vadd.f32 %v4397, %v4398
    %v4400 = vtanh.pop %v4399
    %v4401 = vmul.f32 %v4396, %v4400
    %s4402 = scalar_lea.vmem [#allocation10], 8
    %4403 = vst [vmem:[%s4402] sm:$0xff] %v4401
    %s4404 = scalar_lea.vmem [#allocation11], 8
    %4405 = vst [vmem:[%s4404] sm:$0xff] %v4399
    // Predicated region
    $region30: #{tpu_custom_call.1} parent=1 // pred_check
      _
    $region31: #{tpu_custom_call.1} parent=1 // pred_check_branch
      %4407 = sbr.rel (0) target = $region33
    $region32: #{tpu_custom_call.1} parent=1 // pred_region
      %s4409 = ssub.s32 256, 256
      %4410 = vsyncadd [#allocation6], %s4409
      %s4411 = sshll.u32 [#allocation10], 4
      %s4412 = int_to_ptr.vmem [resolvable:$true] %s4411
      %4417 = dma.vmem_to_hbm [thread:$0]  %s4412, 256, %s4, [#allocation6], 128, 128, 8
    $region33: #{tpu_custom_call.1} parent=1 // pred_fallthru
      _
    // Predicated region
    $region34: #{tpu_custom_call.1} parent=1 // pred_check
      _
    $region35: #{tpu_custom_call.1} parent=1 // pred_check_branch
      %4419 = sbr.rel (0) target = $region37
    $region36: #{tpu_custom_call.1} parent=1 // pred_region
      %s4421 = ssub.s32 256, 256
      %4422 = vsyncadd [#allocation12], %s4421
      %s4423 = sshll.u32 [#allocation11], 4
      %s4424 = int_to_ptr.vmem [resolvable:$true] %s4423
      %4429 = dma.vmem_to_hbm [thread:$0]  %s4424, 256, %s5, [#allocation12], 128, 128, 8
    $region37: #{tpu_custom_call.1} parent=1 // pred_fallthru
      _
    // Predicated region
    $region38: #{tpu_custom_call.1} parent=1 // pred_check
      _
    $region39: #{tpu_custom_call.1} parent=1 // pred_check_branch
      %4431 = sbr.rel (0) target = $region41
    $region40: #{tpu_custom_call.1} parent=1 // pred_region
      %4432 = dma.done [#allocation6], 256
    $region41: #{tpu_custom_call.1} parent=1 // pred_fallthru
      _
    // Predicated region
    $region42: #{tpu_custom_call.1} parent=1 // pred_check
      _
    $region43: #{tpu_custom_call.1} parent=1 // pred_check_branch
      %4434 = sbr.rel (0) target = $region45
    $region44: #{tpu_custom_call.1} parent=1 // pred_region
      %4435 = dma.done [#allocation12], 256
    $region45: #{tpu_custom_call.1} parent=1 // pred_fallthru
      _
    %4436 = vsyncpa [#allocation5], 1
    %4437 = vsyncpa [#allocation8], 1
    %4438 = vsyncpa [#allocation6], 1
    %4439 = vsyncpa [#allocation12], 1

</llo_original>
